<compile_context>
chip_gen: v7x
topology: tpu7x:2x2x1
jax: 0.10.0
libtpu: 0.0.40
codegen_flags: <defaults>
</compile_context>

<pallas_src>
import jax
import jax.numpy as jnp
from jax.experimental import pallas as pl
from jax.experimental.pallas import tpu as pltpu  # noqa: F401  (imported per convention)


# ----------------------------- kernel ---------------------------------------

def vae_kernel(feat_ref,                              # [S, H]     f32
               enc_wih_ref, enc_whh_ref, enc_b_ref,   # [2,H,4H] bf16, [2,H,4H] bf16, [2,1,4H] f32
               mu_w_ref, mu_b_ref,                    # [H,H] bf16, [1,H] f32   (sampled)
               var_w_ref, var_b_ref,                  # [H,H] bf16, [1,H] f32   (sampled)
               eps_ref,                               # [2,H] f32   reparam noise
               dec_whh_ref,                           # [2,H,4H] bf16
               dec_wih1_ref,                          # [H,4H]  bf16   (decoder layer-1 input weight)
               dec_wih0f_ref,                         # [H,4H]  bf16   (out_w @ dec_W0_ih fold)
               dec_b_ref,                             # [2,1,4H] f32
               dec_b0f_ref,                           # [1,4H]  f32    (dec_b0 + out_b @ dec_W0_ih)
               hmu_ref, hlogvar_ref, dec_ref):        # [2,H] [2,H] [S,H]
    S, H = feat_ref.shape
    f32 = jnp.float32
    bf16 = jnp.bfloat16

    def gates_to_hc(gates, c):
        # gates: [1, 4H] f32 (i|f|g|o).  Activate the full vreg once per nonlinearity
        # (2 EUP dispatches), then lane-slice the activated results.
        sig = jax.nn.sigmoid(gates)
        th = jnp.tanh(gates)
        i = sig[:, 0:H]
        f = sig[:, H:2 * H]
        g = th[:, 2 * H:3 * H]
        o = sig[:, 3 * H:4 * H]
        c_new = f * c + i * g
        h_new = o * jnp.tanh(c_new)
        return h_new, c_new

    zero = jnp.zeros((1, H), f32)

    # -------- encoder: 2-layer LSTM over the sequence (zero init states) -----
    # Batched layer-0 input projection: all S steps in one matmul, off the
    # recurrent critical path.
    feat_bf = feat_ref[...].astype(bf16)                                   # [S, H]
    xproj0 = (jnp.dot(feat_bf, enc_wih_ref[0], preferred_element_type=f32)
              + enc_b_ref[0])                                              # [S, 4H]

    enc_whh0 = enc_whh_ref[0]
    enc_wih1 = enc_wih_ref[1]
    enc_whh1 = enc_whh_ref[1]
    enc_b1 = enc_b_ref[1]

    h0 = c0 = h1 = c1 = zero
    for t in range(S):                       # fully unrolled (S static)
        g0 = xproj0[t:t + 1, :] + jnp.dot(h0.astype(bf16), enc_whh0,
                                          preferred_element_type=f32)
        h0, c0 = gates_to_hc(g0, c0)
        g1 = (jnp.dot(h0.astype(bf16), enc_wih1, preferred_element_type=f32)
              + jnp.dot(h1.astype(bf16), enc_whh1, preferred_element_type=f32)
              + enc_b1)
        h1, c1 = gates_to_hc(g1, c1)

    # -------- Bayesian linear heads (batched over the 2 layers) --------------
    h_enc = jnp.concatenate([h0, h1], axis=0).astype(bf16)                 # [2, H]
    hmu = (jnp.dot(h_enc, mu_w_ref[...], preferred_element_type=f32)
           + mu_b_ref[...])                                                # [2, H]
    hv = (jnp.dot(h_enc, var_w_ref[...], preferred_element_type=f32)
          + var_b_ref[...])                                                # [2, H]
    # Matches torch: log(softplus(x)); can underflow to -inf for very negative hv,
    # same behavior as the reference module.
    hlogvar = jnp.log(jax.nn.softplus(hv))
    hmu_ref[...] = hmu
    hlogvar_ref[...] = hlogvar

    # -------- reparameterization trick ---------------------------------------
    z = hmu + eps_ref[...] * jnp.exp(0.5 * hlogvar)                        # [2, H]
    z0 = z[0:1, :]
    z1 = z[1:2, :]

    # -------- decoder: stacked LSTM cells, init = (z, encoder c) -------------
    dec_whh0 = dec_whh_ref[0]
    dec_whh1 = dec_whh_ref[1]
    dec_wih1 = dec_wih1_ref[...]
    dec_wih0f = dec_wih0f_ref[...]
    dec_b0 = dec_b_ref[0]
    dec_b1 = dec_b_ref[1]
    dec_b0f = dec_b0f_ref[...]

    dh0, dc0, dh1, dc1 = z0, c0, z1, c1
    outs = []
    for t in range(S):                       # fully unrolled (S static)
        if t == 0:
            # x_0 = 0, so the input-weight term vanishes; use the unfolded bias.
            g0 = (jnp.dot(dh0.astype(bf16), dec_whh0, preferred_element_type=f32)
                  + dec_b0)
        else:
            # Output projection folded into layer-0 input weights:
            #   x_t = out(dh1_{t-1})  =>  x_t @ W0_ih == dh1_{t-1} @ (out_w @ W0_ih)
            g0 = (jnp.dot(dh1.astype(bf16), dec_wih0f, preferred_element_type=f32)
                  + jnp.dot(dh0.astype(bf16), dec_whh0, preferred_element_type=f32)
                  + dec_b0f)
        dh0, dc0 = gates_to_hc(g0, dc0)
        g1 = (jnp.dot(dh0.astype(bf16), dec_wih1, preferred_element_type=f32)
              + jnp.dot(dh1.astype(bf16), dec_whh1, preferred_element_type=f32)
              + dec_b1)
        dh1, dc1 = gates_to_hc(g1, dc1)
        outs.append(dh1)

    # torch reverses the collected list; store already time-reversed with ONE store.
    dec_ref[...] = jnp.concatenate(outs[::-1], axis=0)


# ----------------------------- wrapper ---------------------------------------

def _vae_forward(features, p, eps):
    """features: [S, 1, H] (torch layout). eps: [2, 1, H] reparam noise.
    Returns (h_mu[2,H], h_logvar[2,H], decoded[S,1,H]) -- decoded already reversed."""
    S = features.shape[0]
    H = features.shape[2]
    feat2d = features.reshape(S, H).astype(jnp.float32)
    eps2d = eps.reshape(2, H).astype(jnp.float32)

    out_shape = (jax.ShapeDtypeStruct((2, H), jnp.float32),
                 jax.ShapeDtypeStruct((2, H), jnp.float32),
                 jax.ShapeDtypeStruct((S, H), jnp.float32))

    # Single whole-array block, no grid: everything fits comfortably in VMEM
    # (<1 MiB resident on v5e/v6e/v7x), so pipelining machinery buys nothing.
    hmu, hlogvar, dec = pl.pallas_call(vae_kernel, out_shape=out_shape)(
        feat2d,
        p["enc_wih"], p["enc_whh"], p["enc_b"],
        p["mu_w"], p["mu_b"], p["var_w"], p["var_b"],
        eps2d,
        p["dec_whh"], p["dec_wih1"], p["dec_wih0_fold"],
        p["dec_b"], p["dec_b0_fold"])

    return hmu, hlogvar, dec[:, None, :]


vae_forward = jax.jit(_vae_forward)


# ----------------------------- parameter setup --------------------------------

def _bayes_linear_sample(key, in_dim, out_dim):
    """Deterministically sample an effective BayesianLinear weight/bias
    (weight = mu + exp(0.5*log_var)*eps), returned in x@W form."""
    k1, k2, k3, k4, k5, k6 = jax.random.split(key, 6)
    w_mu = 0.1 * jax.random.normal(k1, (out_dim, in_dim), jnp.float32)
    w_lv = -3.0 + 0.1 * jax.random.normal(k2, (out_dim, in_dim), jnp.float32)
    b_mu = 0.1 * jax.random.normal(k3, (out_dim,), jnp.float32)
    b_lv = -3.0 + 0.1 * jax.random.normal(k4, (out_dim,), jnp.float32)
    w = w_mu + jnp.exp(0.5 * w_lv) * jax.random.normal(k5, (out_dim, in_dim), jnp.float32)
    b = b_mu + jnp.exp(0.5 * b_lv) * jax.random.normal(k6, (out_dim,), jnp.float32)
    return w.T, b.reshape(1, out_dim)


def make_params(key, hidden_size):
    """Raw f32 parameters in x@W form.
    LSTM weights: [layer, H, 4H] with gate columns in PyTorch order (i, f, g, o).
    Biases model b_ih + b_hh combined (if real torch weights are ever loaded, sum them)."""
    H = hidden_size
    keys = jax.random.split(key, 9)
    scale = 1.0 / jnp.sqrt(jnp.float32(H))
    enc_wih = scale * jax.random.normal(keys[0], (2, H, 4 * H), jnp.float32)
    enc_whh = scale * jax.random.normal(keys[1], (2, H, 4 * H), jnp.float32)
    enc_b = scale * jax.random.normal(keys[2], (2, 1, 4 * H), jnp.float32)
    dec_wih = scale * jax.random.normal(keys[3], (2, H, 4 * H), jnp.float32)
    dec_whh = scale * jax.random.normal(keys[4], (2, H, 4 * H), jnp.float32)
    dec_b = scale * jax.random.normal(keys[5], (2, 1, 4 * H), jnp.float32)
    mu_w, mu_b = _bayes_linear_sample(keys[6], H, H)
    var_w, var_b = _bayes_linear_sample(keys[7], H, H)
    out_w, out_b = _bayes_linear_sample(keys[8], H, H)      # hidden -> input (== hidden)
    return dict(enc_wih=enc_wih, enc_whh=enc_whh, enc_b=enc_b,
                dec_wih=dec_wih, dec_whh=dec_whh, dec_b=dec_b,
                mu_w=mu_w, mu_b=mu_b, var_w=var_w, var_b=var_b,
                out_w=out_w, out_b=out_b)


def prepare_params(params):
    """One-time prep (outside jit): fold the decoder output projection into the
    decoder layer-0 input weight/bias and pre-cast MXU operands to bfloat16.
    Activations/biases stay f32 (no bf16 VPU/EUP on v5e)."""
    bf = lambda w: w.astype(jnp.bfloat16)
    dec_wih0 = params["dec_wih"][0]                                  # [H, 4H]
    dec_wih0_fold = params["out_w"] @ dec_wih0                       # [H, 4H] f32
    dec_b0_fold = params["dec_b"][0] + params["out_b"] @ dec_wih0    # [1, 4H] f32
    return dict(
        enc_wih=bf(params["enc_wih"]), enc_whh=bf(params["enc_whh"]),
        enc_b=params["enc_b"],
        mu_w=bf(params["mu_w"]), mu_b=params["mu_b"],
        var_w=bf(params["var_w"]), var_b=params["var_b"],
        dec_whh=bf(params["dec_whh"]),
        dec_wih1=bf(params["dec_wih"][1]),
        dec_wih0_fold=bf(dec_wih0_fold),
        dec_b=params["dec_b"],
        dec_b0_fold=dec_b0_fold,
    )


# ----------------------------- main -------------------------------------------

if __name__ == "__main__":
    seq_len = 8
    hidden_size = 32          # input_size == hidden_size (required by the torch module)

    root = jax.random.PRNGKey(0)
    k_feat, k_params, k_eps = jax.random.split(root, 3)

    features = jax.random.normal(k_feat, (seq_len, 1, hidden_size), jnp.float32)
    params = make_params(k_params, hidden_size)
    kernel_params = prepare_params(params)
    eps = jax.random.normal(k_eps, (2, 1, hidden_size), jnp.float32)  # reparam noise

    h_mu, h_log_variance, decoded_features = vae_forward(features, kernel_params, eps)
    jax.block_until_ready((h_mu, h_log_variance, decoded_features))

    assert h_mu.shape == (2, hidden_size)
    assert h_log_variance.shape == (2, hidden_size)
    assert decoded_features.shape == (seq_len, 1, hidden_size)

    print("KERNEL_OK")
</pallas_src>

<mosaic_0001>
module attributes {stable_mosaic.version = 11 : i64} {
  func.func @vae_kernel(%arg0: memref<8x32xf32, #tpu.memory_space<vmem>>, %arg1: memref<2x32x128xbf16, #tpu.memory_space<vmem>>, %arg2: memref<2x32x128xbf16, #tpu.memory_space<vmem>>, %arg3: memref<2x1x128xf32, #tpu.memory_space<vmem>>, %arg4: memref<32x32xbf16, #tpu.memory_space<vmem>>, %arg5: memref<1x32xf32, #tpu.memory_space<vmem>>, %arg6: memref<32x32xbf16, #tpu.memory_space<vmem>>, %arg7: memref<1x32xf32, #tpu.memory_space<vmem>>, %arg8: memref<2x32xf32, #tpu.memory_space<vmem>>, %arg9: memref<2x32x128xbf16, #tpu.memory_space<vmem>>, %arg10: memref<32x128xbf16, #tpu.memory_space<vmem>>, %arg11: memref<32x128xbf16, #tpu.memory_space<vmem>>, %arg12: memref<2x1x128xf32, #tpu.memory_space<vmem>>, %arg13: memref<1x128xf32, #tpu.memory_space<vmem>>, %arg14: memref<2x32xf32, #tpu.memory_space<vmem>>, %arg15: memref<2x32xf32, #tpu.memory_space<vmem>>, %arg16: memref<8x32xf32, #tpu.memory_space<vmem>>) attributes {dimension_semantics = [], scalar_prefetch = 0 : i64, scratch_operands = 0 : i64, tpu.core_type = #tpu.core_type<tc>} {
    %cst = arith.constant 0.000000e+00 : f32
    %0 = vector.broadcast %cst : f32 to vector<1x32xf32>
    %c0 = arith.constant 0 : index
    %c0_0 = arith.constant 0 : index
    %1 = vector.load %arg0[%c0, %c0_0] : memref<8x32xf32, #tpu.memory_space<vmem>>, vector<8x32xf32>
    %2 = arith.truncf %1 : vector<8x32xf32> to vector<8x32xbf16>
    %c0_1 = arith.constant 0 : index
    %c0_2 = arith.constant 0 : index
    %c0_3 = arith.constant 0 : index
    %3 = vector.load %arg1[%c0_1, %c0_2, %c0_3] : memref<2x32x128xbf16, #tpu.memory_space<vmem>>, vector<1x32x128xbf16>
    %4 = vector.shape_cast %3 : vector<1x32x128xbf16> to vector<32x128xbf16>
    %cst_4 = arith.constant dense<0.000000e+00> : vector<8x128xf32>
    %5 = tpu.matmul %2, %4, %cst_4 {dimension_numbers = #tpu.dot_dimension_numbers<[1], [0], [0], [1], [0, 0, 1, 1], [], []>} : vector<8x32xbf16>, vector<32x128xbf16>, vector<8x128xf32> -> vector<8x128xf32>
    %c0_5 = arith.constant 0 : index
    %c0_6 = arith.constant 0 : index
    %c0_7 = arith.constant 0 : index
    %6 = vector.load %arg3[%c0_5, %c0_6, %c0_7] : memref<2x1x128xf32, #tpu.memory_space<vmem>>, vector<1x1x128xf32>
    %7 = vector.shape_cast %6 : vector<1x1x128xf32> to vector<1x128xf32>
    %8 = vector.broadcast %7 : vector<1x128xf32> to vector<8x128xf32>
    %9 = arith.addf %5, %8 : vector<8x128xf32>
    %c0_8 = arith.constant 0 : index
    %c0_9 = arith.constant 0 : index
    %c0_10 = arith.constant 0 : index
    %10 = vector.load %arg2[%c0_8, %c0_9, %c0_10] : memref<2x32x128xbf16, #tpu.memory_space<vmem>>, vector<1x32x128xbf16>
    %11 = vector.shape_cast %10 : vector<1x32x128xbf16> to vector<32x128xbf16>
    %c1 = arith.constant 1 : index
    %c0_11 = arith.constant 0 : index
    %c0_12 = arith.constant 0 : index
    %12 = vector.load %arg1[%c1, %c0_11, %c0_12] : memref<2x32x128xbf16, #tpu.memory_space<vmem>>, vector<1x32x128xbf16>
    %13 = vector.shape_cast %12 : vector<1x32x128xbf16> to vector<32x128xbf16>
    %c1_13 = arith.constant 1 : index
    %c0_14 = arith.constant 0 : index
    %c0_15 = arith.constant 0 : index
    %14 = vector.load %arg2[%c1_13, %c0_14, %c0_15] : memref<2x32x128xbf16, #tpu.memory_space<vmem>>, vector<1x32x128xbf16>
    %15 = vector.shape_cast %14 : vector<1x32x128xbf16> to vector<32x128xbf16>
    %c1_16 = arith.constant 1 : index
    %c0_17 = arith.constant 0 : index
    %c0_18 = arith.constant 0 : index
    %16 = vector.load %arg3[%c1_16, %c0_17, %c0_18] : memref<2x1x128xf32, #tpu.memory_space<vmem>>, vector<1x1x128xf32>
    %17 = vector.shape_cast %16 : vector<1x1x128xf32> to vector<1x128xf32>
    %18 = vector.extract_strided_slice %9 {offsets = [0, 0], sizes = [1, 128], strides = [1, 1]} : vector<8x128xf32> to vector<1x128xf32>
    %19 = arith.truncf %0 : vector<1x32xf32> to vector<1x32xbf16>
    %cst_19 = arith.constant dense<0.000000e+00> : vector<1x128xf32>
    %20 = tpu.matmul %19, %11, %cst_19 {dimension_numbers = #tpu.dot_dimension_numbers<[1], [0], [0], [1], [0, 0, 1, 1], [], []>} : vector<1x32xbf16>, vector<32x128xbf16>, vector<1x128xf32> -> vector<1x128xf32>
    %21 = arith.addf %18, %20 : vector<1x128xf32>
    %22 = arith.negf %21 : vector<1x128xf32>
    %23 = math.exp %22 : vector<1x128xf32>
    %cst_20 = arith.constant 1.000000e+00 : f32
    %24 = vector.broadcast %cst_20 : f32 to vector<1x128xf32>
    %25 = arith.addf %24, %23 : vector<1x128xf32>
    %26 = arith.divf %24, %25 : vector<1x128xf32>
    %27 = math.tanh %21 : vector<1x128xf32>
    %28 = vector.extract_strided_slice %26 {offsets = [0, 0], sizes = [1, 32], strides = [1, 1]} : vector<1x128xf32> to vector<1x32xf32>
    %29 = vector.extract_strided_slice %26 {offsets = [0, 32], sizes = [1, 32], strides = [1, 1]} : vector<1x128xf32> to vector<1x32xf32>
    %30 = vector.extract_strided_slice %27 {offsets = [0, 64], sizes = [1, 32], strides = [1, 1]} : vector<1x128xf32> to vector<1x32xf32>
    %31 = vector.extract_strided_slice %26 {offsets = [0, 96], sizes = [1, 32], strides = [1, 1]} : vector<1x128xf32> to vector<1x32xf32>
    %32 = arith.mulf %29, %0 : vector<1x32xf32>
    %33 = arith.mulf %28, %30 : vector<1x32xf32>
    %34 = arith.addf %32, %33 : vector<1x32xf32>
    %35 = math.tanh %34 : vector<1x32xf32>
    %36 = arith.mulf %31, %35 : vector<1x32xf32>
    %37 = arith.truncf %36 : vector<1x32xf32> to vector<1x32xbf16>
    %cst_21 = arith.constant dense<0.000000e+00> : vector<1x128xf32>
    %38 = tpu.matmul %37, %13, %cst_21 {dimension_numbers = #tpu.dot_dimension_numbers<[1], [0], [0], [1], [0, 0, 1, 1], [], []>} : vector<1x32xbf16>, vector<32x128xbf16>, vector<1x128xf32> -> vector<1x128xf32>
    %39 = arith.truncf %0 : vector<1x32xf32> to vector<1x32xbf16>
    %cst_22 = arith.constant dense<0.000000e+00> : vector<1x128xf32>
    %40 = tpu.matmul %39, %15, %cst_22 {dimension_numbers = #tpu.dot_dimension_numbers<[1], [0], [0], [1], [0, 0, 1, 1], [], []>} : vector<1x32xbf16>, vector<32x128xbf16>, vector<1x128xf32> -> vector<1x128xf32>
    %41 = arith.addf %38, %40 : vector<1x128xf32>
    %42 = arith.addf %41, %17 : vector<1x128xf32>
    %43 = arith.negf %42 : vector<1x128xf32>
    %44 = math.exp %43 : vector<1x128xf32>
    %cst_23 = arith.constant 1.000000e+00 : f32
    %45 = vector.broadcast %cst_23 : f32 to vector<1x128xf32>
    %46 = arith.addf %45, %44 : vector<1x128xf32>
    %47 = arith.divf %45, %46 : vector<1x128xf32>
    %48 = math.tanh %42 : vector<1x128xf32>
    %49 = vector.extract_strided_slice %47 {offsets = [0, 0], sizes = [1, 32], strides = [1, 1]} : vector<1x128xf32> to vector<1x32xf32>
    %50 = vector.extract_strided_slice %47 {offsets = [0, 32], sizes = [1, 32], strides = [1, 1]} : vector<1x128xf32> to vector<1x32xf32>
    %51 = vector.extract_strided_slice %48 {offsets = [0, 64], sizes = [1, 32], strides = [1, 1]} : vector<1x128xf32> to vector<1x32xf32>
    %52 = vector.extract_strided_slice %47 {offsets = [0, 96], sizes = [1, 32], strides = [1, 1]} : vector<1x128xf32> to vector<1x32xf32>
    %53 = arith.mulf %50, %0 : vector<1x32xf32>
    %54 = arith.mulf %49, %51 : vector<1x32xf32>
    %55 = arith.addf %53, %54 : vector<1x32xf32>
    %56 = math.tanh %55 : vector<1x32xf32>
    %57 = arith.mulf %52, %56 : vector<1x32xf32>
    %58 = vector.extract_strided_slice %9 {offsets = [1, 0], sizes = [1, 128], strides = [1, 1]} : vector<8x128xf32> to vector<1x128xf32>
    %59 = arith.truncf %36 : vector<1x32xf32> to vector<1x32xbf16>
    %cst_24 = arith.constant dense<0.000000e+00> : vector<1x128xf32>
    %60 = tpu.matmul %59, %11, %cst_24 {dimension_numbers = #tpu.dot_dimension_numbers<[1], [0], [0], [1], [0, 0, 1, 1], [], []>} : vector<1x32xbf16>, vector<32x128xbf16>, vector<1x128xf32> -> vector<1x128xf32>
    %61 = arith.addf %58, %60 : vector<1x128xf32>
    %62 = arith.negf %61 : vector<1x128xf32>
    %63 = math.exp %62 : vector<1x128xf32>
    %cst_25 = arith.constant 1.000000e+00 : f32
    %64 = vector.broadcast %cst_25 : f32 to vector<1x128xf32>
    %65 = arith.addf %64, %63 : vector<1x128xf32>
    %66 = arith.divf %64, %65 : vector<1x128xf32>
    %67 = math.tanh %61 : vector<1x128xf32>
    %68 = vector.extract_strided_slice %66 {offsets = [0, 0], sizes = [1, 32], strides = [1, 1]} : vector<1x128xf32> to vector<1x32xf32>
    %69 = vector.extract_strided_slice %66 {offsets = [0, 32], sizes = [1, 32], strides = [1, 1]} : vector<1x128xf32> to vector<1x32xf32>
    %70 = vector.extract_strided_slice %67 {offsets = [0, 64], sizes = [1, 32], strides = [1, 1]} : vector<1x128xf32> to vector<1x32xf32>
    %71 = vector.extract_strided_slice %66 {offsets = [0, 96], sizes = [1, 32], strides = [1, 1]} : vector<1x128xf32> to vector<1x32xf32>
    %72 = arith.mulf %69, %34 : vector<1x32xf32>
    %73 = arith.mulf %68, %70 : vector<1x32xf32>
    %74 = arith.addf %72, %73 : vector<1x32xf32>
    %75 = math.tanh %74 : vector<1x32xf32>
    %76 = arith.mulf %71, %75 : vector<1x32xf32>
    %77 = arith.truncf %76 : vector<1x32xf32> to vector<1x32xbf16>
    %cst_26 = arith.constant dense<0.000000e+00> : vector<1x128xf32>
    %78 = tpu.matmul %77, %13, %cst_26 {dimension_numbers = #tpu.dot_dimension_numbers<[1], [0], [0], [1], [0, 0, 1, 1], [], []>} : vector<1x32xbf16>, vector<32x128xbf16>, vector<1x128xf32> -> vector<1x128xf32>
    %79 = arith.truncf %57 : vector<1x32xf32> to vector<1x32xbf16>
    %cst_27 = arith.constant dense<0.000000e+00> : vector<1x128xf32>
    %80 = tpu.matmul %79, %15, %cst_27 {dimension_numbers = #tpu.dot_dimension_numbers<[1], [0], [0], [1], [0, 0, 1, 1], [], []>} : vector<1x32xbf16>, vector<32x128xbf16>, vector<1x128xf32> -> vector<1x128xf32>
    %81 = arith.addf %78, %80 : vector<1x128xf32>
    %82 = arith.addf %81, %17 : vector<1x128xf32>
    %83 = arith.negf %82 : vector<1x128xf32>
    %84 = math.exp %83 : vector<1x128xf32>
    %cst_28 = arith.constant 1.000000e+00 : f32
    %85 = vector.broadcast %cst_28 : f32 to vector<1x128xf32>
    %86 = arith.addf %85, %84 : vector<1x128xf32>
    %87 = arith.divf %85, %86 : vector<1x128xf32>
    %88 = math.tanh %82 : vector<1x128xf32>
    %89 = vector.extract_strided_slice %87 {offsets = [0, 0], sizes = [1, 32], strides = [1, 1]} : vector<1x128xf32> to vector<1x32xf32>
    %90 = vector.extract_strided_slice %87 {offsets = [0, 32], sizes = [1, 32], strides = [1, 1]} : vector<1x128xf32> to vector<1x32xf32>
    %91 = vector.extract_strided_slice %88 {offsets = [0, 64], sizes = [1, 32], strides = [1, 1]} : vector<1x128xf32> to vector<1x32xf32>
    %92 = vector.extract_strided_slice %87 {offsets = [0, 96], sizes = [1, 32], strides = [1, 1]} : vector<1x128xf32> to vector<1x32xf32>
    %93 = arith.mulf %90, %55 : vector<1x32xf32>
    %94 = arith.mulf %89, %91 : vector<1x32xf32>
    %95 = arith.addf %93, %94 : vector<1x32xf32>
    %96 = math.tanh %95 : vector<1x32xf32>
    %97 = arith.mulf %92, %96 : vector<1x32xf32>
    %98 = vector.extract_strided_slice %9 {offsets = [2, 0], sizes = [1, 128], strides = [1, 1]} : vector<8x128xf32> to vector<1x128xf32>
    %99 = arith.truncf %76 : vector<1x32xf32> to vector<1x32xbf16>
    %cst_29 = arith.constant dense<0.000000e+00> : vector<1x128xf32>
    %100 = tpu.matmul %99, %11, %cst_29 {dimension_numbers = #tpu.dot_dimension_numbers<[1], [0], [0], [1], [0, 0, 1, 1], [], []>} : vector<1x32xbf16>, vector<32x128xbf16>, vector<1x128xf32> -> vector<1x128xf32>
    %101 = arith.addf %98, %100 : vector<1x128xf32>
    %102 = arith.negf %101 : vector<1x128xf32>
    %103 = math.exp %102 : vector<1x128xf32>
    %cst_30 = arith.constant 1.000000e+00 : f32
    %104 = vector.broadcast %cst_30 : f32 to vector<1x128xf32>
    %105 = arith.addf %104, %103 : vector<1x128xf32>
    %106 = arith.divf %104, %105 : vector<1x128xf32>
    %107 = math.tanh %101 : vector<1x128xf32>
    %108 = vector.extract_strided_slice %106 {offsets = [0, 0], sizes = [1, 32], strides = [1, 1]} : vector<1x128xf32> to vector<1x32xf32>
    %109 = vector.extract_strided_slice %106 {offsets = [0, 32], sizes = [1, 32], strides = [1, 1]} : vector<1x128xf32> to vector<1x32xf32>
    %110 = vector.extract_strided_slice %107 {offsets = [0, 64], sizes = [1, 32], strides = [1, 1]} : vector<1x128xf32> to vector<1x32xf32>
    %111 = vector.extract_strided_slice %106 {offsets = [0, 96], sizes = [1, 32], strides = [1, 1]} : vector<1x128xf32> to vector<1x32xf32>
    %112 = arith.mulf %109, %74 : vector<1x32xf32>
    %113 = arith.mulf %108, %110 : vector<1x32xf32>
    %114 = arith.addf %112, %113 : vector<1x32xf32>
    %115 = math.tanh %114 : vector<1x32xf32>
    %116 = arith.mulf %111, %115 : vector<1x32xf32>
    %117 = arith.truncf %116 : vector<1x32xf32> to vector<1x32xbf16>
    %cst_31 = arith.constant dense<0.000000e+00> : vector<1x128xf32>
    %118 = tpu.matmul %117, %13, %cst_31 {dimension_numbers = #tpu.dot_dimension_numbers<[1], [0], [0], [1], [0, 0, 1, 1], [], []>} : vector<1x32xbf16>, vector<32x128xbf16>, vector<1x128xf32> -> vector<1x128xf32>
    %119 = arith.truncf %97 : vector<1x32xf32> to vector<1x32xbf16>
    %cst_32 = arith.constant dense<0.000000e+00> : vector<1x128xf32>
    %120 = tpu.matmul %119, %15, %cst_32 {dimension_numbers = #tpu.dot_dimension_numbers<[1], [0], [0], [1], [0, 0, 1, 1], [], []>} : vector<1x32xbf16>, vector<32x128xbf16>, vector<1x128xf32> -> vector<1x128xf32>
    %121 = arith.addf %118, %120 : vector<1x128xf32>
    %122 = arith.addf %121, %17 : vector<1x128xf32>
    %123 = arith.negf %122 : vector<1x128xf32>
    %124 = math.exp %123 : vector<1x128xf32>
    %cst_33 = arith.constant 1.000000e+00 : f32
    %125 = vector.broadcast %cst_33 : f32 to vector<1x128xf32>
    %126 = arith.addf %125, %124 : vector<1x128xf32>
    %127 = arith.divf %125, %126 : vector<1x128xf32>
    %128 = math.tanh %122 : vector<1x128xf32>
    %129 = vector.extract_strided_slice %127 {offsets = [0, 0], sizes = [1, 32], strides = [1, 1]} : vector<1x128xf32> to vector<1x32xf32>
    %130 = vector.extract_strided_slice %127 {offsets = [0, 32], sizes = [1, 32], strides = [1, 1]} : vector<1x128xf32> to vector<1x32xf32>
    %131 = vector.extract_strided_slice %128 {offsets = [0, 64], sizes = [1, 32], strides = [1, 1]} : vector<1x128xf32> to vector<1x32xf32>
    %132 = vector.extract_strided_slice %127 {offsets = [0, 96], sizes = [1, 32], strides = [1, 1]} : vector<1x128xf32> to vector<1x32xf32>
    %133 = arith.mulf %130, %95 : vector<1x32xf32>
    %134 = arith.mulf %129, %131 : vector<1x32xf32>
    %135 = arith.addf %133, %134 : vector<1x32xf32>
    %136 = math.tanh %135 : vector<1x32xf32>
    %137 = arith.mulf %132, %136 : vector<1x32xf32>
    %138 = vector.extract_strided_slice %9 {offsets = [3, 0], sizes = [1, 128], strides = [1, 1]} : vector<8x128xf32> to vector<1x128xf32>
    %139 = arith.truncf %116 : vector<1x32xf32> to vector<1x32xbf16>
    %cst_34 = arith.constant dense<0.000000e+00> : vector<1x128xf32>
    %140 = tpu.matmul %139, %11, %cst_34 {dimension_numbers = #tpu.dot_dimension_numbers<[1], [0], [0], [1], [0, 0, 1, 1], [], []>} : vector<1x32xbf16>, vector<32x128xbf16>, vector<1x128xf32> -> vector<1x128xf32>
    %141 = arith.addf %138, %140 : vector<1x128xf32>
    %142 = arith.negf %141 : vector<1x128xf32>
    %143 = math.exp %142 : vector<1x128xf32>
    %cst_35 = arith.constant 1.000000e+00 : f32
    %144 = vector.broadcast %cst_35 : f32 to vector<1x128xf32>
    %145 = arith.addf %144, %143 : vector<1x128xf32>
    %146 = arith.divf %144, %145 : vector<1x128xf32>
    %147 = math.tanh %141 : vector<1x128xf32>
    %148 = vector.extract_strided_slice %146 {offsets = [0, 0], sizes = [1, 32], strides = [1, 1]} : vector<1x128xf32> to vector<1x32xf32>
    %149 = vector.extract_strided_slice %146 {offsets = [0, 32], sizes = [1, 32], strides = [1, 1]} : vector<1x128xf32> to vector<1x32xf32>
    %150 = vector.extract_strided_slice %147 {offsets = [0, 64], sizes = [1, 32], strides = [1, 1]} : vector<1x128xf32> to vector<1x32xf32>
    %151 = vector.extract_strided_slice %146 {offsets = [0, 96], sizes = [1, 32], strides = [1, 1]} : vector<1x128xf32> to vector<1x32xf32>
    %152 = arith.mulf %149, %114 : vector<1x32xf32>
    %153 = arith.mulf %148, %150 : vector<1x32xf32>
    %154 = arith.addf %152, %153 : vector<1x32xf32>
    %155 = math.tanh %154 : vector<1x32xf32>
    %156 = arith.mulf %151, %155 : vector<1x32xf32>
    %157 = arith.truncf %156 : vector<1x32xf32> to vector<1x32xbf16>
    %cst_36 = arith.constant dense<0.000000e+00> : vector<1x128xf32>
    %158 = tpu.matmul %157, %13, %cst_36 {dimension_numbers = #tpu.dot_dimension_numbers<[1], [0], [0], [1], [0, 0, 1, 1], [], []>} : vector<1x32xbf16>, vector<32x128xbf16>, vector<1x128xf32> -> vector<1x128xf32>
    %159 = arith.truncf %137 : vector<1x32xf32> to vector<1x32xbf16>
    %cst_37 = arith.constant dense<0.000000e+00> : vector<1x128xf32>
    %160 = tpu.matmul %159, %15, %cst_37 {dimension_numbers = #tpu.dot_dimension_numbers<[1], [0], [0], [1], [0, 0, 1, 1], [], []>} : vector<1x32xbf16>, vector<32x128xbf16>, vector<1x128xf32> -> vector<1x128xf32>
    %161 = arith.addf %158, %160 : vector<1x128xf32>
    %162 = arith.addf %161, %17 : vector<1x128xf32>
    %163 = arith.negf %162 : vector<1x128xf32>
    %164 = math.exp %163 : vector<1x128xf32>
    %cst_38 = arith.constant 1.000000e+00 : f32
    %165 = vector.broadcast %cst_38 : f32 to vector<1x128xf32>
    %166 = arith.addf %165, %164 : vector<1x128xf32>
    %167 = arith.divf %165, %166 : vector<1x128xf32>
    %168 = math.tanh %162 : vector<1x128xf32>
    %169 = vector.extract_strided_slice %167 {offsets = [0, 0], sizes = [1, 32], strides = [1, 1]} : vector<1x128xf32> to vector<1x32xf32>
    %170 = vector.extract_strided_slice %167 {offsets = [0, 32], sizes = [1, 32], strides = [1, 1]} : vector<1x128xf32> to vector<1x32xf32>
    %171 = vector.extract_strided_slice %168 {offsets = [0, 64], sizes = [1, 32], strides = [1, 1]} : vector<1x128xf32> to vector<1x32xf32>
    %172 = vector.extract_strided_slice %167 {offsets = [0, 96], sizes = [1, 32], strides = [1, 1]} : vector<1x128xf32> to vector<1x32xf32>
    %173 = arith.mulf %170, %135 : vector<1x32xf32>
    %174 = arith.mulf %169, %171 : vector<1x32xf32>
    %175 = arith.addf %173, %174 : vector<1x32xf32>
    %176 = math.tanh %175 : vector<1x32xf32>
    %177 = arith.mulf %172, %176 : vector<1x32xf32>
    %178 = vector.extract_strided_slice %9 {offsets = [4, 0], sizes = [1, 128], strides = [1, 1]} : vector<8x128xf32> to vector<1x128xf32>
    %179 = arith.truncf %156 : vector<1x32xf32> to vector<1x32xbf16>
    %cst_39 = arith.constant dense<0.000000e+00> : vector<1x128xf32>
    %180 = tpu.matmul %179, %11, %cst_39 {dimension_numbers = #tpu.dot_dimension_numbers<[1], [0], [0], [1], [0, 0, 1, 1], [], []>} : vector<1x32xbf16>, vector<32x128xbf16>, vector<1x128xf32> -> vector<1x128xf32>
    %181 = arith.addf %178, %180 : vector<1x128xf32>
    %182 = arith.negf %181 : vector<1x128xf32>
    %183 = math.exp %182 : vector<1x128xf32>
    %cst_40 = arith.constant 1.000000e+00 : f32
    %184 = vector.broadcast %cst_40 : f32 to vector<1x128xf32>
    %185 = arith.addf %184, %183 : vector<1x128xf32>
    %186 = arith.divf %184, %185 : vector<1x128xf32>
    %187 = math.tanh %181 : vector<1x128xf32>
    %188 = vector.extract_strided_slice %186 {offsets = [0, 0], sizes = [1, 32], strides = [1, 1]} : vector<1x128xf32> to vector<1x32xf32>
    %189 = vector.extract_strided_slice %186 {offsets = [0, 32], sizes = [1, 32], strides = [1, 1]} : vector<1x128xf32> to vector<1x32xf32>
    %190 = vector.extract_strided_slice %187 {offsets = [0, 64], sizes = [1, 32], strides = [1, 1]} : vector<1x128xf32> to vector<1x32xf32>
    %191 = vector.extract_strided_slice %186 {offsets = [0, 96], sizes = [1, 32], strides = [1, 1]} : vector<1x128xf32> to vector<1x32xf32>
    %192 = arith.mulf %189, %154 : vector<1x32xf32>
    %193 = arith.mulf %188, %190 : vector<1x32xf32>
    %194 = arith.addf %192, %193 : vector<1x32xf32>
    %195 = math.tanh %194 : vector<1x32xf32>
    %196 = arith.mulf %191, %195 : vector<1x32xf32>
    %197 = arith.truncf %196 : vector<1x32xf32> to vector<1x32xbf16>
    %cst_41 = arith.constant dense<0.000000e+00> : vector<1x128xf32>
    %198 = tpu.matmul %197, %13, %cst_41 {dimension_numbers = #tpu.dot_dimension_numbers<[1], [0], [0], [1], [0, 0, 1, 1], [], []>} : vector<1x32xbf16>, vector<32x128xbf16>, vector<1x128xf32> -> vector<1x128xf32>
    %199 = arith.truncf %177 : vector<1x32xf32> to vector<1x32xbf16>
    %cst_42 = arith.constant dense<0.000000e+00> : vector<1x128xf32>
    %200 = tpu.matmul %199, %15, %cst_42 {dimension_numbers = #tpu.dot_dimension_numbers<[1], [0], [0], [1], [0, 0, 1, 1], [], []>} : vector<1x32xbf16>, vector<32x128xbf16>, vector<1x128xf32> -> vector<1x128xf32>
    %201 = arith.addf %198, %200 : vector<1x128xf32>
    %202 = arith.addf %201, %17 : vector<1x128xf32>
    %203 = arith.negf %202 : vector<1x128xf32>
    %204 = math.exp %203 : vector<1x128xf32>
    %cst_43 = arith.constant 1.000000e+00 : f32
    %205 = vector.broadcast %cst_43 : f32 to vector<1x128xf32>
    %206 = arith.addf %205, %204 : vector<1x128xf32>
    %207 = arith.divf %205, %206 : vector<1x128xf32>
    %208 = math.tanh %202 : vector<1x128xf32>
    %209 = vector.extract_strided_slice %207 {offsets = [0, 0], sizes = [1, 32], strides = [1, 1]} : vector<1x128xf32> to vector<1x32xf32>
    %210 = vector.extract_strided_slice %207 {offsets = [0, 32], sizes = [1, 32], strides = [1, 1]} : vector<1x128xf32> to vector<1x32xf32>
    %211 = vector.extract_strided_slice %208 {offsets = [0, 64], sizes = [1, 32], strides = [1, 1]} : vector<1x128xf32> to vector<1x32xf32>
    %212 = vector.extract_strided_slice %207 {offsets = [0, 96], sizes = [1, 32], strides = [1, 1]} : vector<1x128xf32> to vector<1x32xf32>
    %213 = arith.mulf %210, %175 : vector<1x32xf32>
    %214 = arith.mulf %209, %211 : vector<1x32xf32>
    %215 = arith.addf %213, %214 : vector<1x32xf32>
    %216 = math.tanh %215 : vector<1x32xf32>
    %217 = arith.mulf %212, %216 : vector<1x32xf32>
    %218 = vector.extract_strided_slice %9 {offsets = [5, 0], sizes = [1, 128], strides = [1, 1]} : vector<8x128xf32> to vector<1x128xf32>
    %219 = arith.truncf %196 : vector<1x32xf32> to vector<1x32xbf16>
    %cst_44 = arith.constant dense<0.000000e+00> : vector<1x128xf32>
    %220 = tpu.matmul %219, %11, %cst_44 {dimension_numbers = #tpu.dot_dimension_numbers<[1], [0], [0], [1], [0, 0, 1, 1], [], []>} : vector<1x32xbf16>, vector<32x128xbf16>, vector<1x128xf32> -> vector<1x128xf32>
    %221 = arith.addf %218, %220 : vector<1x128xf32>
    %222 = arith.negf %221 : vector<1x128xf32>
    %223 = math.exp %222 : vector<1x128xf32>
    %cst_45 = arith.constant 1.000000e+00 : f32
    %224 = vector.broadcast %cst_45 : f32 to vector<1x128xf32>
    %225 = arith.addf %224, %223 : vector<1x128xf32>
    %226 = arith.divf %224, %225 : vector<1x128xf32>
    %227 = math.tanh %221 : vector<1x128xf32>
    %228 = vector.extract_strided_slice %226 {offsets = [0, 0], sizes = [1, 32], strides = [1, 1]} : vector<1x128xf32> to vector<1x32xf32>
    %229 = vector.extract_strided_slice %226 {offsets = [0, 32], sizes = [1, 32], strides = [1, 1]} : vector<1x128xf32> to vector<1x32xf32>
    %230 = vector.extract_strided_slice %227 {offsets = [0, 64], sizes = [1, 32], strides = [1, 1]} : vector<1x128xf32> to vector<1x32xf32>
    %231 = vector.extract_strided_slice %226 {offsets = [0, 96], sizes = [1, 32], strides = [1, 1]} : vector<1x128xf32> to vector<1x32xf32>
    %232 = arith.mulf %229, %194 : vector<1x32xf32>
    %233 = arith.mulf %228, %230 : vector<1x32xf32>
    %234 = arith.addf %232, %233 : vector<1x32xf32>
    %235 = math.tanh %234 : vector<1x32xf32>
    %236 = arith.mulf %231, %235 : vector<1x32xf32>
    %237 = arith.truncf %236 : vector<1x32xf32> to vector<1x32xbf16>
    %cst_46 = arith.constant dense<0.000000e+00> : vector<1x128xf32>
    %238 = tpu.matmul %237, %13, %cst_46 {dimension_numbers = #tpu.dot_dimension_numbers<[1], [0], [0], [1], [0, 0, 1, 1], [], []>} : vector<1x32xbf16>, vector<32x128xbf16>, vector<1x128xf32> -> vector<1x128xf32>
    %239 = arith.truncf %217 : vector<1x32xf32> to vector<1x32xbf16>
    %cst_47 = arith.constant dense<0.000000e+00> : vector<1x128xf32>
    %240 = tpu.matmul %239, %15, %cst_47 {dimension_numbers = #tpu.dot_dimension_numbers<[1], [0], [0], [1], [0, 0, 1, 1], [], []>} : vector<1x32xbf16>, vector<32x128xbf16>, vector<1x128xf32> -> vector<1x128xf32>
    %241 = arith.addf %238, %240 : vector<1x128xf32>
    %242 = arith.addf %241, %17 : vector<1x128xf32>
    %243 = arith.negf %242 : vector<1x128xf32>
    %244 = math.exp %243 : vector<1x128xf32>
    %cst_48 = arith.constant 1.000000e+00 : f32
    %245 = vector.broadcast %cst_48 : f32 to vector<1x128xf32>
    %246 = arith.addf %245, %244 : vector<1x128xf32>
    %247 = arith.divf %245, %246 : vector<1x128xf32>
    %248 = math.tanh %242 : vector<1x128xf32>
    %249 = vector.extract_strided_slice %247 {offsets = [0, 0], sizes = [1, 32], strides = [1, 1]} : vector<1x128xf32> to vector<1x32xf32>
    %250 = vector.extract_strided_slice %247 {offsets = [0, 32], sizes = [1, 32], strides = [1, 1]} : vector<1x128xf32> to vector<1x32xf32>
    %251 = vector.extract_strided_slice %248 {offsets = [0, 64], sizes = [1, 32], strides = [1, 1]} : vector<1x128xf32> to vector<1x32xf32>
    %252 = vector.extract_strided_slice %247 {offsets = [0, 96], sizes = [1, 32], strides = [1, 1]} : vector<1x128xf32> to vector<1x32xf32>
    %253 = arith.mulf %250, %215 : vector<1x32xf32>
    %254 = arith.mulf %249, %251 : vector<1x32xf32>
    %255 = arith.addf %253, %254 : vector<1x32xf32>
    %256 = math.tanh %255 : vector<1x32xf32>
    %257 = arith.mulf %252, %256 : vector<1x32xf32>
    %258 = vector.extract_strided_slice %9 {offsets = [6, 0], sizes = [1, 128], strides = [1, 1]} : vector<8x128xf32> to vector<1x128xf32>
    %259 = arith.truncf %236 : vector<1x32xf32> to vector<1x32xbf16>
    %cst_49 = arith.constant dense<0.000000e+00> : vector<1x128xf32>
    %260 = tpu.matmul %259, %11, %cst_49 {dimension_numbers = #tpu.dot_dimension_numbers<[1], [0], [0], [1], [0, 0, 1, 1], [], []>} : vector<1x32xbf16>, vector<32x128xbf16>, vector<1x128xf32> -> vector<1x128xf32>
    %261 = arith.addf %258, %260 : vector<1x128xf32>
    %262 = arith.negf %261 : vector<1x128xf32>
    %263 = math.exp %262 : vector<1x128xf32>
    %cst_50 = arith.constant 1.000000e+00 : f32
    %264 = vector.broadcast %cst_50 : f32 to vector<1x128xf32>
    %265 = arith.addf %264, %263 : vector<1x128xf32>
    %266 = arith.divf %264, %265 : vector<1x128xf32>
    %267 = math.tanh %261 : vector<1x128xf32>
    %268 = vector.extract_strided_slice %266 {offsets = [0, 0], sizes = [1, 32], strides = [1, 1]} : vector<1x128xf32> to vector<1x32xf32>
    %269 = vector.extract_strided_slice %266 {offsets = [0, 32], sizes = [1, 32], strides = [1, 1]} : vector<1x128xf32> to vector<1x32xf32>
    %270 = vector.extract_strided_slice %267 {offsets = [0, 64], sizes = [1, 32], strides = [1, 1]} : vector<1x128xf32> to vector<1x32xf32>
    %271 = vector.extract_strided_slice %266 {offsets = [0, 96], sizes = [1, 32], strides = [1, 1]} : vector<1x128xf32> to vector<1x32xf32>
    %272 = arith.mulf %269, %234 : vector<1x32xf32>
    %273 = arith.mulf %268, %270 : vector<1x32xf32>
    %274 = arith.addf %272, %273 : vector<1x32xf32>
    %275 = math.tanh %274 : vector<1x32xf32>
    %276 = arith.mulf %271, %275 : vector<1x32xf32>
    %277 = arith.truncf %276 : vector<1x32xf32> to vector<1x32xbf16>
    %cst_51 = arith.constant dense<0.000000e+00> : vector<1x128xf32>
    %278 = tpu.matmul %277, %13, %cst_51 {dimension_numbers = #tpu.dot_dimension_numbers<[1], [0], [0], [1], [0, 0, 1, 1], [], []>} : vector<1x32xbf16>, vector<32x128xbf16>, vector<1x128xf32> -> vector<1x128xf32>
    %279 = arith.truncf %257 : vector<1x32xf32> to vector<1x32xbf16>
    %cst_52 = arith.constant dense<0.000000e+00> : vector<1x128xf32>
    %280 = tpu.matmul %279, %15, %cst_52 {dimension_numbers = #tpu.dot_dimension_numbers<[1], [0], [0], [1], [0, 0, 1, 1], [], []>} : vector<1x32xbf16>, vector<32x128xbf16>, vector<1x128xf32> -> vector<1x128xf32>
    %281 = arith.addf %278, %280 : vector<1x128xf32>
    %282 = arith.addf %281, %17 : vector<1x128xf32>
    %283 = arith.negf %282 : vector<1x128xf32>
    %284 = math.exp %283 : vector<1x128xf32>
    %cst_53 = arith.constant 1.000000e+00 : f32
    %285 = vector.broadcast %cst_53 : f32 to vector<1x128xf32>
    %286 = arith.addf %285, %284 : vector<1x128xf32>
    %287 = arith.divf %285, %286 : vector<1x128xf32>
    %288 = math.tanh %282 : vector<1x128xf32>
    %289 = vector.extract_strided_slice %287 {offsets = [0, 0], sizes = [1, 32], strides = [1, 1]} : vector<1x128xf32> to vector<1x32xf32>
    %290 = vector.extract_strided_slice %287 {offsets = [0, 32], sizes = [1, 32], strides = [1, 1]} : vector<1x128xf32> to vector<1x32xf32>
    %291 = vector.extract_strided_slice %288 {offsets = [0, 64], sizes = [1, 32], strides = [1, 1]} : vector<1x128xf32> to vector<1x32xf32>
    %292 = vector.extract_strided_slice %287 {offsets = [0, 96], sizes = [1, 32], strides = [1, 1]} : vector<1x128xf32> to vector<1x32xf32>
    %293 = arith.mulf %290, %255 : vector<1x32xf32>
    %294 = arith.mulf %289, %291 : vector<1x32xf32>
    %295 = arith.addf %293, %294 : vector<1x32xf32>
    %296 = math.tanh %295 : vector<1x32xf32>
    %297 = arith.mulf %292, %296 : vector<1x32xf32>
    %298 = vector.extract_strided_slice %9 {offsets = [7, 0], sizes = [1, 128], strides = [1, 1]} : vector<8x128xf32> to vector<1x128xf32>
    %299 = arith.truncf %276 : vector<1x32xf32> to vector<1x32xbf16>
    %cst_54 = arith.constant dense<0.000000e+00> : vector<1x128xf32>
    %300 = tpu.matmul %299, %11, %cst_54 {dimension_numbers = #tpu.dot_dimension_numbers<[1], [0], [0], [1], [0, 0, 1, 1], [], []>} : vector<1x32xbf16>, vector<32x128xbf16>, vector<1x128xf32> -> vector<1x128xf32>
    %301 = arith.addf %298, %300 : vector<1x128xf32>
    %302 = arith.negf %301 : vector<1x128xf32>
    %303 = math.exp %302 : vector<1x128xf32>
    %cst_55 = arith.constant 1.000000e+00 : f32
    %304 = vector.broadcast %cst_55 : f32 to vector<1x128xf32>
    %305 = arith.addf %304, %303 : vector<1x128xf32>
    %306 = arith.divf %304, %305 : vector<1x128xf32>
    %307 = math.tanh %301 : vector<1x128xf32>
    %308 = vector.extract_strided_slice %306 {offsets = [0, 0], sizes = [1, 32], strides = [1, 1]} : vector<1x128xf32> to vector<1x32xf32>
    %309 = vector.extract_strided_slice %306 {offsets = [0, 32], sizes = [1, 32], strides = [1, 1]} : vector<1x128xf32> to vector<1x32xf32>
    %310 = vector.extract_strided_slice %307 {offsets = [0, 64], sizes = [1, 32], strides = [1, 1]} : vector<1x128xf32> to vector<1x32xf32>
    %311 = vector.extract_strided_slice %306 {offsets = [0, 96], sizes = [1, 32], strides = [1, 1]} : vector<1x128xf32> to vector<1x32xf32>
    %312 = arith.mulf %309, %274 : vector<1x32xf32>
    %313 = arith.mulf %308, %310 : vector<1x32xf32>
    %314 = arith.addf %312, %313 : vector<1x32xf32>
    %315 = math.tanh %314 : vector<1x32xf32>
    %316 = arith.mulf %311, %315 : vector<1x32xf32>
    %317 = arith.truncf %316 : vector<1x32xf32> to vector<1x32xbf16>
    %cst_56 = arith.constant dense<0.000000e+00> : vector<1x128xf32>
    %318 = tpu.matmul %317, %13, %cst_56 {dimension_numbers = #tpu.dot_dimension_numbers<[1], [0], [0], [1], [0, 0, 1, 1], [], []>} : vector<1x32xbf16>, vector<32x128xbf16>, vector<1x128xf32> -> vector<1x128xf32>
    %319 = arith.truncf %297 : vector<1x32xf32> to vector<1x32xbf16>
    %cst_57 = arith.constant dense<0.000000e+00> : vector<1x128xf32>
    %320 = tpu.matmul %319, %15, %cst_57 {dimension_numbers = #tpu.dot_dimension_numbers<[1], [0], [0], [1], [0, 0, 1, 1], [], []>} : vector<1x32xbf16>, vector<32x128xbf16>, vector<1x128xf32> -> vector<1x128xf32>
    %321 = arith.addf %318, %320 : vector<1x128xf32>
    %322 = arith.addf %321, %17 : vector<1x128xf32>
    %323 = arith.negf %322 : vector<1x128xf32>
    %324 = math.exp %323 : vector<1x128xf32>
    %cst_58 = arith.constant 1.000000e+00 : f32
    %325 = vector.broadcast %cst_58 : f32 to vector<1x128xf32>
    %326 = arith.addf %325, %324 : vector<1x128xf32>
    %327 = arith.divf %325, %326 : vector<1x128xf32>
    %328 = math.tanh %322 : vector<1x128xf32>
    %329 = vector.extract_strided_slice %327 {offsets = [0, 0], sizes = [1, 32], strides = [1, 1]} : vector<1x128xf32> to vector<1x32xf32>
    %330 = vector.extract_strided_slice %327 {offsets = [0, 32], sizes = [1, 32], strides = [1, 1]} : vector<1x128xf32> to vector<1x32xf32>
    %331 = vector.extract_strided_slice %328 {offsets = [0, 64], sizes = [1, 32], strides = [1, 1]} : vector<1x128xf32> to vector<1x32xf32>
    %332 = vector.extract_strided_slice %327 {offsets = [0, 96], sizes = [1, 32], strides = [1, 1]} : vector<1x128xf32> to vector<1x32xf32>
    %333 = arith.mulf %330, %295 : vector<1x32xf32>
    %334 = arith.mulf %329, %331 : vector<1x32xf32>
    %335 = arith.addf %333, %334 : vector<1x32xf32>
    %336 = math.tanh %335 : vector<1x32xf32>
    %337 = arith.mulf %332, %336 : vector<1x32xf32>
    %338 = tpu.concatenate %316, %337 in 0 : vector<1x32xf32>, vector<1x32xf32> -> vector<2x32xf32>
    %339 = arith.truncf %338 : vector<2x32xf32> to vector<2x32xbf16>
    %c0_59 = arith.constant 0 : index
    %c0_60 = arith.constant 0 : index
    %340 = vector.load %arg4[%c0_59, %c0_60] : memref<32x32xbf16, #tpu.memory_space<vmem>>, vector<32x32xbf16>
    %cst_61 = arith.constant dense<0.000000e+00> : vector<2x32xf32>
    %341 = tpu.matmul %339, %340, %cst_61 {dimension_numbers = #tpu.dot_dimension_numbers<[1], [0], [0], [1], [0, 0, 1, 1], [], []>} : vector<2x32xbf16>, vector<32x32xbf16>, vector<2x32xf32> -> vector<2x32xf32>
    %c0_62 = arith.constant 0 : index
    %c0_63 = arith.constant 0 : index
    %342 = vector.load %arg5[%c0_62, %c0_63] : memref<1x32xf32, #tpu.memory_space<vmem>>, vector<1x32xf32>
    %343 = vector.broadcast %342 : vector<1x32xf32> to vector<2x32xf32>
    %344 = arith.addf %341, %343 : vector<2x32xf32>
    %c0_64 = arith.constant 0 : index
    %c0_65 = arith.constant 0 : index
    %345 = vector.load %arg6[%c0_64, %c0_65] : memref<32x32xbf16, #tpu.memory_space<vmem>>, vector<32x32xbf16>
    %cst_66 = arith.constant dense<0.000000e+00> : vector<2x32xf32>
    %346 = tpu.matmul %339, %345, %cst_66 {dimension_numbers = #tpu.dot_dimension_numbers<[1], [0], [0], [1], [0, 0, 1, 1], [], []>} : vector<2x32xbf16>, vector<32x32xbf16>, vector<2x32xf32> -> vector<2x32xf32>
    %c0_67 = arith.constant 0 : index
    %c0_68 = arith.constant 0 : index
    %347 = vector.load %arg7[%c0_67, %c0_68] : memref<1x32xf32, #tpu.memory_space<vmem>>, vector<1x32xf32>
    %348 = vector.broadcast %347 : vector<1x32xf32> to vector<2x32xf32>
    %349 = arith.addf %346, %348 : vector<2x32xf32>
    %cst_69 = arith.constant 0.000000e+00 : f32
    %350 = vector.broadcast %cst_69 : f32 to vector<2x32xf32>
    %351 = arith.maximumf %349, %350 : vector<2x32xf32>
    %352 = vector.broadcast %cst_69 : f32 to vector<2x32xf32>
    %353 = arith.subf %349, %352 : vector<2x32xf32>
    %354 = arith.cmpf one, %353, %353 : vector<2x32xf32>
    %355 = vector.broadcast %cst_69 : f32 to vector<2x32xf32>
    %356 = arith.addf %349, %355 : vector<2x32xf32>
    %357 = math.absf %353 : vector<2x32xf32>
    %cst_70 = arith.constant 0.000000e+00 : f32
    %358 = vector.broadcast %cst_70 : f32 to vector<2x32xf32>
    %359 = arith.subf %358, %357 : vector<2x32xf32>
    %360 = math.exp %359 : vector<2x32xf32>
    %361 = math.log1p %360 : vector<2x32xf32>
    %362 = arith.addf %351, %361 : vector<2x32xf32>
    %363 = arith.select %354, %356, %362 : vector<2x32xi1>, vector<2x32xf32>
    %364 = math.log %363 : vector<2x32xf32>
    %c0_71 = arith.constant 0 : index
    %c0_72 = arith.constant 0 : index
    %365 = vector.load %arg14[%c0_71, %c0_72] : memref<2x32xf32, #tpu.memory_space<vmem>>, vector<2x32xf32>
    tpu.vector_store %arg14[%c0_71, %c0_72], %344 {strides = array<i32>} : memref<2x32xf32, #tpu.memory_space<vmem>>, vector<2x32xf32>,
    %c0_73 = arith.constant 0 : index
    %c0_74 = arith.constant 0 : index
    %366 = vector.load %arg15[%c0_73, %c0_74] : memref<2x32xf32, #tpu.memory_space<vmem>>, vector<2x32xf32>
    tpu.vector_store %arg15[%c0_73, %c0_74], %364 {strides = array<i32>} : memref<2x32xf32, #tpu.memory_space<vmem>>, vector<2x32xf32>,
    %c0_75 = arith.constant 0 : index
    %c0_76 = arith.constant 0 : index
    %367 = vector.load %arg8[%c0_75, %c0_76] : memref<2x32xf32, #tpu.memory_space<vmem>>, vector<2x32xf32>
    %cst_77 = arith.constant 5.000000e-01 : f32
    %368 = vector.broadcast %cst_77 : f32 to vector<2x32xf32>
    %369 = arith.mulf %368, %364 : vector<2x32xf32>
    %370 = math.exp %369 : vector<2x32xf32>
    %371 = arith.mulf %367, %370 : vector<2x32xf32>
    %372 = arith.addf %344, %371 : vector<2x32xf32>
    %373 = vector.extract_strided_slice %372 {offsets = [0, 0], sizes = [1, 32], strides = [1, 1]} : vector<2x32xf32> to vector<1x32xf32>
    %374 = vector.extract_strided_slice %372 {offsets = [1, 0], sizes = [1, 32], strides = [1, 1]} : vector<2x32xf32> to vector<1x32xf32>
    %c0_78 = arith.constant 0 : index
    %c0_79 = arith.constant 0 : index
    %c0_80 = arith.constant 0 : index
    %375 = vector.load %arg9[%c0_78, %c0_79, %c0_80] : memref<2x32x128xbf16, #tpu.memory_space<vmem>>, vector<1x32x128xbf16>
    %376 = vector.shape_cast %375 : vector<1x32x128xbf16> to vector<32x128xbf16>
    %c1_81 = arith.constant 1 : index
    %c0_82 = arith.constant 0 : index
    %c0_83 = arith.constant 0 : index
    %377 = vector.load %arg9[%c1_81, %c0_82, %c0_83] : memref<2x32x128xbf16, #tpu.memory_space<vmem>>, vector<1x32x128xbf16>
    %378 = vector.shape_cast %377 : vector<1x32x128xbf16> to vector<32x128xbf16>
    %c0_84 = arith.constant 0 : index
    %c0_85 = arith.constant 0 : index
    %379 = vector.load %arg10[%c0_84, %c0_85] : memref<32x128xbf16, #tpu.memory_space<vmem>>, vector<32x128xbf16>
    %c0_86 = arith.constant 0 : index
    %c0_87 = arith.constant 0 : index
    %380 = vector.load %arg11[%c0_86, %c0_87] : memref<32x128xbf16, #tpu.memory_space<vmem>>, vector<32x128xbf16>
    %c0_88 = arith.constant 0 : index
    %c0_89 = arith.constant 0 : index
    %c0_90 = arith.constant 0 : index
    %381 = vector.load %arg12[%c0_88, %c0_89, %c0_90] : memref<2x1x128xf32, #tpu.memory_space<vmem>>, vector<1x1x128xf32>
    %382 = vector.shape_cast %381 : vector<1x1x128xf32> to vector<1x128xf32>
    %c1_91 = arith.constant 1 : index
    %c0_92 = arith.constant 0 : index
    %c0_93 = arith.constant 0 : index
    %383 = vector.load %arg12[%c1_91, %c0_92, %c0_93] : memref<2x1x128xf32, #tpu.memory_space<vmem>>, vector<1x1x128xf32>
    %384 = vector.shape_cast %383 : vector<1x1x128xf32> to vector<1x128xf32>
    %c0_94 = arith.constant 0 : index
    %c0_95 = arith.constant 0 : index
    %385 = vector.load %arg13[%c0_94, %c0_95] : memref<1x128xf32, #tpu.memory_space<vmem>>, vector<1x128xf32>
    %386 = arith.truncf %373 : vector<1x32xf32> to vector<1x32xbf16>
    %cst_96 = arith.constant dense<0.000000e+00> : vector<1x128xf32>
    %387 = tpu.matmul %386, %376, %cst_96 {dimension_numbers = #tpu.dot_dimension_numbers<[1], [0], [0], [1], [0, 0, 1, 1], [], []>} : vector<1x32xbf16>, vector<32x128xbf16>, vector<1x128xf32> -> vector<1x128xf32>
    %388 = arith.addf %387, %382 : vector<1x128xf32>
    %389 = arith.negf %388 : vector<1x128xf32>
    %390 = math.exp %389 : vector<1x128xf32>
    %cst_97 = arith.constant 1.000000e+00 : f32
    %391 = vector.broadcast %cst_97 : f32 to vector<1x128xf32>
    %392 = arith.addf %391, %390 : vector<1x128xf32>
    %393 = arith.divf %391, %392 : vector<1x128xf32>
    %394 = math.tanh %388 : vector<1x128xf32>
    %395 = vector.extract_strided_slice %393 {offsets = [0, 0], sizes = [1, 32], strides = [1, 1]} : vector<1x128xf32> to vector<1x32xf32>
    %396 = vector.extract_strided_slice %393 {offsets = [0, 32], sizes = [1, 32], strides = [1, 1]} : vector<1x128xf32> to vector<1x32xf32>
    %397 = vector.extract_strided_slice %394 {offsets = [0, 64], sizes = [1, 32], strides = [1, 1]} : vector<1x128xf32> to vector<1x32xf32>
    %398 = vector.extract_strided_slice %393 {offsets = [0, 96], sizes = [1, 32], strides = [1, 1]} : vector<1x128xf32> to vector<1x32xf32>
    %399 = arith.mulf %396, %314 : vector<1x32xf32>
    %400 = arith.mulf %395, %397 : vector<1x32xf32>
    %401 = arith.addf %399, %400 : vector<1x32xf32>
    %402 = math.tanh %401 : vector<1x32xf32>
    %403 = arith.mulf %398, %402 : vector<1x32xf32>
    %404 = arith.truncf %403 : vector<1x32xf32> to vector<1x32xbf16>
    %cst_98 = arith.constant dense<0.000000e+00> : vector<1x128xf32>
    %405 = tpu.matmul %404, %379, %cst_98 {dimension_numbers = #tpu.dot_dimension_numbers<[1], [0], [0], [1], [0, 0, 1, 1], [], []>} : vector<1x32xbf16>, vector<32x128xbf16>, vector<1x128xf32> -> vector<1x128xf32>
    %406 = arith.truncf %374 : vector<1x32xf32> to vector<1x32xbf16>
    %cst_99 = arith.constant dense<0.000000e+00> : vector<1x128xf32>
    %407 = tpu.matmul %406, %378, %cst_99 {dimension_numbers = #tpu.dot_dimension_numbers<[1], [0], [0], [1], [0, 0, 1, 1], [], []>} : vector<1x32xbf16>, vector<32x128xbf16>, vector<1x128xf32> -> vector<1x128xf32>
    %408 = arith.addf %405, %407 : vector<1x128xf32>
    %409 = arith.addf %408, %384 : vector<1x128xf32>
    %410 = arith.negf %409 : vector<1x128xf32>
    %411 = math.exp %410 : vector<1x128xf32>
    %cst_100 = arith.constant 1.000000e+00 : f32
    %412 = vector.broadcast %cst_100 : f32 to vector<1x128xf32>
    %413 = arith.addf %412, %411 : vector<1x128xf32>
    %414 = arith.divf %412, %413 : vector<1x128xf32>
    %415 = math.tanh %409 : vector<1x128xf32>
    %416 = vector.extract_strided_slice %414 {offsets = [0, 0], sizes = [1, 32], strides = [1, 1]} : vector<1x128xf32> to vector<1x32xf32>
    %417 = vector.extract_strided_slice %414 {offsets = [0, 32], sizes = [1, 32], strides = [1, 1]} : vector<1x128xf32> to vector<1x32xf32>
    %418 = vector.extract_strided_slice %415 {offsets = [0, 64], sizes = [1, 32], strides = [1, 1]} : vector<1x128xf32> to vector<1x32xf32>
    %419 = vector.extract_strided_slice %414 {offsets = [0, 96], sizes = [1, 32], strides = [1, 1]} : vector<1x128xf32> to vector<1x32xf32>
    %420 = arith.mulf %417, %335 : vector<1x32xf32>
    %421 = arith.mulf %416, %418 : vector<1x32xf32>
    %422 = arith.addf %420, %421 : vector<1x32xf32>
    %423 = math.tanh %422 : vector<1x32xf32>
    %424 = arith.mulf %419, %423 : vector<1x32xf32>
    %425 = arith.truncf %424 : vector<1x32xf32> to vector<1x32xbf16>
    %cst_101 = arith.constant dense<0.000000e+00> : vector<1x128xf32>
    %426 = tpu.matmul %425, %380, %cst_101 {dimension_numbers = #tpu.dot_dimension_numbers<[1], [0], [0], [1], [0, 0, 1, 1], [], []>} : vector<1x32xbf16>, vector<32x128xbf16>, vector<1x128xf32> -> vector<1x128xf32>
    %427 = arith.truncf %403 : vector<1x32xf32> to vector<1x32xbf16>
    %cst_102 = arith.constant dense<0.000000e+00> : vector<1x128xf32>
    %428 = tpu.matmul %427, %376, %cst_102 {dimension_numbers = #tpu.dot_dimension_numbers<[1], [0], [0], [1], [0, 0, 1, 1], [], []>} : vector<1x32xbf16>, vector<32x128xbf16>, vector<1x128xf32> -> vector<1x128xf32>
    %429 = arith.addf %426, %428 : vector<1x128xf32>
    %430 = arith.addf %429, %385 : vector<1x128xf32>
    %431 = arith.negf %430 : vector<1x128xf32>
    %432 = math.exp %431 : vector<1x128xf32>
    %cst_103 = arith.constant 1.000000e+00 : f32
    %433 = vector.broadcast %cst_103 : f32 to vector<1x128xf32>
    %434 = arith.addf %433, %432 : vector<1x128xf32>
    %435 = arith.divf %433, %434 : vector<1x128xf32>
    %436 = math.tanh %430 : vector<1x128xf32>
    %437 = vector.extract_strided_slice %435 {offsets = [0, 0], sizes = [1, 32], strides = [1, 1]} : vector<1x128xf32> to vector<1x32xf32>
    %438 = vector.extract_strided_slice %435 {offsets = [0, 32], sizes = [1, 32], strides = [1, 1]} : vector<1x128xf32> to vector<1x32xf32>
    %439 = vector.extract_strided_slice %436 {offsets = [0, 64], sizes = [1, 32], strides = [1, 1]} : vector<1x128xf32> to vector<1x32xf32>
    %440 = vector.extract_strided_slice %435 {offsets = [0, 96], sizes = [1, 32], strides = [1, 1]} : vector<1x128xf32> to vector<1x32xf32>
    %441 = arith.mulf %438, %401 : vector<1x32xf32>
    %442 = arith.mulf %437, %439 : vector<1x32xf32>
    %443 = arith.addf %441, %442 : vector<1x32xf32>
    %444 = math.tanh %443 : vector<1x32xf32>
    %445 = arith.mulf %440, %444 : vector<1x32xf32>
    %446 = arith.truncf %445 : vector<1x32xf32> to vector<1x32xbf16>
    %cst_104 = arith.constant dense<0.000000e+00> : vector<1x128xf32>
    %447 = tpu.matmul %446, %379, %cst_104 {dimension_numbers = #tpu.dot_dimension_numbers<[1], [0], [0], [1], [0, 0, 1, 1], [], []>} : vector<1x32xbf16>, vector<32x128xbf16>, vector<1x128xf32> -> vector<1x128xf32>
    %448 = arith.truncf %424 : vector<1x32xf32> to vector<1x32xbf16>
    %cst_105 = arith.constant dense<0.000000e+00> : vector<1x128xf32>
    %449 = tpu.matmul %448, %378, %cst_105 {dimension_numbers = #tpu.dot_dimension_numbers<[1], [0], [0], [1], [0, 0, 1, 1], [], []>} : vector<1x32xbf16>, vector<32x128xbf16>, vector<1x128xf32> -> vector<1x128xf32>
    %450 = arith.addf %447, %449 : vector<1x128xf32>
    %451 = arith.addf %450, %384 : vector<1x128xf32>
    %452 = arith.negf %451 : vector<1x128xf32>
    %453 = math.exp %452 : vector<1x128xf32>
    %cst_106 = arith.constant 1.000000e+00 : f32
    %454 = vector.broadcast %cst_106 : f32 to vector<1x128xf32>
    %455 = arith.addf %454, %453 : vector<1x128xf32>
    %456 = arith.divf %454, %455 : vector<1x128xf32>
    %457 = math.tanh %451 : vector<1x128xf32>
    %458 = vector.extract_strided_slice %456 {offsets = [0, 0], sizes = [1, 32], strides = [1, 1]} : vector<1x128xf32> to vector<1x32xf32>
    %459 = vector.extract_strided_slice %456 {offsets = [0, 32], sizes = [1, 32], strides = [1, 1]} : vector<1x128xf32> to vector<1x32xf32>
    %460 = vector.extract_strided_slice %457 {offsets = [0, 64], sizes = [1, 32], strides = [1, 1]} : vector<1x128xf32> to vector<1x32xf32>
    %461 = vector.extract_strided_slice %456 {offsets = [0, 96], sizes = [1, 32], strides = [1, 1]} : vector<1x128xf32> to vector<1x32xf32>
    %462 = arith.mulf %459, %422 : vector<1x32xf32>
    %463 = arith.mulf %458, %460 : vector<1x32xf32>
    %464 = arith.addf %462, %463 : vector<1x32xf32>
    %465 = math.tanh %464 : vector<1x32xf32>
    %466 = arith.mulf %461, %465 : vector<1x32xf32>
    %467 = arith.truncf %466 : vector<1x32xf32> to vector<1x32xbf16>
    %cst_107 = arith.constant dense<0.000000e+00> : vector<1x128xf32>
    %468 = tpu.matmul %467, %380, %cst_107 {dimension_numbers = #tpu.dot_dimension_numbers<[1], [0], [0], [1], [0, 0, 1, 1], [], []>} : vector<1x32xbf16>, vector<32x128xbf16>, vector<1x128xf32> -> vector<1x128xf32>
    %469 = arith.truncf %445 : vector<1x32xf32> to vector<1x32xbf16>
    %cst_108 = arith.constant dense<0.000000e+00> : vector<1x128xf32>
    %470 = tpu.matmul %469, %376, %cst_108 {dimension_numbers = #tpu.dot_dimension_numbers<[1], [0], [0], [1], [0, 0, 1, 1], [], []>} : vector<1x32xbf16>, vector<32x128xbf16>, vector<1x128xf32> -> vector<1x128xf32>
    %471 = arith.addf %468, %470 : vector<1x128xf32>
    %472 = arith.addf %471, %385 : vector<1x128xf32>
    %473 = arith.negf %472 : vector<1x128xf32>
    %474 = math.exp %473 : vector<1x128xf32>
    %cst_109 = arith.constant 1.000000e+00 : f32
    %475 = vector.broadcast %cst_109 : f32 to vector<1x128xf32>
    %476 = arith.addf %475, %474 : vector<1x128xf32>
    %477 = arith.divf %475, %476 : vector<1x128xf32>
    %478 = math.tanh %472 : vector<1x128xf32>
    %479 = vector.extract_strided_slice %477 {offsets = [0, 0], sizes = [1, 32], strides = [1, 1]} : vector<1x128xf32> to vector<1x32xf32>
    %480 = vector.extract_strided_slice %477 {offsets = [0, 32], sizes = [1, 32], strides = [1, 1]} : vector<1x128xf32> to vector<1x32xf32>
    %481 = vector.extract_strided_slice %478 {offsets = [0, 64], sizes = [1, 32], strides = [1, 1]} : vector<1x128xf32> to vector<1x32xf32>
    %482 = vector.extract_strided_slice %477 {offsets = [0, 96], sizes = [1, 32], strides = [1, 1]} : vector<1x128xf32> to vector<1x32xf32>
    %483 = arith.mulf %480, %443 : vector<1x32xf32>
    %484 = arith.mulf %479, %481 : vector<1x32xf32>
    %485 = arith.addf %483, %484 : vector<1x32xf32>
    %486 = math.tanh %485 : vector<1x32xf32>
    %487 = arith.mulf %482, %486 : vector<1x32xf32>
    %488 = arith.truncf %487 : vector<1x32xf32> to vector<1x32xbf16>
    %cst_110 = arith.constant dense<0.000000e+00> : vector<1x128xf32>
    %489 = tpu.matmul %488, %379, %cst_110 {dimension_numbers = #tpu.dot_dimension_numbers<[1], [0], [0], [1], [0, 0, 1, 1], [], []>} : vector<1x32xbf16>, vector<32x128xbf16>, vector<1x128xf32> -> vector<1x128xf32>
    %490 = arith.truncf %466 : vector<1x32xf32> to vector<1x32xbf16>
    %cst_111 = arith.constant dense<0.000000e+00> : vector<1x128xf32>
    %491 = tpu.matmul %490, %378, %cst_111 {dimension_numbers = #tpu.dot_dimension_numbers<[1], [0], [0], [1], [0, 0, 1, 1], [], []>} : vector<1x32xbf16>, vector<32x128xbf16>, vector<1x128xf32> -> vector<1x128xf32>
    %492 = arith.addf %489, %491 : vector<1x128xf32>
    %493 = arith.addf %492, %384 : vector<1x128xf32>
    %494 = arith.negf %493 : vector<1x128xf32>
    %495 = math.exp %494 : vector<1x128xf32>
    %cst_112 = arith.constant 1.000000e+00 : f32
    %496 = vector.broadcast %cst_112 : f32 to vector<1x128xf32>
    %497 = arith.addf %496, %495 : vector<1x128xf32>
    %498 = arith.divf %496, %497 : vector<1x128xf32>
    %499 = math.tanh %493 : vector<1x128xf32>
    %500 = vector.extract_strided_slice %498 {offsets = [0, 0], sizes = [1, 32], strides = [1, 1]} : vector<1x128xf32> to vector<1x32xf32>
    %501 = vector.extract_strided_slice %498 {offsets = [0, 32], sizes = [1, 32], strides = [1, 1]} : vector<1x128xf32> to vector<1x32xf32>
    %502 = vector.extract_strided_slice %499 {offsets = [0, 64], sizes = [1, 32], strides = [1, 1]} : vector<1x128xf32> to vector<1x32xf32>
    %503 = vector.extract_strided_slice %498 {offsets = [0, 96], sizes = [1, 32], strides = [1, 1]} : vector<1x128xf32> to vector<1x32xf32>
    %504 = arith.mulf %501, %464 : vector<1x32xf32>
    %505 = arith.mulf %500, %502 : vector<1x32xf32>
    %506 = arith.addf %504, %505 : vector<1x32xf32>
    %507 = math.tanh %506 : vector<1x32xf32>
    %508 = arith.mulf %503, %507 : vector<1x32xf32>
    %509 = arith.truncf %508 : vector<1x32xf32> to vector<1x32xbf16>
    %cst_113 = arith.constant dense<0.000000e+00> : vector<1x128xf32>
    %510 = tpu.matmul %509, %380, %cst_113 {dimension_numbers = #tpu.dot_dimension_numbers<[1], [0], [0], [1], [0, 0, 1, 1], [], []>} : vector<1x32xbf16>, vector<32x128xbf16>, vector<1x128xf32> -> vector<1x128xf32>
    %511 = arith.truncf %487 : vector<1x32xf32> to vector<1x32xbf16>
    %cst_114 = arith.constant dense<0.000000e+00> : vector<1x128xf32>
    %512 = tpu.matmul %511, %376, %cst_114 {dimension_numbers = #tpu.dot_dimension_numbers<[1], [0], [0], [1], [0, 0, 1, 1], [], []>} : vector<1x32xbf16>, vector<32x128xbf16>, vector<1x128xf32> -> vector<1x128xf32>
    %513 = arith.addf %510, %512 : vector<1x128xf32>
    %514 = arith.addf %513, %385 : vector<1x128xf32>
    %515 = arith.negf %514 : vector<1x128xf32>
    %516 = math.exp %515 : vector<1x128xf32>
    %cst_115 = arith.constant 1.000000e+00 : f32
    %517 = vector.broadcast %cst_115 : f32 to vector<1x128xf32>
    %518 = arith.addf %517, %516 : vector<1x128xf32>
    %519 = arith.divf %517, %518 : vector<1x128xf32>
    %520 = math.tanh %514 : vector<1x128xf32>
    %521 = vector.extract_strided_slice %519 {offsets = [0, 0], sizes = [1, 32], strides = [1, 1]} : vector<1x128xf32> to vector<1x32xf32>
    %522 = vector.extract_strided_slice %519 {offsets = [0, 32], sizes = [1, 32], strides = [1, 1]} : vector<1x128xf32> to vector<1x32xf32>
    %523 = vector.extract_strided_slice %520 {offsets = [0, 64], sizes = [1, 32], strides = [1, 1]} : vector<1x128xf32> to vector<1x32xf32>
    %524 = vector.extract_strided_slice %519 {offsets = [0, 96], sizes = [1, 32], strides = [1, 1]} : vector<1x128xf32> to vector<1x32xf32>
    %525 = arith.mulf %522, %485 : vector<1x32xf32>
    %526 = arith.mulf %521, %523 : vector<1x32xf32>
    %527 = arith.addf %525, %526 : vector<1x32xf32>
    %528 = math.tanh %527 : vector<1x32xf32>
    %529 = arith.mulf %524, %528 : vector<1x32xf32>
    %530 = arith.truncf %529 : vector<1x32xf32> to vector<1x32xbf16>
    %cst_116 = arith.constant dense<0.000000e+00> : vector<1x128xf32>
    %531 = tpu.matmul %530, %379, %cst_116 {dimension_numbers = #tpu.dot_dimension_numbers<[1], [0], [0], [1], [0, 0, 1, 1], [], []>} : vector<1x32xbf16>, vector<32x128xbf16>, vector<1x128xf32> -> vector<1x128xf32>
    %532 = arith.truncf %508 : vector<1x32xf32> to vector<1x32xbf16>
    %cst_117 = arith.constant dense<0.000000e+00> : vector<1x128xf32>
    %533 = tpu.matmul %532, %378, %cst_117 {dimension_numbers = #tpu.dot_dimension_numbers<[1], [0], [0], [1], [0, 0, 1, 1], [], []>} : vector<1x32xbf16>, vector<32x128xbf16>, vector<1x128xf32> -> vector<1x128xf32>
    %534 = arith.addf %531, %533 : vector<1x128xf32>
    %535 = arith.addf %534, %384 : vector<1x128xf32>
    %536 = arith.negf %535 : vector<1x128xf32>
    %537 = math.exp %536 : vector<1x128xf32>
    %cst_118 = arith.constant 1.000000e+00 : f32
    %538 = vector.broadcast %cst_118 : f32 to vector<1x128xf32>
    %539 = arith.addf %538, %537 : vector<1x128xf32>
    %540 = arith.divf %538, %539 : vector<1x128xf32>
    %541 = math.tanh %535 : vector<1x128xf32>
    %542 = vector.extract_strided_slice %540 {offsets = [0, 0], sizes = [1, 32], strides = [1, 1]} : vector<1x128xf32> to vector<1x32xf32>
    %543 = vector.extract_strided_slice %540 {offsets = [0, 32], sizes = [1, 32], strides = [1, 1]} : vector<1x128xf32> to vector<1x32xf32>
    %544 = vector.extract_strided_slice %541 {offsets = [0, 64], sizes = [1, 32], strides = [1, 1]} : vector<1x128xf32> to vector<1x32xf32>
    %545 = vector.extract_strided_slice %540 {offsets = [0, 96], sizes = [1, 32], strides = [1, 1]} : vector<1x128xf32> to vector<1x32xf32>
    %546 = arith.mulf %543, %506 : vector<1x32xf32>
    %547 = arith.mulf %542, %544 : vector<1x32xf32>
    %548 = arith.addf %546, %547 : vector<1x32xf32>
    %549 = math.tanh %548 : vector<1x32xf32>
    %550 = arith.mulf %545, %549 : vector<1x32xf32>
    %551 = arith.truncf %550 : vector<1x32xf32> to vector<1x32xbf16>
    %cst_119 = arith.constant dense<0.000000e+00> : vector<1x128xf32>
    %552 = tpu.matmul %551, %380, %cst_119 {dimension_numbers = #tpu.dot_dimension_numbers<[1], [0], [0], [1], [0, 0, 1, 1], [], []>} : vector<1x32xbf16>, vector<32x128xbf16>, vector<1x128xf32> -> vector<1x128xf32>
    %553 = arith.truncf %529 : vector<1x32xf32> to vector<1x32xbf16>
    %cst_120 = arith.constant dense<0.000000e+00> : vector<1x128xf32>
    %554 = tpu.matmul %553, %376, %cst_120 {dimension_numbers = #tpu.dot_dimension_numbers<[1], [0], [0], [1], [0, 0, 1, 1], [], []>} : vector<1x32xbf16>, vector<32x128xbf16>, vector<1x128xf32> -> vector<1x128xf32>
    %555 = arith.addf %552, %554 : vector<1x128xf32>
    %556 = arith.addf %555, %385 : vector<1x128xf32>
    %557 = arith.negf %556 : vector<1x128xf32>
    %558 = math.exp %557 : vector<1x128xf32>
    %cst_121 = arith.constant 1.000000e+00 : f32
    %559 = vector.broadcast %cst_121 : f32 to vector<1x128xf32>
    %560 = arith.addf %559, %558 : vector<1x128xf32>
    %561 = arith.divf %559, %560 : vector<1x128xf32>
    %562 = math.tanh %556 : vector<1x128xf32>
    %563 = vector.extract_strided_slice %561 {offsets = [0, 0], sizes = [1, 32], strides = [1, 1]} : vector<1x128xf32> to vector<1x32xf32>
    %564 = vector.extract_strided_slice %561 {offsets = [0, 32], sizes = [1, 32], strides = [1, 1]} : vector<1x128xf32> to vector<1x32xf32>
    %565 = vector.extract_strided_slice %562 {offsets = [0, 64], sizes = [1, 32], strides = [1, 1]} : vector<1x128xf32> to vector<1x32xf32>
    %566 = vector.extract_strided_slice %561 {offsets = [0, 96], sizes = [1, 32], strides = [1, 1]} : vector<1x128xf32> to vector<1x32xf32>
    %567 = arith.mulf %564, %527 : vector<1x32xf32>
    %568 = arith.mulf %563, %565 : vector<1x32xf32>
    %569 = arith.addf %567, %568 : vector<1x32xf32>
    %570 = math.tanh %569 : vector<1x32xf32>
    %571 = arith.mulf %566, %570 : vector<1x32xf32>
    %572 = arith.truncf %571 : vector<1x32xf32> to vector<1x32xbf16>
    %cst_122 = arith.constant dense<0.000000e+00> : vector<1x128xf32>
    %573 = tpu.matmul %572, %379, %cst_122 {dimension_numbers = #tpu.dot_dimension_numbers<[1], [0], [0], [1], [0, 0, 1, 1], [], []>} : vector<1x32xbf16>, vector<32x128xbf16>, vector<1x128xf32> -> vector<1x128xf32>
    %574 = arith.truncf %550 : vector<1x32xf32> to vector<1x32xbf16>
    %cst_123 = arith.constant dense<0.000000e+00> : vector<1x128xf32>
    %575 = tpu.matmul %574, %378, %cst_123 {dimension_numbers = #tpu.dot_dimension_numbers<[1], [0], [0], [1], [0, 0, 1, 1], [], []>} : vector<1x32xbf16>, vector<32x128xbf16>, vector<1x128xf32> -> vector<1x128xf32>
    %576 = arith.addf %573, %575 : vector<1x128xf32>
    %577 = arith.addf %576, %384 : vector<1x128xf32>
    %578 = arith.negf %577 : vector<1x128xf32>
    %579 = math.exp %578 : vector<1x128xf32>
    %cst_124 = arith.constant 1.000000e+00 : f32
    %580 = vector.broadcast %cst_124 : f32 to vector<1x128xf32>
    %581 = arith.addf %580, %579 : vector<1x128xf32>
    %582 = arith.divf %580, %581 : vector<1x128xf32>
    %583 = math.tanh %577 : vector<1x128xf32>
    %584 = vector.extract_strided_slice %582 {offsets = [0, 0], sizes = [1, 32], strides = [1, 1]} : vector<1x128xf32> to vector<1x32xf32>
    %585 = vector.extract_strided_slice %582 {offsets = [0, 32], sizes = [1, 32], strides = [1, 1]} : vector<1x128xf32> to vector<1x32xf32>
    %586 = vector.extract_strided_slice %583 {offsets = [0, 64], sizes = [1, 32], strides = [1, 1]} : vector<1x128xf32> to vector<1x32xf32>
    %587 = vector.extract_strided_slice %582 {offsets = [0, 96], sizes = [1, 32], strides = [1, 1]} : vector<1x128xf32> to vector<1x32xf32>
    %588 = arith.mulf %585, %548 : vector<1x32xf32>
    %589 = arith.mulf %584, %586 : vector<1x32xf32>
    %590 = arith.addf %588, %589 : vector<1x32xf32>
    %591 = math.tanh %590 : vector<1x32xf32>
    %592 = arith.mulf %587, %591 : vector<1x32xf32>
    %593 = arith.truncf %592 : vector<1x32xf32> to vector<1x32xbf16>
    %cst_125 = arith.constant dense<0.000000e+00> : vector<1x128xf32>
    %594 = tpu.matmul %593, %380, %cst_125 {dimension_numbers = #tpu.dot_dimension_numbers<[1], [0], [0], [1], [0, 0, 1, 1], [], []>} : vector<1x32xbf16>, vector<32x128xbf16>, vector<1x128xf32> -> vector<1x128xf32>
    %595 = arith.truncf %571 : vector<1x32xf32> to vector<1x32xbf16>
    %cst_126 = arith.constant dense<0.000000e+00> : vector<1x128xf32>
    %596 = tpu.matmul %595, %376, %cst_126 {dimension_numbers = #tpu.dot_dimension_numbers<[1], [0], [0], [1], [0, 0, 1, 1], [], []>} : vector<1x32xbf16>, vector<32x128xbf16>, vector<1x128xf32> -> vector<1x128xf32>
    %597 = arith.addf %594, %596 : vector<1x128xf32>
    %598 = arith.addf %597, %385 : vector<1x128xf32>
    %599 = arith.negf %598 : vector<1x128xf32>
    %600 = math.exp %599 : vector<1x128xf32>
    %cst_127 = arith.constant 1.000000e+00 : f32
    %601 = vector.broadcast %cst_127 : f32 to vector<1x128xf32>
    %602 = arith.addf %601, %600 : vector<1x128xf32>
    %603 = arith.divf %601, %602 : vector<1x128xf32>
    %604 = math.tanh %598 : vector<1x128xf32>
    %605 = vector.extract_strided_slice %603 {offsets = [0, 0], sizes = [1, 32], strides = [1, 1]} : vector<1x128xf32> to vector<1x32xf32>
    %606 = vector.extract_strided_slice %603 {offsets = [0, 32], sizes = [1, 32], strides = [1, 1]} : vector<1x128xf32> to vector<1x32xf32>
    %607 = vector.extract_strided_slice %604 {offsets = [0, 64], sizes = [1, 32], strides = [1, 1]} : vector<1x128xf32> to vector<1x32xf32>
    %608 = vector.extract_strided_slice %603 {offsets = [0, 96], sizes = [1, 32], strides = [1, 1]} : vector<1x128xf32> to vector<1x32xf32>
    %609 = arith.mulf %606, %569 : vector<1x32xf32>
    %610 = arith.mulf %605, %607 : vector<1x32xf32>
    %611 = arith.addf %609, %610 : vector<1x32xf32>
    %612 = math.tanh %611 : vector<1x32xf32>
    %613 = arith.mulf %608, %612 : vector<1x32xf32>
    %614 = arith.truncf %613 : vector<1x32xf32> to vector<1x32xbf16>
    %cst_128 = arith.constant dense<0.000000e+00> : vector<1x128xf32>
    %615 = tpu.matmul %614, %379, %cst_128 {dimension_numbers = #tpu.dot_dimension_numbers<[1], [0], [0], [1], [0, 0, 1, 1], [], []>} : vector<1x32xbf16>, vector<32x128xbf16>, vector<1x128xf32> -> vector<1x128xf32>
    %616 = arith.truncf %592 : vector<1x32xf32> to vector<1x32xbf16>
    %cst_129 = arith.constant dense<0.000000e+00> : vector<1x128xf32>
    %617 = tpu.matmul %616, %378, %cst_129 {dimension_numbers = #tpu.dot_dimension_numbers<[1], [0], [0], [1], [0, 0, 1, 1], [], []>} : vector<1x32xbf16>, vector<32x128xbf16>, vector<1x128xf32> -> vector<1x128xf32>
    %618 = arith.addf %615, %617 : vector<1x128xf32>
    %619 = arith.addf %618, %384 : vector<1x128xf32>
    %620 = arith.negf %619 : vector<1x128xf32>
    %621 = math.exp %620 : vector<1x128xf32>
    %cst_130 = arith.constant 1.000000e+00 : f32
    %622 = vector.broadcast %cst_130 : f32 to vector<1x128xf32>
    %623 = arith.addf %622, %621 : vector<1x128xf32>
    %624 = arith.divf %622, %623 : vector<1x128xf32>
    %625 = math.tanh %619 : vector<1x128xf32>
    %626 = vector.extract_strided_slice %624 {offsets = [0, 0], sizes = [1, 32], strides = [1, 1]} : vector<1x128xf32> to vector<1x32xf32>
    %627 = vector.extract_strided_slice %624 {offsets = [0, 32], sizes = [1, 32], strides = [1, 1]} : vector<1x128xf32> to vector<1x32xf32>
    %628 = vector.extract_strided_slice %625 {offsets = [0, 64], sizes = [1, 32], strides = [1, 1]} : vector<1x128xf32> to vector<1x32xf32>
    %629 = vector.extract_strided_slice %624 {offsets = [0, 96], sizes = [1, 32], strides = [1, 1]} : vector<1x128xf32> to vector<1x32xf32>
    %630 = arith.mulf %627, %590 : vector<1x32xf32>
    %631 = arith.mulf %626, %628 : vector<1x32xf32>
    %632 = arith.addf %630, %631 : vector<1x32xf32>
    %633 = math.tanh %632 : vector<1x32xf32>
    %634 = arith.mulf %629, %633 : vector<1x32xf32>
    %635 = arith.truncf %634 : vector<1x32xf32> to vector<1x32xbf16>
    %cst_131 = arith.constant dense<0.000000e+00> : vector<1x128xf32>
    %636 = tpu.matmul %635, %380, %cst_131 {dimension_numbers = #tpu.dot_dimension_numbers<[1], [0], [0], [1], [0, 0, 1, 1], [], []>} : vector<1x32xbf16>, vector<32x128xbf16>, vector<1x128xf32> -> vector<1x128xf32>
    %637 = arith.truncf %613 : vector<1x32xf32> to vector<1x32xbf16>
    %cst_132 = arith.constant dense<0.000000e+00> : vector<1x128xf32>
    %638 = tpu.matmul %637, %376, %cst_132 {dimension_numbers = #tpu.dot_dimension_numbers<[1], [0], [0], [1], [0, 0, 1, 1], [], []>} : vector<1x32xbf16>, vector<32x128xbf16>, vector<1x128xf32> -> vector<1x128xf32>
    %639 = arith.addf %636, %638 : vector<1x128xf32>
    %640 = arith.addf %639, %385 : vector<1x128xf32>
    %641 = arith.negf %640 : vector<1x128xf32>
    %642 = math.exp %641 : vector<1x128xf32>
    %cst_133 = arith.constant 1.000000e+00 : f32
    %643 = vector.broadcast %cst_133 : f32 to vector<1x128xf32>
    %644 = arith.addf %643, %642 : vector<1x128xf32>
    %645 = arith.divf %643, %644 : vector<1x128xf32>
    %646 = math.tanh %640 : vector<1x128xf32>
    %647 = vector.extract_strided_slice %645 {offsets = [0, 0], sizes = [1, 32], strides = [1, 1]} : vector<1x128xf32> to vector<1x32xf32>
    %648 = vector.extract_strided_slice %645 {offsets = [0, 32], sizes = [1, 32], strides = [1, 1]} : vector<1x128xf32> to vector<1x32xf32>
    %649 = vector.extract_strided_slice %646 {offsets = [0, 64], sizes = [1, 32], strides = [1, 1]} : vector<1x128xf32> to vector<1x32xf32>
    %650 = vector.extract_strided_slice %645 {offsets = [0, 96], sizes = [1, 32], strides = [1, 1]} : vector<1x128xf32> to vector<1x32xf32>
    %651 = arith.mulf %648, %611 : vector<1x32xf32>
    %652 = arith.mulf %647, %649 : vector<1x32xf32>
    %653 = arith.addf %651, %652 : vector<1x32xf32>
    %654 = math.tanh %653 : vector<1x32xf32>
    %655 = arith.mulf %650, %654 : vector<1x32xf32>
    %656 = arith.truncf %655 : vector<1x32xf32> to vector<1x32xbf16>
    %cst_134 = arith.constant dense<0.000000e+00> : vector<1x128xf32>
    %657 = tpu.matmul %656, %379, %cst_134 {dimension_numbers = #tpu.dot_dimension_numbers<[1], [0], [0], [1], [0, 0, 1, 1], [], []>} : vector<1x32xbf16>, vector<32x128xbf16>, vector<1x128xf32> -> vector<1x128xf32>
    %658 = arith.truncf %634 : vector<1x32xf32> to vector<1x32xbf16>
    %cst_135 = arith.constant dense<0.000000e+00> : vector<1x128xf32>
    %659 = tpu.matmul %658, %378, %cst_135 {dimension_numbers = #tpu.dot_dimension_numbers<[1], [0], [0], [1], [0, 0, 1, 1], [], []>} : vector<1x32xbf16>, vector<32x128xbf16>, vector<1x128xf32> -> vector<1x128xf32>
    %660 = arith.addf %657, %659 : vector<1x128xf32>
    %661 = arith.addf %660, %384 : vector<1x128xf32>
    %662 = arith.negf %661 : vector<1x128xf32>
    %663 = math.exp %662 : vector<1x128xf32>
    %cst_136 = arith.constant 1.000000e+00 : f32
    %664 = vector.broadcast %cst_136 : f32 to vector<1x128xf32>
    %665 = arith.addf %664, %663 : vector<1x128xf32>
    %666 = arith.divf %664, %665 : vector<1x128xf32>
    %667 = math.tanh %661 : vector<1x128xf32>
    %668 = vector.extract_strided_slice %666 {offsets = [0, 0], sizes = [1, 32], strides = [1, 1]} : vector<1x128xf32> to vector<1x32xf32>
    %669 = vector.extract_strided_slice %666 {offsets = [0, 32], sizes = [1, 32], strides = [1, 1]} : vector<1x128xf32> to vector<1x32xf32>
    %670 = vector.extract_strided_slice %667 {offsets = [0, 64], sizes = [1, 32], strides = [1, 1]} : vector<1x128xf32> to vector<1x32xf32>
    %671 = vector.extract_strided_slice %666 {offsets = [0, 96], sizes = [1, 32], strides = [1, 1]} : vector<1x128xf32> to vector<1x32xf32>
    %672 = arith.mulf %669, %632 : vector<1x32xf32>
    %673 = arith.mulf %668, %670 : vector<1x32xf32>
    %674 = arith.addf %672, %673 : vector<1x32xf32>
    %675 = math.tanh %674 : vector<1x32xf32>
    %676 = arith.mulf %671, %675 : vector<1x32xf32>
    %677 = arith.truncf %676 : vector<1x32xf32> to vector<1x32xbf16>
    %cst_137 = arith.constant dense<0.000000e+00> : vector<1x128xf32>
    %678 = tpu.matmul %677, %380, %cst_137 {dimension_numbers = #tpu.dot_dimension_numbers<[1], [0], [0], [1], [0, 0, 1, 1], [], []>} : vector<1x32xbf16>, vector<32x128xbf16>, vector<1x128xf32> -> vector<1x128xf32>
    %679 = arith.truncf %655 : vector<1x32xf32> to vector<1x32xbf16>
    %cst_138 = arith.constant dense<0.000000e+00> : vector<1x128xf32>
    %680 = tpu.matmul %679, %376, %cst_138 {dimension_numbers = #tpu.dot_dimension_numbers<[1], [0], [0], [1], [0, 0, 1, 1], [], []>} : vector<1x32xbf16>, vector<32x128xbf16>, vector<1x128xf32> -> vector<1x128xf32>
    %681 = arith.addf %678, %680 : vector<1x128xf32>
    %682 = arith.addf %681, %385 : vector<1x128xf32>
    %683 = arith.negf %682 : vector<1x128xf32>
    %684 = math.exp %683 : vector<1x128xf32>
    %cst_139 = arith.constant 1.000000e+00 : f32
    %685 = vector.broadcast %cst_139 : f32 to vector<1x128xf32>
    %686 = arith.addf %685, %684 : vector<1x128xf32>
    %687 = arith.divf %685, %686 : vector<1x128xf32>
    %688 = math.tanh %682 : vector<1x128xf32>
    %689 = vector.extract_strided_slice %687 {offsets = [0, 0], sizes = [1, 32], strides = [1, 1]} : vector<1x128xf32> to vector<1x32xf32>
    %690 = vector.extract_strided_slice %687 {offsets = [0, 32], sizes = [1, 32], strides = [1, 1]} : vector<1x128xf32> to vector<1x32xf32>
    %691 = vector.extract_strided_slice %688 {offsets = [0, 64], sizes = [1, 32], strides = [1, 1]} : vector<1x128xf32> to vector<1x32xf32>
    %692 = vector.extract_strided_slice %687 {offsets = [0, 96], sizes = [1, 32], strides = [1, 1]} : vector<1x128xf32> to vector<1x32xf32>
    %693 = arith.mulf %690, %653 : vector<1x32xf32>
    %694 = arith.mulf %689, %691 : vector<1x32xf32>
    %695 = arith.addf %693, %694 : vector<1x32xf32>
    %696 = math.tanh %695 : vector<1x32xf32>
    %697 = arith.mulf %692, %696 : vector<1x32xf32>
    %698 = arith.truncf %697 : vector<1x32xf32> to vector<1x32xbf16>
    %cst_140 = arith.constant dense<0.000000e+00> : vector<1x128xf32>
    %699 = tpu.matmul %698, %379, %cst_140 {dimension_numbers = #tpu.dot_dimension_numbers<[1], [0], [0], [1], [0, 0, 1, 1], [], []>} : vector<1x32xbf16>, vector<32x128xbf16>, vector<1x128xf32> -> vector<1x128xf32>
    %700 = arith.truncf %676 : vector<1x32xf32> to vector<1x32xbf16>
    %cst_141 = arith.constant dense<0.000000e+00> : vector<1x128xf32>
    %701 = tpu.matmul %700, %378, %cst_141 {dimension_numbers = #tpu.dot_dimension_numbers<[1], [0], [0], [1], [0, 0, 1, 1], [], []>} : vector<1x32xbf16>, vector<32x128xbf16>, vector<1x128xf32> -> vector<1x128xf32>
    %702 = arith.addf %699, %701 : vector<1x128xf32>
    %703 = arith.addf %702, %384 : vector<1x128xf32>
    %704 = arith.negf %703 : vector<1x128xf32>
    %705 = math.exp %704 : vector<1x128xf32>
    %cst_142 = arith.constant 1.000000e+00 : f32
    %706 = vector.broadcast %cst_142 : f32 to vector<1x128xf32>
    %707 = arith.addf %706, %705 : vector<1x128xf32>
    %708 = arith.divf %706, %707 : vector<1x128xf32>
    %709 = math.tanh %703 : vector<1x128xf32>
    %710 = vector.extract_strided_slice %708 {offsets = [0, 0], sizes = [1, 32], strides = [1, 1]} : vector<1x128xf32> to vector<1x32xf32>
    %711 = vector.extract_strided_slice %708 {offsets = [0, 32], sizes = [1, 32], strides = [1, 1]} : vector<1x128xf32> to vector<1x32xf32>
    %712 = vector.extract_strided_slice %709 {offsets = [0, 64], sizes = [1, 32], strides = [1, 1]} : vector<1x128xf32> to vector<1x32xf32>
    %713 = vector.extract_strided_slice %708 {offsets = [0, 96], sizes = [1, 32], strides = [1, 1]} : vector<1x128xf32> to vector<1x32xf32>
    %714 = arith.mulf %711, %674 : vector<1x32xf32>
    %715 = arith.mulf %710, %712 : vector<1x32xf32>
    %716 = arith.addf %714, %715 : vector<1x32xf32>
    %717 = math.tanh %716 : vector<1x32xf32>
    %718 = arith.mulf %713, %717 : vector<1x32xf32>
    %719 = tpu.concatenate %718, %676, %634, %592, %550, %508, %466, %424 in 0 : vector<1x32xf32>, vector<1x32xf32>, vector<1x32xf32>, vector<1x32xf32>, vector<1x32xf32>, vector<1x32xf32>, vector<1x32xf32>, vector<1x32xf32> -> vector<8x32xf32>
    %c0_143 = arith.constant 0 : index
    %c0_144 = arith.constant 0 : index
    %720 = vector.load %arg16[%c0_143, %c0_144] : memref<8x32xf32, #tpu.memory_space<vmem>>, vector<8x32xf32>
    tpu.vector_store %arg16[%c0_143, %c0_144], %719 {strides = array<i32>} : memref<8x32xf32, #tpu.memory_space<vmem>>, vector<8x32xf32>,
    return
  }
}

</mosaic_0001>

<llo_original>
// kernel: _vae_forward.1
$region0: #{_vae_forward.1}
  #allocation0 [shape = 'u32[]', space=smem, size = 0x4, offset = 0x4, fixed_abs, tag = 'smem constant byte address 0x4 - core index']
  #allocation1 [shape = 'u32[144,128]{1,0:T(1,128)}', space=vmem, size = 0x12000, scoped, tag = 'internal scratch']
  %s0 = inlined_call_operand.hbm [shape: f32[8,32], index: 0, kind: input, shape index: {}]
  %s1 = inlined_call_operand.vmem [shape: bf16[2,32,128], index: 1, kind: input, shape index: {}]
  %s2 = inlined_call_operand.hbm [shape: bf16[2,32,128], index: 2, kind: input, shape index: {}]
  %s3 = inlined_call_operand.hbm [shape: f32[2,1,128], index: 3, kind: input, shape index: {}]
  %s4 = inlined_call_operand.hbm [shape: bf16[32,32], index: 4, kind: input, shape index: {}]
  %s5 = inlined_call_operand.vmem [shape: f32[1,32], index: 5, kind: input, shape index: {}]
  %s6 = inlined_call_operand.vmem [shape: bf16[32,32], index: 6, kind: input, shape index: {}]
  %s7 = inlined_call_operand.hbm [shape: f32[1,32], index: 7, kind: input, shape index: {}]
  %s8 = inlined_call_operand.vmem [shape: f32[2,32], index: 8, kind: input, shape index: {}]
  %s9 = inlined_call_operand.hbm [shape: bf16[2,32,128], index: 9, kind: input, shape index: {}]
  %s10 = inlined_call_operand.hbm [shape: bf16[32,128], index: 10, kind: input, shape index: {}]
  %s11 = inlined_call_operand.hbm [shape: bf16[32,128], index: 11, kind: input, shape index: {}]
  %s12 = inlined_call_operand.hbm [shape: f32[2,1,128], index: 12, kind: input, shape index: {}]
  %s13 = inlined_call_operand.hbm [shape: f32[1,128], index: 13, kind: input, shape index: {}]
  %s14 = inlined_call_operand.hbm [shape: f32[2,32], index: 14, kind: output, shape index: {0}]
  %s15 = inlined_call_operand.hbm [shape: f32[2,32], index: 15, kind: output, shape index: {1}]
  %s16 = inlined_call_operand.hbm [shape: f32[8,32], index: 16, kind: output, shape index: {2}]
  %17 = xla_tuple %s14, %s15, %s16
  %s18 = sld [smem:[#allocation0]]
  $region122: #{_vae_forward.1} parent=0
    _
  %s20 = ssub.s32 1, %s18
  %s21 = scalar_select 0, %s20, %s18
  $region1: #{_vae_forward.1} parent=0
    #allocation2 [shape = 'u8[4096]{0}', space=vmem, size = 0x1000, scoped, tag = 'input window, operand 0, single buffered']
    #allocation3 [shape = 's32[1]{0}', space=sflag, size = 0x4, scoped, tag = 'scoped memory for _vae_forward.1']
    #allocation4 [shape = 's32[1]{0}', space=sflag, size = 0x4, scoped, tag = 'scoped memory for _vae_forward.1']
    #allocation5 [shape = 'u8[16384]{0}', space=vmem, size = 0x4000, scoped, tag = 'input window, operand 2, single buffered']
    #allocation6 [shape = 's32[1]{0}', space=sflag, size = 0x4, scoped, tag = 'scoped memory for _vae_forward.1']
    #allocation7 [shape = 'u8[1024]{0}', space=vmem, size = 0x400, scoped, tag = 'input window, operand 3, single buffered']
    #allocation8 [shape = 'u8[8192]{0}', space=vmem, size = 0x2000, scoped, tag = 'input window, operand 4, single buffered']
    #allocation9 [shape = 's32[1]{0}', space=sflag, size = 0x4, scoped, tag = 'scoped memory for _vae_forward.1']
    #allocation10 [shape = 'u8[512]{0}', space=vmem, size = 0x400, scoped, tag = 'input window, operand 7, single buffered']
    #allocation11 [shape = 'u8[16384]{0}', space=vmem, size = 0x4000, scoped, tag = 'input window, operand 9, single buffered']
    #allocation12 [shape = 's32[1]{0}', space=sflag, size = 0x4, scoped, tag = 'scoped memory for _vae_forward.1']
    #allocation13 [shape = 'u8[8192]{0}', space=vmem, size = 0x2000, scoped, tag = 'input window, operand 10, single buffered']
    #allocation14 [shape = 'u8[8192]{0}', space=vmem, size = 0x2000, scoped, tag = 'input window, operand 11, single buffered']
    #allocation15 [shape = 's32[1]{0}', space=sflag, size = 0x4, scoped, tag = 'scoped memory for _vae_forward.1']
    #allocation16 [shape = 'u8[1024]{0}', space=vmem, size = 0x400, scoped, tag = 'input window, operand 12, single buffered']
    #allocation17 [shape = 'u8[512]{0}', space=vmem, size = 0x400, scoped, tag = 'input window, operand 13, single buffered']
    #allocation18 [shape = 's32[1]{0}', space=sflag, size = 0x4, scoped, tag = 'scoped memory for _vae_forward.1']
    #allocation19 [shape = 'u8[1024]{0}', space=vmem, size = 0x400, scoped, tag = 'output window, operand 0, single buffered']
    #allocation20 [shape = 'u8[1024]{0}', space=vmem, size = 0x400, scoped, tag = 'output window, operand 1, single buffered']
    #allocation21 [shape = 's32[1]{0}', space=sflag, size = 0x4, scoped, tag = 'scoped memory for _vae_forward.1']
    #allocation22 [shape = 'u8[4096]{0}', space=vmem, size = 0x1000, scoped, tag = 'output window, operand 2, single buffered']
    %22 = vsyncpa [#allocation3], 0
    %23 = vsyncpa [#allocation6], 0
    %24 = vsyncpa [#allocation9], 0
    %25 = vsyncpa [#allocation12], 0
    %26 = vsyncpa [#allocation15], 0
    %27 = vsyncpa [#allocation18], 0
    %28 = vsyncpa [#allocation4], 0
    %29 = vsyncpa [#allocation21], 0
    // Predicated region
    $region2: #{_vae_forward.1} parent=1 // pred_check
      _
    $region3: #{_vae_forward.1} parent=1 // pred_check_branch
      %31 = sbr.rel (0) target = $region5
    $region4: #{_vae_forward.1} parent=1 // pred_region
      %s33 = ssub.s32 128, 128
      %34 = vsyncadd [#allocation3], %s33
      %s36 = sshll.u32 [#allocation2], 4
      %s37 = int_to_ptr.vmem [resolvable:$true] %s36
      %39 = dma.hbm_to_vmem [thread:$0]  %s0, 128, %s37, [#allocation3]
    $region5: #{_vae_forward.1} parent=1 // pred_fallthru
      _
    // Predicated region
    $region6: #{_vae_forward.1} parent=1 // pred_check
      _
    $region7: #{_vae_forward.1} parent=1 // pred_check_branch
      %41 = sbr.rel (0) target = $region9
    $region8: #{_vae_forward.1} parent=1 // pred_region
      _
    $region9: #{_vae_forward.1} parent=1 // pred_fallthru
      _
    // Predicated region
    $region10: #{_vae_forward.1} parent=1 // pred_check
      _
    $region11: #{_vae_forward.1} parent=1 // pred_check_branch
      %43 = sbr.rel (0) target = $region13
    $region12: #{_vae_forward.1} parent=1 // pred_region
      %s45 = ssub.s32 512, 512
      %46 = vsyncadd [#allocation6], %s45
      %s47 = sshll.u32 [#allocation5], 4
      %s48 = int_to_ptr.vmem [resolvable:$true] %s47
      %53 = dma.hbm_to_vmem [thread:$0]  %s2, 512, %s48, [#allocation6], 64, 64, 4
    $region13: #{_vae_forward.1} parent=1 // pred_fallthru
      _
    // Predicated region
    $region14: #{_vae_forward.1} parent=1 // pred_check
      _
    $region15: #{_vae_forward.1} parent=1 // pred_check_branch
      %55 = sbr.rel (0) target = $region17
    $region16: #{_vae_forward.1} parent=1 // pred_region
      %s57 = ssub.s32 32, 32
      %58 = vsyncadd [#allocation6], %s57
      %s59 = sshll.u32 [#allocation7], 4
      %s60 = int_to_ptr.vmem [resolvable:$true] %s59
      %65 = dma.hbm_to_vmem [thread:$0]  %s3, 32, %s60, [#allocation6], 16, 16, 1
    $region17: #{_vae_forward.1} parent=1 // pred_fallthru
      _
    // Predicated region
    $region18: #{_vae_forward.1} parent=1 // pred_check
      _
    $region19: #{_vae_forward.1} parent=1 // pred_check_branch
      %67 = sbr.rel (0) target = $region21
    $region20: #{_vae_forward.1} parent=1 // pred_region
      %s69 = ssub.s32 256, 256
      %70 = vsyncadd [#allocation9], %s69
      %s71 = sshll.u32 [#allocation8], 4
      %s72 = int_to_ptr.vmem [resolvable:$true] %s71
      %77 = dma.hbm_to_vmem [thread:$0]  %s4, 256, %s72, [#allocation9], 64, 64, 4
    $region21: #{_vae_forward.1} parent=1 // pred_fallthru
      _
    // Predicated region
    $region22: #{_vae_forward.1} parent=1 // pred_check
      _
    $region23: #{_vae_forward.1} parent=1 // pred_check_branch
      %79 = sbr.rel (0) target = $region25
    $region24: #{_vae_forward.1} parent=1 // pred_region
      _
    $region25: #{_vae_forward.1} parent=1 // pred_fallthru
      _
    // Predicated region
    $region26: #{_vae_forward.1} parent=1 // pred_check
      _
    $region27: #{_vae_forward.1} parent=1 // pred_check_branch
      %81 = sbr.rel (0) target = $region29
    $region28: #{_vae_forward.1} parent=1 // pred_region
      _
    $region29: #{_vae_forward.1} parent=1 // pred_fallthru
      _
    // Predicated region
    $region30: #{_vae_forward.1} parent=1 // pred_check
      _
    $region31: #{_vae_forward.1} parent=1 // pred_check_branch
      %83 = sbr.rel (0) target = $region33
    $region32: #{_vae_forward.1} parent=1 // pred_region
      %s85 = ssub.s32 16, 16
      %86 = vsyncadd [#allocation9], %s85
      %s88 = sshll.u32 [#allocation10], 4
      %s89 = int_to_ptr.vmem [resolvable:$true] %s88
      %91 = dma.hbm_to_vmem [thread:$0]  %s7, 16, %s89, [#allocation9]
    $region33: #{_vae_forward.1} parent=1 // pred_fallthru
      _
    // Predicated region
    $region34: #{_vae_forward.1} parent=1 // pred_check
      _
    $region35: #{_vae_forward.1} parent=1 // pred_check_branch
      %93 = sbr.rel (0) target = $region37
    $region36: #{_vae_forward.1} parent=1 // pred_region
      _
    $region37: #{_vae_forward.1} parent=1 // pred_fallthru
      _
    // Predicated region
    $region38: #{_vae_forward.1} parent=1 // pred_check
      _
    $region39: #{_vae_forward.1} parent=1 // pred_check_branch
      %95 = sbr.rel (0) target = $region41
    $region40: #{_vae_forward.1} parent=1 // pred_region
      %s97 = ssub.s32 512, 512
      %98 = vsyncadd [#allocation12], %s97
      %s99 = sshll.u32 [#allocation11], 4
      %s100 = int_to_ptr.vmem [resolvable:$true] %s99
      %105 = dma.hbm_to_vmem [thread:$0]  %s9, 512, %s100, [#allocation12], 64, 64, 4
    $region41: #{_vae_forward.1} parent=1 // pred_fallthru
      _
    // Predicated region
    $region42: #{_vae_forward.1} parent=1 // pred_check
      _
    $region43: #{_vae_forward.1} parent=1 // pred_check_branch
      %107 = sbr.rel (0) target = $region45
    $region44: #{_vae_forward.1} parent=1 // pred_region
      %s109 = ssub.s32 256, 256
      %110 = vsyncadd [#allocation12], %s109
      %s111 = sshll.u32 [#allocation13], 4
      %s112 = int_to_ptr.vmem [resolvable:$true] %s111
      %117 = dma.hbm_to_vmem [thread:$0]  %s10, 256, %s112, [#allocation12], 64, 64, 4
    $region45: #{_vae_forward.1} parent=1 // pred_fallthru
      _
    // Predicated region
    $region46: #{_vae_forward.1} parent=1 // pred_check
      _
    $region47: #{_vae_forward.1} parent=1 // pred_check_branch
      %119 = sbr.rel (0) target = $region49
    $region48: #{_vae_forward.1} parent=1 // pred_region
      %s121 = ssub.s32 256, 256
      %122 = vsyncadd [#allocation15], %s121
      %s123 = sshll.u32 [#allocation14], 4
      %s124 = int_to_ptr.vmem [resolvable:$true] %s123
      %129 = dma.hbm_to_vmem [thread:$0]  %s11, 256, %s124, [#allocation15], 64, 64, 4
    $region49: #{_vae_forward.1} parent=1 // pred_fallthru
      _
    // Predicated region
    $region50: #{_vae_forward.1} parent=1 // pred_check
      _
    $region51: #{_vae_forward.1} parent=1 // pred_check_branch
      %131 = sbr.rel (0) target = $region53
    $region52: #{_vae_forward.1} parent=1 // pred_region
      %s133 = ssub.s32 32, 32
      %134 = vsyncadd [#allocation15], %s133
      %s135 = sshll.u32 [#allocation16], 4
      %s136 = int_to_ptr.vmem [resolvable:$true] %s135
      %141 = dma.hbm_to_vmem [thread:$0]  %s12, 32, %s136, [#allocation15], 16, 16, 1
    $region53: #{_vae_forward.1} parent=1 // pred_fallthru
      _
    // Predicated region
    $region54: #{_vae_forward.1} parent=1 // pred_check
      _
    $region55: #{_vae_forward.1} parent=1 // pred_check_branch
      %143 = sbr.rel (0) target = $region57
    $region56: #{_vae_forward.1} parent=1 // pred_region
      %s145 = ssub.s32 16, 16
      %146 = vsyncadd [#allocation18], %s145
      %s148 = sshll.u32 [#allocation17], 4
      %s149 = int_to_ptr.vmem [resolvable:$true] %s148
      %151 = dma.hbm_to_vmem [thread:$0]  %s13, 16, %s149, [#allocation18]
    $region57: #{_vae_forward.1} parent=1 // pred_fallthru
      _
    // Predicated region
    $region58: #{_vae_forward.1} parent=1 // pred_check
      _
    $region59: #{_vae_forward.1} parent=1 // pred_check_branch
      %153 = sbr.rel (0) target = $region61
    $region60: #{_vae_forward.1} parent=1 // pred_region
      %154 = dma.done [#allocation3], 128
    $region61: #{_vae_forward.1} parent=1 // pred_fallthru
      _
    // Predicated region
    $region62: #{_vae_forward.1} parent=1 // pred_check
      _
    $region63: #{_vae_forward.1} parent=1 // pred_check_branch
      %156 = sbr.rel (0) target = $region65
    $region64: #{_vae_forward.1} parent=1 // pred_region
      %157 = dma.done [#allocation6], 512
    $region65: #{_vae_forward.1} parent=1 // pred_fallthru
      _
    // Predicated region
    $region66: #{_vae_forward.1} parent=1 // pred_check
      _
    $region67: #{_vae_forward.1} parent=1 // pred_check_branch
      %159 = sbr.rel (0) target = $region69
    $region68: #{_vae_forward.1} parent=1 // pred_region
      %160 = dma.done [#allocation6], 32
    $region69: #{_vae_forward.1} parent=1 // pred_fallthru
      _
    // Predicated region
    $region70: #{_vae_forward.1} parent=1 // pred_check
      _
    $region71: #{_vae_forward.1} parent=1 // pred_check_branch
      %162 = sbr.rel (0) target = $region73
    $region72: #{_vae_forward.1} parent=1 // pred_region
      %163 = dma.done [#allocation9], 256
    $region73: #{_vae_forward.1} parent=1 // pred_fallthru
      _
    // Predicated region
    $region74: #{_vae_forward.1} parent=1 // pred_check
      _
    $region75: #{_vae_forward.1} parent=1 // pred_check_branch
      %165 = sbr.rel (0) target = $region77
    $region76: #{_vae_forward.1} parent=1 // pred_region
      %166 = dma.done [#allocation9], 16
    $region77: #{_vae_forward.1} parent=1 // pred_fallthru
      _
    // Predicated region
    $region78: #{_vae_forward.1} parent=1 // pred_check
      _
    $region79: #{_vae_forward.1} parent=1 // pred_check_branch
      %168 = sbr.rel (0) target = $region81
    $region80: #{_vae_forward.1} parent=1 // pred_region
      %169 = dma.done [#allocation12], 512
    $region81: #{_vae_forward.1} parent=1 // pred_fallthru
      _
    // Predicated region
    $region82: #{_vae_forward.1} parent=1 // pred_check
      _
    $region83: #{_vae_forward.1} parent=1 // pred_check_branch
      %171 = sbr.rel (0) target = $region85
    $region84: #{_vae_forward.1} parent=1 // pred_region
      %172 = dma.done [#allocation12], 256
    $region85: #{_vae_forward.1} parent=1 // pred_fallthru
      _
    // Predicated region
    $region86: #{_vae_forward.1} parent=1 // pred_check
      _
    $region87: #{_vae_forward.1} parent=1 // pred_check_branch
      %174 = sbr.rel (0) target = $region89
    $region88: #{_vae_forward.1} parent=1 // pred_region
      %175 = dma.done [#allocation15], 256
    $region89: #{_vae_forward.1} parent=1 // pred_fallthru
      _
    // Predicated region
    $region90: #{_vae_forward.1} parent=1 // pred_check
      _
    $region91: #{_vae_forward.1} parent=1 // pred_check_branch
      %177 = sbr.rel (0) target = $region93
    $region92: #{_vae_forward.1} parent=1 // pred_region
      %178 = dma.done [#allocation15], 32
    $region93: #{_vae_forward.1} parent=1 // pred_fallthru
      _
    // Predicated region
    $region94: #{_vae_forward.1} parent=1 // pred_check
      _
    $region95: #{_vae_forward.1} parent=1 // pred_check_branch
      %180 = sbr.rel (0) target = $region97
    $region96: #{_vae_forward.1} parent=1 // pred_region
      %181 = dma.done [#allocation18], 16
    $region97: #{_vae_forward.1} parent=1 // pred_fallthru
      _
    %v183 = vld [vmem:[#allocation2] sm:$0xff]
    %v184 = vpack.c.bf16 %v183, %v183
    %v185 = vld [vmem:[%s1] sm:$0xf]
    %v186 = vld [vmem:[%s1 + $0x4] sm:$0xf]
    %v187 = vld [vmem:[%s1 + $0x8] sm:$0xf]
    %v188 = vld [vmem:[%s1 + $0xc] sm:$0xf]
    %v189 = vld [vmem:[#allocation7] sm:$0x1]
    %v191 = vlaneseq
    %v192 = vshrl.u32 %v191, 7
    %v193 = vsub.s32 0, %v192
    %v194 = vrot.slane %v189, %v193
    %v200 = vunpack.c.l.b16 %v185
    %v201 = vunpack.c.l.b16 %v186
    %v202 = vunpack.c.l.b16 %v187
    %v203 = vunpack.c.l.b16 %v188
    %v204 = vpack.c.b16 %v201, %v200
    %v205 = vpack.c.b16 %v203, %v202
    %vm208 = vcmask 261120
    %v210 = vsel %vm208, %v184, 0
    %212 = vmatprep.subr.bf16.mxu0 0
    %213 = vmatpush1.bf16.msra.mxu0 %v204
    %214 = vmatprep.subr.bf16.mxu0 0
    %215 = vmatpush1.bf16.msra.mxu0 %v205
    %216 = vmatprep.subr.bf16.mxu0 0
    %217 = vmatpush1.bf16.msra.mxu0 0
    %218 = vmatprep.subr.bf16.mxu0 0
    %219 = vmatpush1.bf16.msra.mxu0 0
    %220 = vmatprep.subr.bf16.mxu0 0
    %221 = vmatpush1.bf16.msra.mxu0 0
    %222 = vmatprep.subr.bf16.mxu0 0
    %223 = vmatpush1.bf16.msra.mxu0 0
    %224 = vmatprep.subr.bf16.mxu0 0
    %225 = vmatpush1.bf16.msra.mxu0 0
    %226 = vmatprep.subr.bf16.mxu0 0
    %227 = vmatpush1.bf16.msra.mxu0 0
    %228 = vmatprep.subr.bf16.mxu0 0
    %229 = vmatpush1.bf16.msra.mxu0 0
    %230 = vmatprep.subr.bf16.mxu0 0
    %231 = vmatpush1.bf16.msra.mxu0 0
    %232 = vmatprep.subr.bf16.mxu0 0
    %233 = vmatpush1.bf16.msra.mxu0 0
    %234 = vmatprep.subr.bf16.mxu0 0
    %235 = vmatpush1.bf16.msra.mxu0 0
    %236 = vmatprep.subr.bf16.mxu0 0
    %237 = vmatpush1.bf16.msra.mxu0 0
    %238 = vmatprep.subr.bf16.mxu0 0
    %239 = vmatpush1.bf16.msra.mxu0 0
    %240 = vmatprep.subr.bf16.mxu0 0
    %241 = vmatpush1.bf16.msra.mxu0 0
    %242 = vmatprep.subr.bf16.mxu0 0
    %243 = vmatpush1.bf16.msra.mxu0 0
    %244 = vmatprep.mubr.bf16.mxu0 0
    %245 = vmatmul.mubr.bf16.gmra.mrb[0].mxu0 %v210
    %v246 = vpop.f32.mrb[0].mxu0
    %v247 = vadd.f32 %v194, %v246
    %v248 = vpop.f32.mrb[0].mxu0
    %v249 = vpop.f32.mrb[0].mxu0
    %v250 = vpop.f32.mrb[0].mxu0
    %251 = vdwg.mxu0
    %v252 = vld [vmem:[#allocation5] sm:$0xf]
    %v253 = vld [vmem:[#allocation5 + $0x4] sm:$0xf]
    %v254 = vld [vmem:[#allocation5 + $0x8] sm:$0xf]
    %v255 = vld [vmem:[#allocation5 + $0xc] sm:$0xf]
    %s256 = scalar_lea.vmem %s1, 16
    %v257 = vld [vmem:[%s256] sm:$0xf]
    %v258 = vld [vmem:[%s256 + $0x4] sm:$0xf]
    %v259 = vld [vmem:[%s256 + $0x8] sm:$0xf]
    %v260 = vld [vmem:[%s256 + $0xc] sm:$0xf]
    %s261 = scalar_lea.vmem [#allocation5], 16
    %v262 = vld [vmem:[%s261] sm:$0xf]
    %v263 = vld [vmem:[%s261 + $0x4] sm:$0xf]
    %v264 = vld [vmem:[%s261 + $0x8] sm:$0xf]
    %v265 = vld [vmem:[%s261 + $0xc] sm:$0xf]
    %s266 = scalar_lea.vmem [#allocation7], 1
    %v267 = vld [vmem:[%s266] sm:$0x1]
    %v272 = vunpack.c.l.b16 %v252
    %v273 = vunpack.c.l.b16 %v253
    %v274 = vunpack.c.l.b16 %v254
    %v275 = vunpack.c.l.b16 %v255
    %v276 = vpack.c.b16 %v273, %v272
    %v277 = vpack.c.b16 %v275, %v274
    %v281 = vsel %vm208, 0, 0
    %283 = vmatprep.subr.bf16.mxu0 0
    %284 = vmatpush1.bf16.msra.mxu0 %v276
    %285 = vmatprep.subr.bf16.mxu0 0
    %286 = vmatpush1.bf16.msra.mxu0 %v277
    %287 = vmatprep.subr.bf16.mxu0 0
    %288 = vmatpush1.bf16.msra.mxu0 0
    %289 = vmatprep.subr.bf16.mxu0 0
    %290 = vmatpush1.bf16.msra.mxu0 0
    %291 = vmatprep.subr.bf16.mxu0 0
    %292 = vmatpush1.bf16.msra.mxu0 0
    %293 = vmatprep.subr.bf16.mxu0 0
    %294 = vmatpush1.bf16.msra.mxu0 0
    %295 = vmatprep.subr.bf16.mxu0 0
    %296 = vmatpush1.bf16.msra.mxu0 0
    %297 = vmatprep.subr.bf16.mxu0 0
    %298 = vmatpush1.bf16.msra.mxu0 0
    %299 = vmatprep.subr.bf16.mxu0 0
    %300 = vmatpush1.bf16.msra.mxu0 0
    %301 = vmatprep.subr.bf16.mxu0 0
    %302 = vmatpush1.bf16.msra.mxu0 0
    %303 = vmatprep.subr.bf16.mxu0 0
    %304 = vmatpush1.bf16.msra.mxu0 0
    %305 = vmatprep.subr.bf16.mxu0 0
    %306 = vmatpush1.bf16.msra.mxu0 0
    %307 = vmatprep.subr.bf16.mxu0 0
    %308 = vmatpush1.bf16.msra.mxu0 0
    %309 = vmatprep.subr.bf16.mxu0 0
    %310 = vmatpush1.bf16.msra.mxu0 0
    %311 = vmatprep.subr.bf16.mxu0 0
    %312 = vmatpush1.bf16.msra.mxu0 0
    %313 = vmatprep.subr.bf16.mxu0 0
    %314 = vmatpush1.bf16.msra.mxu0 0
    %315 = vmatprep.mubr.bf16.mxu0 0
    %316 = vmatmul.mubr.bf16.gmra.mrb[0].mxu0 %v281
    %v317 = vpop.f32.mrb[0].mxu0
    %v318 = vadd.f32 0.0, %v317
    %v319 = vpop.f32.mrb[0].mxu0
    %v320 = vpop.f32.mrb[0].mxu0
    %v321 = vpop.f32.mrb[0].mxu0
    %322 = vdwg.mxu0
    %v323 = vadd.f32 %v247, %v318
    %v324 = vxor.u32 %v323, 2147483648
    %v325 = vmul.f32 %v324, 1.442695
    %v326 = vpow.pop %v325
    %v327 = vadd.f32 %v326, 1.0
    %v328 = vrcp.pop %v327
    %v329 = vmul.f32 1.0, %v328
    %v330 = vtanh.pop %v323
    %v331 = vmul.f32 %v329, 0.0
    %333 = vrot.lane.b32.xlu0 %v330, 64
    %v334 = vpop.permute.xlu0 %333
    %v336 = vmul.f32 %v329, %v334
    %338 = vrot.lane.b32.xlu0 %v336, 32
    %v339 = vpop.permute.xlu0 %338
    %v341 = vadd.f32 %v331, %v339
    %v342 = vtanh.pop %v341
    %344 = vrot.lane.b32.xlu0 %v342, 64
    %v345 = vpop.permute.xlu0 %344
    %v347 = vmul.f32 %v329, %v345
    %v348 = vpack.c.bf16 %v347, %v347
    %v353 = vunpack.c.l.b16 %v262
    %v354 = vunpack.c.l.b16 %v263
    %v355 = vunpack.c.l.b16 %v264
    %v356 = vunpack.c.l.b16 %v265
    %v357 = vpack.c.b16 %v354, %v353
    %v358 = vpack.c.b16 %v356, %v355
    %361 = vmatprep.subr.bf16.mxu0 0
    %362 = vmatpush1.bf16.msra.mxu0 %v357
    %363 = vmatprep.subr.bf16.mxu0 0
    %364 = vmatpush1.bf16.msra.mxu0 %v358
    %365 = vmatprep.subr.bf16.mxu0 0
    %366 = vmatpush1.bf16.msra.mxu0 0
    %367 = vmatprep.subr.bf16.mxu0 0
    %368 = vmatpush1.bf16.msra.mxu0 0
    %369 = vmatprep.subr.bf16.mxu0 0
    %370 = vmatpush1.bf16.msra.mxu0 0
    %371 = vmatprep.subr.bf16.mxu0 0
    %372 = vmatpush1.bf16.msra.mxu0 0
    %373 = vmatprep.subr.bf16.mxu0 0
    %374 = vmatpush1.bf16.msra.mxu0 0
    %375 = vmatprep.subr.bf16.mxu0 0
    %376 = vmatpush1.bf16.msra.mxu0 0
    %377 = vmatprep.subr.bf16.mxu0 0
    %378 = vmatpush1.bf16.msra.mxu0 0
    %379 = vmatprep.subr.bf16.mxu0 0
    %380 = vmatpush1.bf16.msra.mxu0 0
    %381 = vmatprep.subr.bf16.mxu0 0
    %382 = vmatpush1.bf16.msra.mxu0 0
    %383 = vmatprep.subr.bf16.mxu0 0
    %384 = vmatpush1.bf16.msra.mxu0 0
    %385 = vmatprep.subr.bf16.mxu0 0
    %386 = vmatpush1.bf16.msra.mxu0 0
    %387 = vmatprep.subr.bf16.mxu0 0
    %388 = vmatpush1.bf16.msra.mxu0 0
    %389 = vmatprep.subr.bf16.mxu0 0
    %390 = vmatpush1.bf16.msra.mxu0 0
    %391 = vmatprep.subr.bf16.mxu0 0
    %392 = vmatpush1.bf16.msra.mxu0 0
    %393 = vmatprep.mubr.bf16.mxu0 0
    %394 = vmatmul.mubr.bf16.gmra.mrb[0].mxu0 %v281
    %v395 = vpop.f32.mrb[0].mxu0
    %v396 = vadd.f32 0.0, %v395
    %v397 = vpop.f32.mrb[0].mxu0
    %v398 = vpop.f32.mrb[0].mxu0
    %v399 = vpop.f32.mrb[0].mxu0
    %400 = vdwg.mxu0
    %402 = vrot.lane.b32.xlu0 %v348, 32
    %v403 = vpop.permute.xlu0 %402
    %v408 = vunpack.c.l.b16 %v257
    %v409 = vunpack.c.l.b16 %v258
    %v410 = vunpack.c.l.b16 %v259
    %v411 = vunpack.c.l.b16 %v260
    %v412 = vpack.c.b16 %v409, %v408
    %v413 = vpack.c.b16 %v411, %v410
    %v417 = vsel %vm208, %v403, 0
    %419 = vmatprep.subr.bf16.mxu0 0
    %420 = vmatpush1.bf16.msra.mxu0 %v412
    %421 = vmatprep.subr.bf16.mxu0 0
    %422 = vmatpush1.bf16.msra.mxu0 %v413
    %423 = vmatprep.subr.bf16.mxu0 0
    %424 = vmatpush1.bf16.msra.mxu0 0
    %425 = vmatprep.subr.bf16.mxu0 0
    %426 = vmatpush1.bf16.msra.mxu0 0
    %427 = vmatprep.subr.bf16.mxu0 0
    %428 = vmatpush1.bf16.msra.mxu0 0
    %429 = vmatprep.subr.bf16.mxu0 0
    %430 = vmatpush1.bf16.msra.mxu0 0
    %431 = vmatprep.subr.bf16.mxu0 0
    %432 = vmatpush1.bf16.msra.mxu0 0
    %433 = vmatprep.subr.bf16.mxu0 0
    %434 = vmatpush1.bf16.msra.mxu0 0
    %435 = vmatprep.subr.bf16.mxu0 0
    %436 = vmatpush1.bf16.msra.mxu0 0
    %437 = vmatprep.subr.bf16.mxu0 0
    %438 = vmatpush1.bf16.msra.mxu0 0
    %439 = vmatprep.subr.bf16.mxu0 0
    %440 = vmatpush1.bf16.msra.mxu0 0
    %441 = vmatprep.subr.bf16.mxu0 0
    %442 = vmatpush1.bf16.msra.mxu0 0
    %443 = vmatprep.subr.bf16.mxu0 0
    %444 = vmatpush1.bf16.msra.mxu0 0
    %445 = vmatprep.subr.bf16.mxu0 0
    %446 = vmatpush1.bf16.msra.mxu0 0
    %447 = vmatprep.subr.bf16.mxu0 0
    %448 = vmatpush1.bf16.msra.mxu0 0
    %449 = vmatprep.subr.bf16.mxu0 0
    %450 = vmatpush1.bf16.msra.mxu0 0
    %451 = vmatprep.mubr.bf16.mxu0 0
    %452 = vmatmul.mubr.bf16.gmra.mrb[0].mxu0 %v417
    %v453 = vpop.f32.mrb[0].mxu0
    %v454 = vadd.f32 %v396, %v453
    %v455 = vpop.f32.mrb[0].mxu0
    %v456 = vpop.f32.mrb[0].mxu0
    %v457 = vpop.f32.mrb[0].mxu0
    %458 = vdwg.mxu0
    %v459 = vadd.f32 %v454, %v267
    %v460 = vxor.u32 %v459, 2147483648
    %v461 = vmul.f32 %v460, 1.442695
    %v462 = vpow.pop %v461
    %v463 = vadd.f32 %v462, 1.0
    %v464 = vrcp.pop %v463
    %v465 = vmul.f32 1.0, %v464
    %v466 = vtanh.pop %v459
    %v467 = vmul.f32 %v465, 0.0
    %469 = vrot.lane.b32.xlu0 %v466, 64
    %v470 = vpop.permute.xlu0 %469
    %v472 = vmul.f32 %v465, %v470
    %474 = vrot.lane.b32.xlu0 %v472, 32
    %v475 = vpop.permute.xlu0 %474
    %v477 = vadd.f32 %v467, %v475
    %v478 = vtanh.pop %v477
    %480 = vrot.lane.b32.xlu0 %v478, 64
    %v481 = vpop.permute.xlu0 %480
    %v483 = vmul.f32 %v465, %v481
    %484 = vmatprep.subr.bf16.mxu0 0
    %485 = vmatpush1.bf16.msra.mxu0 %v276
    %486 = vmatprep.subr.bf16.mxu0 0
    %487 = vmatpush1.bf16.msra.mxu0 %v277
    %488 = vmatprep.subr.bf16.mxu0 0
    %489 = vmatpush1.bf16.msra.mxu0 0
    %490 = vmatprep.subr.bf16.mxu0 0
    %491 = vmatpush1.bf16.msra.mxu0 0
    %492 = vmatprep.subr.bf16.mxu0 0
    %493 = vmatpush1.bf16.msra.mxu0 0
    %494 = vmatprep.subr.bf16.mxu0 0
    %495 = vmatpush1.bf16.msra.mxu0 0
    %496 = vmatprep.subr.bf16.mxu0 0
    %497 = vmatpush1.bf16.msra.mxu0 0
    %498 = vmatprep.subr.bf16.mxu0 0
    %499 = vmatpush1.bf16.msra.mxu0 0
    %500 = vmatprep.subr.bf16.mxu0 0
    %501 = vmatpush1.bf16.msra.mxu0 0
    %502 = vmatprep.subr.bf16.mxu0 0
    %503 = vmatpush1.bf16.msra.mxu0 0
    %504 = vmatprep.subr.bf16.mxu0 0
    %505 = vmatpush1.bf16.msra.mxu0 0
    %506 = vmatprep.subr.bf16.mxu0 0
    %507 = vmatpush1.bf16.msra.mxu0 0
    %508 = vmatprep.subr.bf16.mxu0 0
    %509 = vmatpush1.bf16.msra.mxu0 0
    %510 = vmatprep.subr.bf16.mxu0 0
    %511 = vmatpush1.bf16.msra.mxu0 0
    %512 = vmatprep.subr.bf16.mxu0 0
    %513 = vmatpush1.bf16.msra.mxu0 0
    %514 = vmatprep.subr.bf16.mxu0 0
    %515 = vmatpush1.bf16.msra.mxu0 0
    %516 = vmatprep.mubr.bf16.mxu0 0
    %517 = vmatmul.mubr.bf16.gmra.mrb[0].mxu0 %v417
    %v518 = vpop.f32.mrb[0].mxu0
    %v519 = vadd.f32 0.0, %v518
    %v520 = vpop.f32.mrb[0].mxu0
    %v521 = vpop.f32.mrb[0].mxu0
    %v522 = vpop.f32.mrb[0].mxu0
    %523 = vdwg.mxu0
    %v525 = vrot.slane %v519, 7
    %v527 = vadd.f32 %v247, %v525
    %v528 = vxor.u32 %v527, 2147483648
    %v529 = vmul.f32 %v528, 1.442695
    %v530 = vpow.pop %v529
    %v531 = vadd.f32 %v530, 1.0
    %v532 = vrcp.pop %v531
    %v533 = vmul.f32 1.0, %v532
    %v534 = vtanh.pop %v527
    %v536 = vrot.slane %v341, 7
    %v538 = vmul.f32 %v533, %v536
    %540 = vrot.lane.b32.xlu0 %v534, 64
    %v541 = vpop.permute.xlu0 %540
    %v543 = vmul.f32 %v533, %v541
    %545 = vrot.lane.b32.xlu0 %v543, 32
    %v546 = vpop.permute.xlu0 %545
    %v548 = vadd.f32 %v538, %v546
    %v549 = vtanh.pop %v548
    %551 = vrot.lane.b32.xlu0 %v549, 64
    %v552 = vpop.permute.xlu0 %551
    %v554 = vmul.f32 %v533, %v552
    %v555 = vpack.c.bf16 %v554, %v554
    %v556 = vpack.c.bf16 %v483, %v483
    %558 = vrot.lane.b32.xlu0 %v556, 32
    %v559 = vpop.permute.xlu0 %558
    %v561 = vsel %vm208, %v559, 0
    %563 = vmatprep.subr.bf16.mxu0 0
    %564 = vmatpush1.bf16.msra.mxu0 %v357
    %565 = vmatprep.subr.bf16.mxu0 0
    %566 = vmatpush1.bf16.msra.mxu0 %v358
    %567 = vmatprep.subr.bf16.mxu0 0
    %568 = vmatpush1.bf16.msra.mxu0 0
    %569 = vmatprep.subr.bf16.mxu0 0
    %570 = vmatpush1.bf16.msra.mxu0 0
    %571 = vmatprep.subr.bf16.mxu0 0
    %572 = vmatpush1.bf16.msra.mxu0 0
    %573 = vmatprep.subr.bf16.mxu0 0
    %574 = vmatpush1.bf16.msra.mxu0 0
    %575 = vmatprep.subr.bf16.mxu0 0
    %576 = vmatpush1.bf16.msra.mxu0 0
    %577 = vmatprep.subr.bf16.mxu0 0
    %578 = vmatpush1.bf16.msra.mxu0 0
    %579 = vmatprep.subr.bf16.mxu0 0
    %580 = vmatpush1.bf16.msra.mxu0 0
    %581 = vmatprep.subr.bf16.mxu0 0
    %582 = vmatpush1.bf16.msra.mxu0 0
    %583 = vmatprep.subr.bf16.mxu0 0
    %584 = vmatpush1.bf16.msra.mxu0 0
    %585 = vmatprep.subr.bf16.mxu0 0
    %586 = vmatpush1.bf16.msra.mxu0 0
    %587 = vmatprep.subr.bf16.mxu0 0
    %588 = vmatpush1.bf16.msra.mxu0 0
    %589 = vmatprep.subr.bf16.mxu0 0
    %590 = vmatpush1.bf16.msra.mxu0 0
    %591 = vmatprep.subr.bf16.mxu0 0
    %592 = vmatpush1.bf16.msra.mxu0 0
    %593 = vmatprep.subr.bf16.mxu0 0
    %594 = vmatpush1.bf16.msra.mxu0 0
    %595 = vmatprep.mubr.bf16.mxu0 0
    %596 = vmatmul.mubr.bf16.gmra.mrb[0].mxu0 %v561
    %v597 = vpop.f32.mrb[0].mxu0
    %v598 = vadd.f32 0.0, %v597
    %v599 = vpop.f32.mrb[0].mxu0
    %v600 = vpop.f32.mrb[0].mxu0
    %v601 = vpop.f32.mrb[0].mxu0
    %602 = vdwg.mxu0
    %v604 = vshrl.u32 %v555, 16
    %606 = vrot.lane.b32.xlu0 %v604, 32
    %v607 = vpop.permute.xlu0 %606
    %v609 = vsel %vm208, %v607, 0
    %611 = vmatprep.subr.bf16.mxu0 0
    %612 = vmatpush1.bf16.msra.mxu0 %v412
    %613 = vmatprep.subr.bf16.mxu0 0
    %614 = vmatpush1.bf16.msra.mxu0 %v413
    %615 = vmatprep.subr.bf16.mxu0 0
    %616 = vmatpush1.bf16.msra.mxu0 0
    %617 = vmatprep.subr.bf16.mxu0 0
    %618 = vmatpush1.bf16.msra.mxu0 0
    %619 = vmatprep.subr.bf16.mxu0 0
    %620 = vmatpush1.bf16.msra.mxu0 0
    %621 = vmatprep.subr.bf16.mxu0 0
    %622 = vmatpush1.bf16.msra.mxu0 0
    %623 = vmatprep.subr.bf16.mxu0 0
    %624 = vmatpush1.bf16.msra.mxu0 0
    %625 = vmatprep.subr.bf16.mxu0 0
    %626 = vmatpush1.bf16.msra.mxu0 0
    %627 = vmatprep.subr.bf16.mxu0 0
    %628 = vmatpush1.bf16.msra.mxu0 0
    %629 = vmatprep.subr.bf16.mxu0 0
    %630 = vmatpush1.bf16.msra.mxu0 0
    %631 = vmatprep.subr.bf16.mxu0 0
    %632 = vmatpush1.bf16.msra.mxu0 0
    %633 = vmatprep.subr.bf16.mxu0 0
    %634 = vmatpush1.bf16.msra.mxu0 0
    %635 = vmatprep.subr.bf16.mxu0 0
    %636 = vmatpush1.bf16.msra.mxu0 0
    %637 = vmatprep.subr.bf16.mxu0 0
    %638 = vmatpush1.bf16.msra.mxu0 0
    %639 = vmatprep.subr.bf16.mxu0 0
    %640 = vmatpush1.bf16.msra.mxu0 0
    %641 = vmatprep.subr.bf16.mxu0 0
    %642 = vmatpush1.bf16.msra.mxu0 0
    %643 = vmatprep.mubr.bf16.mxu0 0
    %644 = vmatmul.mubr.bf16.gmra.mrb[0].mxu0 %v609
    %v645 = vpop.f32.mrb[0].mxu0
    %v646 = vadd.f32 %v598, %v645
    %v647 = vpop.f32.mrb[0].mxu0
    %v648 = vpop.f32.mrb[0].mxu0
    %v649 = vpop.f32.mrb[0].mxu0
    %650 = vdwg.mxu0
    %v651 = vadd.f32 %v646, %v267
    %v652 = vxor.u32 %v651, 2147483648
    %v653 = vmul.f32 %v652, 1.442695
    %v654 = vpow.pop %v653
    %v655 = vadd.f32 %v654, 1.0
    %v656 = vrcp.pop %v655
    %v657 = vmul.f32 1.0, %v656
    %v658 = vtanh.pop %v651
    %v659 = vmul.f32 %v657, %v477
    %661 = vrot.lane.b32.xlu0 %v658, 64
    %v662 = vpop.permute.xlu0 %661
    %v664 = vmul.f32 %v657, %v662
    %666 = vrot.lane.b32.xlu0 %v664, 32
    %v667 = vpop.permute.xlu0 %666
    %v669 = vadd.f32 %v659, %v667
    %v670 = vtanh.pop %v669
    %672 = vrot.lane.b32.xlu0 %v670, 64
    %v673 = vpop.permute.xlu0 %672
    %v675 = vmul.f32 %v657, %v673
    %676 = vmatprep.subr.bf16.mxu0 0
    %677 = vmatpush1.bf16.msra.mxu0 %v276
    %678 = vmatprep.subr.bf16.mxu0 0
    %679 = vmatpush1.bf16.msra.mxu0 %v277
    %680 = vmatprep.subr.bf16.mxu0 0
    %681 = vmatpush1.bf16.msra.mxu0 0
    %682 = vmatprep.subr.bf16.mxu0 0
    %683 = vmatpush1.bf16.msra.mxu0 0
    %684 = vmatprep.subr.bf16.mxu0 0
    %685 = vmatpush1.bf16.msra.mxu0 0
    %686 = vmatprep.subr.bf16.mxu0 0
    %687 = vmatpush1.bf16.msra.mxu0 0
    %688 = vmatprep.subr.bf16.mxu0 0
    %689 = vmatpush1.bf16.msra.mxu0 0
    %690 = vmatprep.subr.bf16.mxu0 0
    %691 = vmatpush1.bf16.msra.mxu0 0
    %692 = vmatprep.subr.bf16.mxu0 0
    %693 = vmatpush1.bf16.msra.mxu0 0
    %694 = vmatprep.subr.bf16.mxu0 0
    %695 = vmatpush1.bf16.msra.mxu0 0
    %696 = vmatprep.subr.bf16.mxu0 0
    %697 = vmatpush1.bf16.msra.mxu0 0
    %698 = vmatprep.subr.bf16.mxu0 0
    %699 = vmatpush1.bf16.msra.mxu0 0
    %700 = vmatprep.subr.bf16.mxu0 0
    %701 = vmatpush1.bf16.msra.mxu0 0
    %702 = vmatprep.subr.bf16.mxu0 0
    %703 = vmatpush1.bf16.msra.mxu0 0
    %704 = vmatprep.subr.bf16.mxu0 0
    %705 = vmatpush1.bf16.msra.mxu0 0
    %706 = vmatprep.subr.bf16.mxu0 0
    %707 = vmatpush1.bf16.msra.mxu0 0
    %708 = vmatprep.mubr.bf16.mxu0 0
    %709 = vmatmul.mubr.bf16.gmra.mrb[0].mxu0 %v609
    %v710 = vpop.f32.mrb[0].mxu0
    %v711 = vadd.f32 0.0, %v710
    %v712 = vpop.f32.mrb[0].mxu0
    %v713 = vpop.f32.mrb[0].mxu0
    %v714 = vpop.f32.mrb[0].mxu0
    %715 = vdwg.mxu0
    %v717 = vrot.slane %v711, 6
    %v719 = vadd.f32 %v247, %v717
    %v720 = vxor.u32 %v719, 2147483648
    %v721 = vmul.f32 %v720, 1.442695
    %v722 = vpow.pop %v721
    %v723 = vadd.f32 %v722, 1.0
    %v724 = vrcp.pop %v723
    %v725 = vmul.f32 1.0, %v724
    %v726 = vtanh.pop %v719
    %v728 = vrot.slane %v548, 7
    %v730 = vmul.f32 %v725, %v728
    %732 = vrot.lane.b32.xlu0 %v726, 64
    %v733 = vpop.permute.xlu0 %732
    %v735 = vmul.f32 %v725, %v733
    %737 = vrot.lane.b32.xlu0 %v735, 32
    %v738 = vpop.permute.xlu0 %737
    %v740 = vadd.f32 %v730, %v738
    %v741 = vtanh.pop %v740
    %743 = vrot.lane.b32.xlu0 %v741, 64
    %v744 = vpop.permute.xlu0 %743
    %v746 = vmul.f32 %v725, %v744
    %v747 = vpack.c.bf16 %v746, %v746
    %v748 = vpack.c.bf16 %v675, %v675
    %750 = vrot.lane.b32.xlu0 %v748, 32
    %v751 = vpop.permute.xlu0 %750
    %v753 = vsel %vm208, %v751, 0
    %755 = vmatprep.subr.bf16.mxu0 0
    %756 = vmatpush1.bf16.msra.mxu0 %v357
    %757 = vmatprep.subr.bf16.mxu0 0
    %758 = vmatpush1.bf16.msra.mxu0 %v358
    %759 = vmatprep.subr.bf16.mxu0 0
    %760 = vmatpush1.bf16.msra.mxu0 0
    %761 = vmatprep.subr.bf16.mxu0 0
    %762 = vmatpush1.bf16.msra.mxu0 0
    %763 = vmatprep.subr.bf16.mxu0 0
    %764 = vmatpush1.bf16.msra.mxu0 0
    %765 = vmatprep.subr.bf16.mxu0 0
    %766 = vmatpush1.bf16.msra.mxu0 0
    %767 = vmatprep.subr.bf16.mxu0 0
    %768 = vmatpush1.bf16.msra.mxu0 0
    %769 = vmatprep.subr.bf16.mxu0 0
    %770 = vmatpush1.bf16.msra.mxu0 0
    %771 = vmatprep.subr.bf16.mxu0 0
    %772 = vmatpush1.bf16.msra.mxu0 0
    %773 = vmatprep.subr.bf16.mxu0 0
    %774 = vmatpush1.bf16.msra.mxu0 0
    %775 = vmatprep.subr.bf16.mxu0 0
    %776 = vmatpush1.bf16.msra.mxu0 0
    %777 = vmatprep.subr.bf16.mxu0 0
    %778 = vmatpush1.bf16.msra.mxu0 0
    %779 = vmatprep.subr.bf16.mxu0 0
    %780 = vmatpush1.bf16.msra.mxu0 0
    %781 = vmatprep.subr.bf16.mxu0 0
    %782 = vmatpush1.bf16.msra.mxu0 0
    %783 = vmatprep.subr.bf16.mxu0 0
    %784 = vmatpush1.bf16.msra.mxu0 0
    %785 = vmatprep.subr.bf16.mxu0 0
    %786 = vmatpush1.bf16.msra.mxu0 0
    %787 = vmatprep.mubr.bf16.mxu0 0
    %788 = vmatmul.mubr.bf16.gmra.mrb[0].mxu0 %v753
    %v789 = vpop.f32.mrb[0].mxu0
    %v790 = vadd.f32 0.0, %v789
    %v791 = vpop.f32.mrb[0].mxu0
    %v792 = vpop.f32.mrb[0].mxu0
    %v793 = vpop.f32.mrb[0].mxu0
    %794 = vdwg.mxu0
    %v796 = vrot.slane %v747, 1
    %797 = vrot.lane.b32.xlu0 %v796, 32
    %v798 = vpop.permute.xlu0 %797
    %v800 = vsel %vm208, %v798, 0
    %802 = vmatprep.subr.bf16.mxu0 0
    %803 = vmatpush1.bf16.msra.mxu0 %v412
    %804 = vmatprep.subr.bf16.mxu0 0
    %805 = vmatpush1.bf16.msra.mxu0 %v413
    %806 = vmatprep.subr.bf16.mxu0 0
    %807 = vmatpush1.bf16.msra.mxu0 0
    %808 = vmatprep.subr.bf16.mxu0 0
    %809 = vmatpush1.bf16.msra.mxu0 0
    %810 = vmatprep.subr.bf16.mxu0 0
    %811 = vmatpush1.bf16.msra.mxu0 0
    %812 = vmatprep.subr.bf16.mxu0 0
    %813 = vmatpush1.bf16.msra.mxu0 0
    %814 = vmatprep.subr.bf16.mxu0 0
    %815 = vmatpush1.bf16.msra.mxu0 0
    %816 = vmatprep.subr.bf16.mxu0 0
    %817 = vmatpush1.bf16.msra.mxu0 0
    %818 = vmatprep.subr.bf16.mxu0 0
    %819 = vmatpush1.bf16.msra.mxu0 0
    %820 = vmatprep.subr.bf16.mxu0 0
    %821 = vmatpush1.bf16.msra.mxu0 0
    %822 = vmatprep.subr.bf16.mxu0 0
    %823 = vmatpush1.bf16.msra.mxu0 0
    %824 = vmatprep.subr.bf16.mxu0 0
    %825 = vmatpush1.bf16.msra.mxu0 0
    %826 = vmatprep.subr.bf16.mxu0 0
    %827 = vmatpush1.bf16.msra.mxu0 0
    %828 = vmatprep.subr.bf16.mxu0 0
    %829 = vmatpush1.bf16.msra.mxu0 0
    %830 = vmatprep.subr.bf16.mxu0 0
    %831 = vmatpush1.bf16.msra.mxu0 0
    %832 = vmatprep.subr.bf16.mxu0 0
    %833 = vmatpush1.bf16.msra.mxu0 0
    %834 = vmatprep.mubr.bf16.mxu0 0
    %835 = vmatmul.mubr.bf16.gmra.mrb[0].mxu0 %v800
    %v836 = vpop.f32.mrb[0].mxu0
    %v837 = vadd.f32 %v790, %v836
    %v838 = vpop.f32.mrb[0].mxu0
    %v839 = vpop.f32.mrb[0].mxu0
    %v840 = vpop.f32.mrb[0].mxu0
    %841 = vdwg.mxu0
    %v842 = vadd.f32 %v837, %v267
    %v843 = vxor.u32 %v842, 2147483648
    %v844 = vmul.f32 %v843, 1.442695
    %v845 = vpow.pop %v844
    %v846 = vadd.f32 %v845, 1.0
    %v847 = vrcp.pop %v846
    %v848 = vmul.f32 1.0, %v847
    %v849 = vtanh.pop %v842
    %v850 = vmul.f32 %v848, %v669
    %852 = vrot.lane.b32.xlu0 %v849, 64
    %v853 = vpop.permute.xlu0 %852
    %v855 = vmul.f32 %v848, %v853
    %857 = vrot.lane.b32.xlu0 %v855, 32
    %v858 = vpop.permute.xlu0 %857
    %v860 = vadd.f32 %v850, %v858
    %v861 = vtanh.pop %v860
    %863 = vrot.lane.b32.xlu0 %v861, 64
    %v864 = vpop.permute.xlu0 %863
    %v866 = vmul.f32 %v848, %v864
    %867 = vmatprep.subr.bf16.mxu0 0
    %868 = vmatpush1.bf16.msra.mxu0 %v276
    %869 = vmatprep.subr.bf16.mxu0 0
    %870 = vmatpush1.bf16.msra.mxu0 %v277
    %871 = vmatprep.subr.bf16.mxu0 0
    %872 = vmatpush1.bf16.msra.mxu0 0
    %873 = vmatprep.subr.bf16.mxu0 0
    %874 = vmatpush1.bf16.msra.mxu0 0
    %875 = vmatprep.subr.bf16.mxu0 0
    %876 = vmatpush1.bf16.msra.mxu0 0
    %877 = vmatprep.subr.bf16.mxu0 0
    %878 = vmatpush1.bf16.msra.mxu0 0
    %879 = vmatprep.subr.bf16.mxu0 0
    %880 = vmatpush1.bf16.msra.mxu0 0
    %881 = vmatprep.subr.bf16.mxu0 0
    %882 = vmatpush1.bf16.msra.mxu0 0
    %883 = vmatprep.subr.bf16.mxu0 0
    %884 = vmatpush1.bf16.msra.mxu0 0
    %885 = vmatprep.subr.bf16.mxu0 0
    %886 = vmatpush1.bf16.msra.mxu0 0
    %887 = vmatprep.subr.bf16.mxu0 0
    %888 = vmatpush1.bf16.msra.mxu0 0
    %889 = vmatprep.subr.bf16.mxu0 0
    %890 = vmatpush1.bf16.msra.mxu0 0
    %891 = vmatprep.subr.bf16.mxu0 0
    %892 = vmatpush1.bf16.msra.mxu0 0
    %893 = vmatprep.subr.bf16.mxu0 0
    %894 = vmatpush1.bf16.msra.mxu0 0
    %895 = vmatprep.subr.bf16.mxu0 0
    %896 = vmatpush1.bf16.msra.mxu0 0
    %897 = vmatprep.subr.bf16.mxu0 0
    %898 = vmatpush1.bf16.msra.mxu0 0
    %899 = vmatprep.mubr.bf16.mxu0 0
    %900 = vmatmul.mubr.bf16.gmra.mrb[0].mxu0 %v800
    %v901 = vpop.f32.mrb[0].mxu0
    %v902 = vadd.f32 0.0, %v901
    %v903 = vpop.f32.mrb[0].mxu0
    %v904 = vpop.f32.mrb[0].mxu0
    %v905 = vpop.f32.mrb[0].mxu0
    %906 = vdwg.mxu0
    %v908 = vrot.slane %v902, 5
    %v910 = vadd.f32 %v247, %v908
    %v911 = vxor.u32 %v910, 2147483648
    %v912 = vmul.f32 %v911, 1.442695
    %v913 = vpow.pop %v912
    %v914 = vadd.f32 %v913, 1.0
    %v915 = vrcp.pop %v914
    %v916 = vmul.f32 1.0, %v915
    %v917 = vtanh.pop %v910
    %v919 = vrot.slane %v740, 7
    %v921 = vmul.f32 %v916, %v919
    %923 = vrot.lane.b32.xlu0 %v917, 64
    %v924 = vpop.permute.xlu0 %923
    %v926 = vmul.f32 %v916, %v924
    %928 = vrot.lane.b32.xlu0 %v926, 32
    %v929 = vpop.permute.xlu0 %928
    %v931 = vadd.f32 %v921, %v929
    %v932 = vtanh.pop %v931
    %934 = vrot.lane.b32.xlu0 %v932, 64
    %v935 = vpop.permute.xlu0 %934
    %v937 = vmul.f32 %v916, %v935
    %v938 = vpack.c.bf16 %v937, %v937
    %v939 = vpack.c.bf16 %v866, %v866
    %941 = vrot.lane.b32.xlu0 %v939, 32
    %v942 = vpop.permute.xlu0 %941
    %v944 = vsel %vm208, %v942, 0
    %946 = vmatprep.subr.bf16.mxu0 0
    %947 = vmatpush1.bf16.msra.mxu0 %v357
    %948 = vmatprep.subr.bf16.mxu0 0
    %949 = vmatpush1.bf16.msra.mxu0 %v358
    %950 = vmatprep.subr.bf16.mxu0 0
    %951 = vmatpush1.bf16.msra.mxu0 0
    %952 = vmatprep.subr.bf16.mxu0 0
    %953 = vmatpush1.bf16.msra.mxu0 0
    %954 = vmatprep.subr.bf16.mxu0 0
    %955 = vmatpush1.bf16.msra.mxu0 0
    %956 = vmatprep.subr.bf16.mxu0 0
    %957 = vmatpush1.bf16.msra.mxu0 0
    %958 = vmatprep.subr.bf16.mxu0 0
    %959 = vmatpush1.bf16.msra.mxu0 0
    %960 = vmatprep.subr.bf16.mxu0 0
    %961 = vmatpush1.bf16.msra.mxu0 0
    %962 = vmatprep.subr.bf16.mxu0 0
    %963 = vmatpush1.bf16.msra.mxu0 0
    %964 = vmatprep.subr.bf16.mxu0 0
    %965 = vmatpush1.bf16.msra.mxu0 0
    %966 = vmatprep.subr.bf16.mxu0 0
    %967 = vmatpush1.bf16.msra.mxu0 0
    %968 = vmatprep.subr.bf16.mxu0 0
    %969 = vmatpush1.bf16.msra.mxu0 0
    %970 = vmatprep.subr.bf16.mxu0 0
    %971 = vmatpush1.bf16.msra.mxu0 0
    %972 = vmatprep.subr.bf16.mxu0 0
    %973 = vmatpush1.bf16.msra.mxu0 0
    %974 = vmatprep.subr.bf16.mxu0 0
    %975 = vmatpush1.bf16.msra.mxu0 0
    %976 = vmatprep.subr.bf16.mxu0 0
    %977 = vmatpush1.bf16.msra.mxu0 0
    %978 = vmatprep.mubr.bf16.mxu0 0
    %979 = vmatmul.mubr.bf16.gmra.mrb[0].mxu0 %v944
    %v980 = vpop.f32.mrb[0].mxu0
    %v981 = vadd.f32 0.0, %v980
    %v982 = vpop.f32.mrb[0].mxu0
    %v983 = vpop.f32.mrb[0].mxu0
    %v984 = vpop.f32.mrb[0].mxu0
    %985 = vdwg.mxu0
    %v987 = vshrl.u32 %v938, 16
    %v989 = vrot.slane %v987, 1
    %990 = vrot.lane.b32.xlu0 %v989, 32
    %v991 = vpop.permute.xlu0 %990
    %v993 = vsel %vm208, %v991, 0
    %995 = vmatprep.subr.bf16.mxu0 0
    %996 = vmatpush1.bf16.msra.mxu0 %v412
    %997 = vmatprep.subr.bf16.mxu0 0
    %998 = vmatpush1.bf16.msra.mxu0 %v413
    %999 = vmatprep.subr.bf16.mxu0 0
    %1000 = vmatpush1.bf16.msra.mxu0 0
    %1001 = vmatprep.subr.bf16.mxu0 0
    %1002 = vmatpush1.bf16.msra.mxu0 0
    %1003 = vmatprep.subr.bf16.mxu0 0
    %1004 = vmatpush1.bf16.msra.mxu0 0
    %1005 = vmatprep.subr.bf16.mxu0 0
    %1006 = vmatpush1.bf16.msra.mxu0 0
    %1007 = vmatprep.subr.bf16.mxu0 0
    %1008 = vmatpush1.bf16.msra.mxu0 0
    %1009 = vmatprep.subr.bf16.mxu0 0
    %1010 = vmatpush1.bf16.msra.mxu0 0
    %1011 = vmatprep.subr.bf16.mxu0 0
    %1012 = vmatpush1.bf16.msra.mxu0 0
    %1013 = vmatprep.subr.bf16.mxu0 0
    %1014 = vmatpush1.bf16.msra.mxu0 0
    %1015 = vmatprep.subr.bf16.mxu0 0
    %1016 = vmatpush1.bf16.msra.mxu0 0
    %1017 = vmatprep.subr.bf16.mxu0 0
    %1018 = vmatpush1.bf16.msra.mxu0 0
    %1019 = vmatprep.subr.bf16.mxu0 0
    %1020 = vmatpush1.bf16.msra.mxu0 0
    %1021 = vmatprep.subr.bf16.mxu0 0
    %1022 = vmatpush1.bf16.msra.mxu0 0
    %1023 = vmatprep.subr.bf16.mxu0 0
    %1024 = vmatpush1.bf16.msra.mxu0 0
    %1025 = vmatprep.subr.bf16.mxu0 0
    %1026 = vmatpush1.bf16.msra.mxu0 0
    %1027 = vmatprep.mubr.bf16.mxu0 0
    %1028 = vmatmul.mubr.bf16.gmra.mrb[0].mxu0 %v993
    %v1029 = vpop.f32.mrb[0].mxu0
    %v1030 = vadd.f32 %v981, %v1029
    %v1031 = vpop.f32.mrb[0].mxu0
    %v1032 = vpop.f32.mrb[0].mxu0
    %v1033 = vpop.f32.mrb[0].mxu0
    %1034 = vdwg.mxu0
    %v1035 = vadd.f32 %v1030, %v267
    %v1036 = vxor.u32 %v1035, 2147483648
    %v1037 = vmul.f32 %v1036, 1.442695
    %v1038 = vpow.pop %v1037
    %v1039 = vadd.f32 %v1038, 1.0
    %v1040 = vrcp.pop %v1039
    %v1041 = vmul.f32 1.0, %v1040
    %v1042 = vtanh.pop %v1035
    %v1043 = vmul.f32 %v1041, %v860
    %1045 = vrot.lane.b32.xlu0 %v1042, 64
    %v1046 = vpop.permute.xlu0 %1045
    %v1048 = vmul.f32 %v1041, %v1046
    %1050 = vrot.lane.b32.xlu0 %v1048, 32
    %v1051 = vpop.permute.xlu0 %1050
    %v1053 = vadd.f32 %v1043, %v1051
    %v1054 = vtanh.pop %v1053
    %1056 = vrot.lane.b32.xlu0 %v1054, 64
    %v1057 = vpop.permute.xlu0 %1056
    %v1059 = vmul.f32 %v1041, %v1057
    %1060 = vmatprep.subr.bf16.mxu0 0
    %1061 = vmatpush1.bf16.msra.mxu0 %v276
    %1062 = vmatprep.subr.bf16.mxu0 0
    %1063 = vmatpush1.bf16.msra.mxu0 %v277
    %1064 = vmatprep.subr.bf16.mxu0 0
    %1065 = vmatpush1.bf16.msra.mxu0 0
    %1066 = vmatprep.subr.bf16.mxu0 0
    %1067 = vmatpush1.bf16.msra.mxu0 0
    %1068 = vmatprep.subr.bf16.mxu0 0
    %1069 = vmatpush1.bf16.msra.mxu0 0
    %1070 = vmatprep.subr.bf16.mxu0 0
    %1071 = vmatpush1.bf16.msra.mxu0 0
    %1072 = vmatprep.subr.bf16.mxu0 0
    %1073 = vmatpush1.bf16.msra.mxu0 0
    %1074 = vmatprep.subr.bf16.mxu0 0
    %1075 = vmatpush1.bf16.msra.mxu0 0
    %1076 = vmatprep.subr.bf16.mxu0 0
    %1077 = vmatpush1.bf16.msra.mxu0 0
    %1078 = vmatprep.subr.bf16.mxu0 0
    %1079 = vmatpush1.bf16.msra.mxu0 0
    %1080 = vmatprep.subr.bf16.mxu0 0
    %1081 = vmatpush1.bf16.msra.mxu0 0
    %1082 = vmatprep.subr.bf16.mxu0 0
    %1083 = vmatpush1.bf16.msra.mxu0 0
    %1084 = vmatprep.subr.bf16.mxu0 0
    %1085 = vmatpush1.bf16.msra.mxu0 0
    %1086 = vmatprep.subr.bf16.mxu0 0
    %1087 = vmatpush1.bf16.msra.mxu0 0
    %1088 = vmatprep.subr.bf16.mxu0 0
    %1089 = vmatpush1.bf16.msra.mxu0 0
    %1090 = vmatprep.subr.bf16.mxu0 0
    %1091 = vmatpush1.bf16.msra.mxu0 0
    %1092 = vmatprep.mubr.bf16.mxu0 0
    %1093 = vmatmul.mubr.bf16.gmra.mrb[0].mxu0 %v993
    %v1094 = vpop.f32.mrb[0].mxu0
    %v1095 = vadd.f32 0.0, %v1094
    %v1096 = vpop.f32.mrb[0].mxu0
    %v1097 = vpop.f32.mrb[0].mxu0
    %v1098 = vpop.f32.mrb[0].mxu0
    %1099 = vdwg.mxu0
    %v1101 = vrot.slane %v1095, 4
    %v1103 = vadd.f32 %v247, %v1101
    %v1104 = vxor.u32 %v1103, 2147483648
    %v1105 = vmul.f32 %v1104, 1.442695
    %v1106 = vpow.pop %v1105
    %v1107 = vadd.f32 %v1106, 1.0
    %v1108 = vrcp.pop %v1107
    %v1109 = vmul.f32 1.0, %v1108
    %v1110 = vtanh.pop %v1103
    %v1112 = vrot.slane %v931, 7
    %v1114 = vmul.f32 %v1109, %v1112
    %1116 = vrot.lane.b32.xlu0 %v1110, 64
    %v1117 = vpop.permute.xlu0 %1116
    %v1119 = vmul.f32 %v1109, %v1117
    %1121 = vrot.lane.b32.xlu0 %v1119, 32
    %v1122 = vpop.permute.xlu0 %1121
    %v1124 = vadd.f32 %v1114, %v1122
    %v1125 = vtanh.pop %v1124
    %1127 = vrot.lane.b32.xlu0 %v1125, 64
    %v1128 = vpop.permute.xlu0 %1127
    %v1130 = vmul.f32 %v1109, %v1128
    %v1131 = vpack.c.bf16 %v1130, %v1130
    %v1132 = vpack.c.bf16 %v1059, %v1059
    %1134 = vrot.lane.b32.xlu0 %v1132, 32
    %v1135 = vpop.permute.xlu0 %1134
    %v1137 = vsel %vm208, %v1135, 0
    %1139 = vmatprep.subr.bf16.mxu0 0
    %1140 = vmatpush1.bf16.msra.mxu0 %v357
    %1141 = vmatprep.subr.bf16.mxu0 0
    %1142 = vmatpush1.bf16.msra.mxu0 %v358
    %1143 = vmatprep.subr.bf16.mxu0 0
    %1144 = vmatpush1.bf16.msra.mxu0 0
    %1145 = vmatprep.subr.bf16.mxu0 0
    %1146 = vmatpush1.bf16.msra.mxu0 0
    %1147 = vmatprep.subr.bf16.mxu0 0
    %1148 = vmatpush1.bf16.msra.mxu0 0
    %1149 = vmatprep.subr.bf16.mxu0 0
    %1150 = vmatpush1.bf16.msra.mxu0 0
    %1151 = vmatprep.subr.bf16.mxu0 0
    %1152 = vmatpush1.bf16.msra.mxu0 0
    %1153 = vmatprep.subr.bf16.mxu0 0
    %1154 = vmatpush1.bf16.msra.mxu0 0
    %1155 = vmatprep.subr.bf16.mxu0 0
    %1156 = vmatpush1.bf16.msra.mxu0 0
    %1157 = vmatprep.subr.bf16.mxu0 0
    %1158 = vmatpush1.bf16.msra.mxu0 0
    %1159 = vmatprep.subr.bf16.mxu0 0
    %1160 = vmatpush1.bf16.msra.mxu0 0
    %1161 = vmatprep.subr.bf16.mxu0 0
    %1162 = vmatpush1.bf16.msra.mxu0 0
    %1163 = vmatprep.subr.bf16.mxu0 0
    %1164 = vmatpush1.bf16.msra.mxu0 0
    %1165 = vmatprep.subr.bf16.mxu0 0
    %1166 = vmatpush1.bf16.msra.mxu0 0
    %1167 = vmatprep.subr.bf16.mxu0 0
    %1168 = vmatpush1.bf16.msra.mxu0 0
    %1169 = vmatprep.subr.bf16.mxu0 0
    %1170 = vmatpush1.bf16.msra.mxu0 0
    %1171 = vmatprep.mubr.bf16.mxu0 0
    %1172 = vmatmul.mubr.bf16.gmra.mrb[0].mxu0 %v1137
    %v1173 = vpop.f32.mrb[0].mxu0
    %v1174 = vadd.f32 0.0, %v1173
    %v1175 = vpop.f32.mrb[0].mxu0
    %v1176 = vpop.f32.mrb[0].mxu0
    %v1177 = vpop.f32.mrb[0].mxu0
    %1178 = vdwg.mxu0
    %v1180 = vrot.slane %v1131, 2
    %1181 = vrot.lane.b32.xlu0 %v1180, 32
    %v1182 = vpop.permute.xlu0 %1181
    %v1184 = vsel %vm208, %v1182, 0
    %1186 = vmatprep.subr.bf16.mxu0 0
    %1187 = vmatpush1.bf16.msra.mxu0 %v412
    %1188 = vmatprep.subr.bf16.mxu0 0
    %1189 = vmatpush1.bf16.msra.mxu0 %v413
    %1190 = vmatprep.subr.bf16.mxu0 0
    %1191 = vmatpush1.bf16.msra.mxu0 0
    %1192 = vmatprep.subr.bf16.mxu0 0
    %1193 = vmatpush1.bf16.msra.mxu0 0
    %1194 = vmatprep.subr.bf16.mxu0 0
    %1195 = vmatpush1.bf16.msra.mxu0 0
    %1196 = vmatprep.subr.bf16.mxu0 0
    %1197 = vmatpush1.bf16.msra.mxu0 0
    %1198 = vmatprep.subr.bf16.mxu0 0
    %1199 = vmatpush1.bf16.msra.mxu0 0
    %1200 = vmatprep.subr.bf16.mxu0 0
    %1201 = vmatpush1.bf16.msra.mxu0 0
    %1202 = vmatprep.subr.bf16.mxu0 0
    %1203 = vmatpush1.bf16.msra.mxu0 0
    %1204 = vmatprep.subr.bf16.mxu0 0
    %1205 = vmatpush1.bf16.msra.mxu0 0
    %1206 = vmatprep.subr.bf16.mxu0 0
    %1207 = vmatpush1.bf16.msra.mxu0 0
    %1208 = vmatprep.subr.bf16.mxu0 0
    %1209 = vmatpush1.bf16.msra.mxu0 0
    %1210 = vmatprep.subr.bf16.mxu0 0
    %1211 = vmatpush1.bf16.msra.mxu0 0
    %1212 = vmatprep.subr.bf16.mxu0 0
    %1213 = vmatpush1.bf16.msra.mxu0 0
    %1214 = vmatprep.subr.bf16.mxu0 0
    %1215 = vmatpush1.bf16.msra.mxu0 0
    %1216 = vmatprep.subr.bf16.mxu0 0
    %1217 = vmatpush1.bf16.msra.mxu0 0
    %1218 = vmatprep.mubr.bf16.mxu0 0
    %1219 = vmatmul.mubr.bf16.gmra.mrb[0].mxu0 %v1184
    %v1220 = vpop.f32.mrb[0].mxu0
    %v1221 = vadd.f32 %v1174, %v1220
    %v1222 = vpop.f32.mrb[0].mxu0
    %v1223 = vpop.f32.mrb[0].mxu0
    %v1224 = vpop.f32.mrb[0].mxu0
    %1225 = vdwg.mxu0
    %v1226 = vadd.f32 %v1221, %v267
    %v1227 = vxor.u32 %v1226, 2147483648
    %v1228 = vmul.f32 %v1227, 1.442695
    %v1229 = vpow.pop %v1228
    %v1230 = vadd.f32 %v1229, 1.0
    %v1231 = vrcp.pop %v1230
    %v1232 = vmul.f32 1.0, %v1231
    %v1233 = vtanh.pop %v1226
    %v1234 = vmul.f32 %v1232, %v1053
    %1236 = vrot.lane.b32.xlu0 %v1233, 64
    %v1237 = vpop.permute.xlu0 %1236
    %v1239 = vmul.f32 %v1232, %v1237
    %1241 = vrot.lane.b32.xlu0 %v1239, 32
    %v1242 = vpop.permute.xlu0 %1241
    %v1244 = vadd.f32 %v1234, %v1242
    %v1245 = vtanh.pop %v1244
    %1247 = vrot.lane.b32.xlu0 %v1245, 64
    %v1248 = vpop.permute.xlu0 %1247
    %v1250 = vmul.f32 %v1232, %v1248
    %1251 = vmatprep.subr.bf16.mxu0 0
    %1252 = vmatpush1.bf16.msra.mxu0 %v276
    %1253 = vmatprep.subr.bf16.mxu0 0
    %1254 = vmatpush1.bf16.msra.mxu0 %v277
    %1255 = vmatprep.subr.bf16.mxu0 0
    %1256 = vmatpush1.bf16.msra.mxu0 0
    %1257 = vmatprep.subr.bf16.mxu0 0
    %1258 = vmatpush1.bf16.msra.mxu0 0
    %1259 = vmatprep.subr.bf16.mxu0 0
    %1260 = vmatpush1.bf16.msra.mxu0 0
    %1261 = vmatprep.subr.bf16.mxu0 0
    %1262 = vmatpush1.bf16.msra.mxu0 0
    %1263 = vmatprep.subr.bf16.mxu0 0
    %1264 = vmatpush1.bf16.msra.mxu0 0
    %1265 = vmatprep.subr.bf16.mxu0 0
    %1266 = vmatpush1.bf16.msra.mxu0 0
    %1267 = vmatprep.subr.bf16.mxu0 0
    %1268 = vmatpush1.bf16.msra.mxu0 0
    %1269 = vmatprep.subr.bf16.mxu0 0
    %1270 = vmatpush1.bf16.msra.mxu0 0
    %1271 = vmatprep.subr.bf16.mxu0 0
    %1272 = vmatpush1.bf16.msra.mxu0 0
    %1273 = vmatprep.subr.bf16.mxu0 0
    %1274 = vmatpush1.bf16.msra.mxu0 0
    %1275 = vmatprep.subr.bf16.mxu0 0
    %1276 = vmatpush1.bf16.msra.mxu0 0
    %1277 = vmatprep.subr.bf16.mxu0 0
    %1278 = vmatpush1.bf16.msra.mxu0 0
    %1279 = vmatprep.subr.bf16.mxu0 0
    %1280 = vmatpush1.bf16.msra.mxu0 0
    %1281 = vmatprep.subr.bf16.mxu0 0
    %1282 = vmatpush1.bf16.msra.mxu0 0
    %1283 = vmatprep.mubr.bf16.mxu0 0
    %1284 = vmatmul.mubr.bf16.gmra.mrb[0].mxu0 %v1184
    %v1285 = vpop.f32.mrb[0].mxu0
    %v1286 = vadd.f32 0.0, %v1285
    %v1287 = vpop.f32.mrb[0].mxu0
    %v1288 = vpop.f32.mrb[0].mxu0
    %v1289 = vpop.f32.mrb[0].mxu0
    %1290 = vdwg.mxu0
    %v1292 = vrot.slane %v1286, 3
    %v1294 = vadd.f32 %v247, %v1292
    %v1295 = vxor.u32 %v1294, 2147483648
    %v1296 = vmul.f32 %v1295, 1.442695
    %v1297 = vpow.pop %v1296
    %v1298 = vadd.f32 %v1297, 1.0
    %v1299 = vrcp.pop %v1298
    %v1300 = vmul.f32 1.0, %v1299
    %v1301 = vtanh.pop %v1294
    %v1303 = vrot.slane %v1124, 7
    %v1305 = vmul.f32 %v1300, %v1303
    %1307 = vrot.lane.b32.xlu0 %v1301, 64
    %v1308 = vpop.permute.xlu0 %1307
    %v1310 = vmul.f32 %v1300, %v1308
    %1312 = vrot.lane.b32.xlu0 %v1310, 32
    %v1313 = vpop.permute.xlu0 %1312
    %v1315 = vadd.f32 %v1305, %v1313
    %v1316 = vtanh.pop %v1315
    %1318 = vrot.lane.b32.xlu0 %v1316, 64
    %v1319 = vpop.permute.xlu0 %1318
    %v1321 = vmul.f32 %v1300, %v1319
    %v1322 = vpack.c.bf16 %v1321, %v1321
    %v1323 = vpack.c.bf16 %v1250, %v1250
    %1325 = vrot.lane.b32.xlu0 %v1323, 32
    %v1326 = vpop.permute.xlu0 %1325
    %v1328 = vsel %vm208, %v1326, 0
    %1330 = vmatprep.subr.bf16.mxu0 0
    %1331 = vmatpush1.bf16.msra.mxu0 %v357
    %1332 = vmatprep.subr.bf16.mxu0 0
    %1333 = vmatpush1.bf16.msra.mxu0 %v358
    %1334 = vmatprep.subr.bf16.mxu0 0
    %1335 = vmatpush1.bf16.msra.mxu0 0
    %1336 = vmatprep.subr.bf16.mxu0 0
    %1337 = vmatpush1.bf16.msra.mxu0 0
    %1338 = vmatprep.subr.bf16.mxu0 0
    %1339 = vmatpush1.bf16.msra.mxu0 0
    %1340 = vmatprep.subr.bf16.mxu0 0
    %1341 = vmatpush1.bf16.msra.mxu0 0
    %1342 = vmatprep.subr.bf16.mxu0 0
    %1343 = vmatpush1.bf16.msra.mxu0 0
    %1344 = vmatprep.subr.bf16.mxu0 0
    %1345 = vmatpush1.bf16.msra.mxu0 0
    %1346 = vmatprep.subr.bf16.mxu0 0
    %1347 = vmatpush1.bf16.msra.mxu0 0
    %1348 = vmatprep.subr.bf16.mxu0 0
    %1349 = vmatpush1.bf16.msra.mxu0 0
    %1350 = vmatprep.subr.bf16.mxu0 0
    %1351 = vmatpush1.bf16.msra.mxu0 0
    %1352 = vmatprep.subr.bf16.mxu0 0
    %1353 = vmatpush1.bf16.msra.mxu0 0
    %1354 = vmatprep.subr.bf16.mxu0 0
    %1355 = vmatpush1.bf16.msra.mxu0 0
    %1356 = vmatprep.subr.bf16.mxu0 0
    %1357 = vmatpush1.bf16.msra.mxu0 0
    %1358 = vmatprep.subr.bf16.mxu0 0
    %1359 = vmatpush1.bf16.msra.mxu0 0
    %1360 = vmatprep.subr.bf16.mxu0 0
    %1361 = vmatpush1.bf16.msra.mxu0 0
    %1362 = vmatprep.mubr.bf16.mxu0 0
    %1363 = vmatmul.mubr.bf16.gmra.mrb[0].mxu0 %v1328
    %v1364 = vpop.f32.mrb[0].mxu0
    %v1365 = vadd.f32 0.0, %v1364
    %v1366 = vpop.f32.mrb[0].mxu0
    %v1367 = vpop.f32.mrb[0].mxu0
    %v1368 = vpop.f32.mrb[0].mxu0
    %1369 = vdwg.mxu0
    %v1371 = vshrl.u32 %v1322, 16
    %v1373 = vrot.slane %v1371, 2
    %1374 = vrot.lane.b32.xlu0 %v1373, 32
    %v1375 = vpop.permute.xlu0 %1374
    %v1377 = vsel %vm208, %v1375, 0
    %1379 = vmatprep.subr.bf16.mxu0 0
    %1380 = vmatpush1.bf16.msra.mxu0 %v412
    %1381 = vmatprep.subr.bf16.mxu0 0
    %1382 = vmatpush1.bf16.msra.mxu0 %v413
    %1383 = vmatprep.subr.bf16.mxu0 0
    %1384 = vmatpush1.bf16.msra.mxu0 0
    %1385 = vmatprep.subr.bf16.mxu0 0
    %1386 = vmatpush1.bf16.msra.mxu0 0
    %1387 = vmatprep.subr.bf16.mxu0 0
    %1388 = vmatpush1.bf16.msra.mxu0 0
    %1389 = vmatprep.subr.bf16.mxu0 0
    %1390 = vmatpush1.bf16.msra.mxu0 0
    %1391 = vmatprep.subr.bf16.mxu0 0
    %1392 = vmatpush1.bf16.msra.mxu0 0
    %1393 = vmatprep.subr.bf16.mxu0 0
    %1394 = vmatpush1.bf16.msra.mxu0 0
    %1395 = vmatprep.subr.bf16.mxu0 0
    %1396 = vmatpush1.bf16.msra.mxu0 0
    %1397 = vmatprep.subr.bf16.mxu0 0
    %1398 = vmatpush1.bf16.msra.mxu0 0
    %1399 = vmatprep.subr.bf16.mxu0 0
    %1400 = vmatpush1.bf16.msra.mxu0 0
    %1401 = vmatprep.subr.bf16.mxu0 0
    %1402 = vmatpush1.bf16.msra.mxu0 0
    %1403 = vmatprep.subr.bf16.mxu0 0
    %1404 = vmatpush1.bf16.msra.mxu0 0
    %1405 = vmatprep.subr.bf16.mxu0 0
    %1406 = vmatpush1.bf16.msra.mxu0 0
    %1407 = vmatprep.subr.bf16.mxu0 0
    %1408 = vmatpush1.bf16.msra.mxu0 0
    %1409 = vmatprep.subr.bf16.mxu0 0
    %1410 = vmatpush1.bf16.msra.mxu0 0
    %1411 = vmatprep.mubr.bf16.mxu0 0
    %1412 = vmatmul.mubr.bf16.gmra.mrb[0].mxu0 %v1377
    %v1413 = vpop.f32.mrb[0].mxu0
    %v1414 = vadd.f32 %v1365, %v1413
    %v1415 = vpop.f32.mrb[0].mxu0
    %v1416 = vpop.f32.mrb[0].mxu0
    %v1417 = vpop.f32.mrb[0].mxu0
    %1418 = vdwg.mxu0
    %v1419 = vadd.f32 %v1414, %v267
    %v1420 = vxor.u32 %v1419, 2147483648
    %v1421 = vmul.f32 %v1420, 1.442695
    %v1422 = vpow.pop %v1421
    %v1423 = vadd.f32 %v1422, 1.0
    %v1424 = vrcp.pop %v1423
    %v1425 = vmul.f32 1.0, %v1424
    %v1426 = vtanh.pop %v1419
    %v1427 = vmul.f32 %v1425, %v1244
    %1429 = vrot.lane.b32.xlu0 %v1426, 64
    %v1430 = vpop.permute.xlu0 %1429
    %v1432 = vmul.f32 %v1425, %v1430
    %1434 = vrot.lane.b32.xlu0 %v1432, 32
    %v1435 = vpop.permute.xlu0 %1434
    %v1437 = vadd.f32 %v1427, %v1435
    %v1438 = vtanh.pop %v1437
    %1440 = vrot.lane.b32.xlu0 %v1438, 64
    %v1441 = vpop.permute.xlu0 %1440
    %v1443 = vmul.f32 %v1425, %v1441
    %1444 = vmatprep.subr.bf16.mxu0 0
    %1445 = vmatpush1.bf16.msra.mxu0 %v276
    %1446 = vmatprep.subr.bf16.mxu0 0
    %1447 = vmatpush1.bf16.msra.mxu0 %v277
    %1448 = vmatprep.subr.bf16.mxu0 0
    %1449 = vmatpush1.bf16.msra.mxu0 0
    %1450 = vmatprep.subr.bf16.mxu0 0
    %1451 = vmatpush1.bf16.msra.mxu0 0
    %1452 = vmatprep.subr.bf16.mxu0 0
    %1453 = vmatpush1.bf16.msra.mxu0 0
    %1454 = vmatprep.subr.bf16.mxu0 0
    %1455 = vmatpush1.bf16.msra.mxu0 0
    %1456 = vmatprep.subr.bf16.mxu0 0
    %1457 = vmatpush1.bf16.msra.mxu0 0
    %1458 = vmatprep.subr.bf16.mxu0 0
    %1459 = vmatpush1.bf16.msra.mxu0 0
    %1460 = vmatprep.subr.bf16.mxu0 0
    %1461 = vmatpush1.bf16.msra.mxu0 0
    %1462 = vmatprep.subr.bf16.mxu0 0
    %1463 = vmatpush1.bf16.msra.mxu0 0
    %1464 = vmatprep.subr.bf16.mxu0 0
    %1465 = vmatpush1.bf16.msra.mxu0 0
    %1466 = vmatprep.subr.bf16.mxu0 0
    %1467 = vmatpush1.bf16.msra.mxu0 0
    %1468 = vmatprep.subr.bf16.mxu0 0
    %1469 = vmatpush1.bf16.msra.mxu0 0
    %1470 = vmatprep.subr.bf16.mxu0 0
    %1471 = vmatpush1.bf16.msra.mxu0 0
    %1472 = vmatprep.subr.bf16.mxu0 0
    %1473 = vmatpush1.bf16.msra.mxu0 0
    %1474 = vmatprep.subr.bf16.mxu0 0
    %1475 = vmatpush1.bf16.msra.mxu0 0
    %1476 = vmatprep.mubr.bf16.mxu0 0
    %1477 = vmatmul.mubr.bf16.gmra.mrb[0].mxu0 %v1377
    %v1478 = vpop.f32.mrb[0].mxu0
    %v1479 = vadd.f32 0.0, %v1478
    %v1480 = vpop.f32.mrb[0].mxu0
    %v1481 = vpop.f32.mrb[0].mxu0
    %v1482 = vpop.f32.mrb[0].mxu0
    %1483 = vdwg.mxu0
    %v1485 = vrot.slane %v1479, 2
    %v1487 = vadd.f32 %v247, %v1485
    %v1488 = vxor.u32 %v1487, 2147483648
    %v1489 = vmul.f32 %v1488, 1.442695
    %v1490 = vpow.pop %v1489
    %v1491 = vadd.f32 %v1490, 1.0
    %v1492 = vrcp.pop %v1491
    %v1493 = vmul.f32 1.0, %v1492
    %v1494 = vtanh.pop %v1487
    %v1496 = vrot.slane %v1315, 7
    %v1498 = vmul.f32 %v1493, %v1496
    %1500 = vrot.lane.b32.xlu0 %v1494, 64
    %v1501 = vpop.permute.xlu0 %1500
    %v1503 = vmul.f32 %v1493, %v1501
    %1505 = vrot.lane.b32.xlu0 %v1503, 32
    %v1506 = vpop.permute.xlu0 %1505
    %v1508 = vadd.f32 %v1498, %v1506
    %v1509 = vtanh.pop %v1508
    %1511 = vrot.lane.b32.xlu0 %v1509, 64
    %v1512 = vpop.permute.xlu0 %1511
    %v1514 = vmul.f32 %v1493, %v1512
    %v1515 = vpack.c.bf16 %v1514, %v1514
    %v1516 = vpack.c.bf16 %v1443, %v1443
    %1518 = vrot.lane.b32.xlu0 %v1516, 32
    %v1519 = vpop.permute.xlu0 %1518
    %v1521 = vsel %vm208, %v1519, 0
    %1523 = vmatprep.subr.bf16.mxu0 0
    %1524 = vmatpush1.bf16.msra.mxu0 %v357
    %1525 = vmatprep.subr.bf16.mxu0 0
    %1526 = vmatpush1.bf16.msra.mxu0 %v358
    %1527 = vmatprep.subr.bf16.mxu0 0
    %1528 = vmatpush1.bf16.msra.mxu0 0
    %1529 = vmatprep.subr.bf16.mxu0 0
    %1530 = vmatpush1.bf16.msra.mxu0 0
    %1531 = vmatprep.subr.bf16.mxu0 0
    %1532 = vmatpush1.bf16.msra.mxu0 0
    %1533 = vmatprep.subr.bf16.mxu0 0
    %1534 = vmatpush1.bf16.msra.mxu0 0
    %1535 = vmatprep.subr.bf16.mxu0 0
    %1536 = vmatpush1.bf16.msra.mxu0 0
    %1537 = vmatprep.subr.bf16.mxu0 0
    %1538 = vmatpush1.bf16.msra.mxu0 0
    %1539 = vmatprep.subr.bf16.mxu0 0
    %1540 = vmatpush1.bf16.msra.mxu0 0
    %1541 = vmatprep.subr.bf16.mxu0 0
    %1542 = vmatpush1.bf16.msra.mxu0 0
    %1543 = vmatprep.subr.bf16.mxu0 0
    %1544 = vmatpush1.bf16.msra.mxu0 0
    %1545 = vmatprep.subr.bf16.mxu0 0
    %1546 = vmatpush1.bf16.msra.mxu0 0
    %1547 = vmatprep.subr.bf16.mxu0 0
    %1548 = vmatpush1.bf16.msra.mxu0 0
    %1549 = vmatprep.subr.bf16.mxu0 0
    %1550 = vmatpush1.bf16.msra.mxu0 0
    %1551 = vmatprep.subr.bf16.mxu0 0
    %1552 = vmatpush1.bf16.msra.mxu0 0
    %1553 = vmatprep.subr.bf16.mxu0 0
    %1554 = vmatpush1.bf16.msra.mxu0 0
    %1555 = vmatprep.mubr.bf16.mxu0 0
    %1556 = vmatmul.mubr.bf16.gmra.mrb[0].mxu0 %v1521
    %v1557 = vpop.f32.mrb[0].mxu0
    %v1558 = vadd.f32 0.0, %v1557
    %v1559 = vpop.f32.mrb[0].mxu0
    %v1560 = vpop.f32.mrb[0].mxu0
    %v1561 = vpop.f32.mrb[0].mxu0
    %1562 = vdwg.mxu0
    %v1564 = vrot.slane %v1515, 3
    %1565 = vrot.lane.b32.xlu0 %v1564, 32
    %v1566 = vpop.permute.xlu0 %1565
    %v1568 = vsel %vm208, %v1566, 0
    %1570 = vmatprep.subr.bf16.mxu0 0
    %1571 = vmatpush1.bf16.msra.mxu0 %v412
    %1572 = vmatprep.subr.bf16.mxu0 0
    %1573 = vmatpush1.bf16.msra.mxu0 %v413
    %1574 = vmatprep.subr.bf16.mxu0 0
    %1575 = vmatpush1.bf16.msra.mxu0 0
    %1576 = vmatprep.subr.bf16.mxu0 0
    %1577 = vmatpush1.bf16.msra.mxu0 0
    %1578 = vmatprep.subr.bf16.mxu0 0
    %1579 = vmatpush1.bf16.msra.mxu0 0
    %1580 = vmatprep.subr.bf16.mxu0 0
    %1581 = vmatpush1.bf16.msra.mxu0 0
    %1582 = vmatprep.subr.bf16.mxu0 0
    %1583 = vmatpush1.bf16.msra.mxu0 0
    %1584 = vmatprep.subr.bf16.mxu0 0
    %1585 = vmatpush1.bf16.msra.mxu0 0
    %1586 = vmatprep.subr.bf16.mxu0 0
    %1587 = vmatpush1.bf16.msra.mxu0 0
    %1588 = vmatprep.subr.bf16.mxu0 0
    %1589 = vmatpush1.bf16.msra.mxu0 0
    %1590 = vmatprep.subr.bf16.mxu0 0
    %1591 = vmatpush1.bf16.msra.mxu0 0
    %1592 = vmatprep.subr.bf16.mxu0 0
    %1593 = vmatpush1.bf16.msra.mxu0 0
    %1594 = vmatprep.subr.bf16.mxu0 0
    %1595 = vmatpush1.bf16.msra.mxu0 0
    %1596 = vmatprep.subr.bf16.mxu0 0
    %1597 = vmatpush1.bf16.msra.mxu0 0
    %1598 = vmatprep.subr.bf16.mxu0 0
    %1599 = vmatpush1.bf16.msra.mxu0 0
    %1600 = vmatprep.subr.bf16.mxu0 0
    %1601 = vmatpush1.bf16.msra.mxu0 0
    %1602 = vmatprep.mubr.bf16.mxu0 0
    %1603 = vmatmul.mubr.bf16.gmra.mrb[0].mxu0 %v1568
    %v1604 = vpop.f32.mrb[0].mxu0
    %v1605 = vadd.f32 %v1558, %v1604
    %v1606 = vpop.f32.mrb[0].mxu0
    %v1607 = vpop.f32.mrb[0].mxu0
    %v1608 = vpop.f32.mrb[0].mxu0
    %1609 = vdwg.mxu0
    %v1610 = vadd.f32 %v1605, %v267
    %v1611 = vxor.u32 %v1610, 2147483648
    %v1612 = vmul.f32 %v1611, 1.442695
    %v1613 = vpow.pop %v1612
    %v1614 = vadd.f32 %v1613, 1.0
    %v1615 = vrcp.pop %v1614
    %v1616 = vmul.f32 1.0, %v1615
    %v1617 = vtanh.pop %v1610
    %v1618 = vmul.f32 %v1616, %v1437
    %1620 = vrot.lane.b32.xlu0 %v1617, 64
    %v1621 = vpop.permute.xlu0 %1620
    %v1623 = vmul.f32 %v1616, %v1621
    %1625 = vrot.lane.b32.xlu0 %v1623, 32
    %v1626 = vpop.permute.xlu0 %1625
    %v1628 = vadd.f32 %v1618, %v1626
    %v1629 = vtanh.pop %v1628
    %1631 = vrot.lane.b32.xlu0 %v1629, 64
    %v1632 = vpop.permute.xlu0 %1631
    %v1634 = vmul.f32 %v1616, %v1632
    %1635 = vmatprep.subr.bf16.mxu0 0
    %1636 = vmatpush1.bf16.msra.mxu0 %v276
    %1637 = vmatprep.subr.bf16.mxu0 0
    %1638 = vmatpush1.bf16.msra.mxu0 %v277
    %1639 = vmatprep.subr.bf16.mxu0 0
    %1640 = vmatpush1.bf16.msra.mxu0 0
    %1641 = vmatprep.subr.bf16.mxu0 0
    %1642 = vmatpush1.bf16.msra.mxu0 0
    %1643 = vmatprep.subr.bf16.mxu0 0
    %1644 = vmatpush1.bf16.msra.mxu0 0
    %1645 = vmatprep.subr.bf16.mxu0 0
    %1646 = vmatpush1.bf16.msra.mxu0 0
    %1647 = vmatprep.subr.bf16.mxu0 0
    %1648 = vmatpush1.bf16.msra.mxu0 0
    %1649 = vmatprep.subr.bf16.mxu0 0
    %1650 = vmatpush1.bf16.msra.mxu0 0
    %1651 = vmatprep.subr.bf16.mxu0 0
    %1652 = vmatpush1.bf16.msra.mxu0 0
    %1653 = vmatprep.subr.bf16.mxu0 0
    %1654 = vmatpush1.bf16.msra.mxu0 0
    %1655 = vmatprep.subr.bf16.mxu0 0
    %1656 = vmatpush1.bf16.msra.mxu0 0
    %1657 = vmatprep.subr.bf16.mxu0 0
    %1658 = vmatpush1.bf16.msra.mxu0 0
    %1659 = vmatprep.subr.bf16.mxu0 0
    %1660 = vmatpush1.bf16.msra.mxu0 0
    %1661 = vmatprep.subr.bf16.mxu0 0
    %1662 = vmatpush1.bf16.msra.mxu0 0
    %1663 = vmatprep.subr.bf16.mxu0 0
    %1664 = vmatpush1.bf16.msra.mxu0 0
    %1665 = vmatprep.subr.bf16.mxu0 0
    %1666 = vmatpush1.bf16.msra.mxu0 0
    %1667 = vmatprep.mubr.bf16.mxu0 0
    %1668 = vmatmul.mubr.bf16.gmra.mrb[0].mxu0 %v1568
    %v1669 = vpop.f32.mrb[0].mxu0
    %v1670 = vadd.f32 0.0, %v1669
    %v1671 = vpop.f32.mrb[0].mxu0
    %v1672 = vpop.f32.mrb[0].mxu0
    %v1673 = vpop.f32.mrb[0].mxu0
    %1674 = vdwg.mxu0
    %v1676 = vrot.slane %v1670, 1
    %v1678 = vadd.f32 %v247, %v1676
    %v1679 = vxor.u32 %v1678, 2147483648
    %v1680 = vmul.f32 %v1679, 1.442695
    %v1681 = vpow.pop %v1680
    %v1682 = vadd.f32 %v1681, 1.0
    %v1683 = vrcp.pop %v1682
    %v1684 = vmul.f32 1.0, %v1683
    %v1685 = vtanh.pop %v1678
    %v1687 = vrot.slane %v1508, 7
    %v1689 = vmul.f32 %v1684, %v1687
    %1691 = vrot.lane.b32.xlu0 %v1685, 64
    %v1692 = vpop.permute.xlu0 %1691
    %v1694 = vmul.f32 %v1684, %v1692
    %1696 = vrot.lane.b32.xlu0 %v1694, 32
    %v1697 = vpop.permute.xlu0 %1696
    %v1699 = vadd.f32 %v1689, %v1697
    %v1700 = vtanh.pop %v1699
    %1702 = vrot.lane.b32.xlu0 %v1700, 64
    %v1703 = vpop.permute.xlu0 %1702
    %v1705 = vmul.f32 %v1684, %v1703
    %v1706 = vpack.c.bf16 %v1705, %v1705
    %v1707 = vpack.c.bf16 %v1634, %v1634
    %1709 = vrot.lane.b32.xlu0 %v1707, 32
    %v1710 = vpop.permute.xlu0 %1709
    %v1712 = vsel %vm208, %v1710, 0
    %1714 = vmatprep.subr.bf16.mxu0 0
    %1715 = vmatpush1.bf16.msra.mxu0 %v357
    %1716 = vmatprep.subr.bf16.mxu0 0
    %1717 = vmatpush1.bf16.msra.mxu0 %v358
    %1718 = vmatprep.subr.bf16.mxu0 0
    %1719 = vmatpush1.bf16.msra.mxu0 0
    %1720 = vmatprep.subr.bf16.mxu0 0
    %1721 = vmatpush1.bf16.msra.mxu0 0
    %1722 = vmatprep.subr.bf16.mxu0 0
    %1723 = vmatpush1.bf16.msra.mxu0 0
    %1724 = vmatprep.subr.bf16.mxu0 0
    %1725 = vmatpush1.bf16.msra.mxu0 0
    %1726 = vmatprep.subr.bf16.mxu0 0
    %1727 = vmatpush1.bf16.msra.mxu0 0
    %1728 = vmatprep.subr.bf16.mxu0 0
    %1729 = vmatpush1.bf16.msra.mxu0 0
    %1730 = vmatprep.subr.bf16.mxu0 0
    %1731 = vmatpush1.bf16.msra.mxu0 0
    %1732 = vmatprep.subr.bf16.mxu0 0
    %1733 = vmatpush1.bf16.msra.mxu0 0
    %1734 = vmatprep.subr.bf16.mxu0 0
    %1735 = vmatpush1.bf16.msra.mxu0 0
    %1736 = vmatprep.subr.bf16.mxu0 0
    %1737 = vmatpush1.bf16.msra.mxu0 0
    %1738 = vmatprep.subr.bf16.mxu0 0
    %1739 = vmatpush1.bf16.msra.mxu0 0
    %1740 = vmatprep.subr.bf16.mxu0 0
    %1741 = vmatpush1.bf16.msra.mxu0 0
    %1742 = vmatprep.subr.bf16.mxu0 0
    %1743 = vmatpush1.bf16.msra.mxu0 0
    %1744 = vmatprep.subr.bf16.mxu0 0
    %1745 = vmatpush1.bf16.msra.mxu0 0
    %1746 = vmatprep.mubr.bf16.mxu0 0
    %1747 = vmatmul.mubr.bf16.gmra.mrb[0].mxu0 %v1712
    %v1748 = vpop.f32.mrb[0].mxu0
    %v1749 = vadd.f32 0.0, %v1748
    %v1750 = vpop.f32.mrb[0].mxu0
    %v1751 = vpop.f32.mrb[0].mxu0
    %v1752 = vpop.f32.mrb[0].mxu0
    %1753 = vdwg.mxu0
    %v1755 = vshrl.u32 %v1706, 16
    %v1757 = vrot.slane %v1755, 3
    %1758 = vrot.lane.b32.xlu0 %v1757, 32
    %v1759 = vpop.permute.xlu0 %1758
    %v1761 = vsel %vm208, %v1759, 0
    %1763 = vmatprep.subr.bf16.mxu0 0
    %1764 = vmatpush1.bf16.msra.mxu0 %v412
    %1765 = vmatprep.subr.bf16.mxu0 0
    %1766 = vmatpush1.bf16.msra.mxu0 %v413
    %1767 = vmatprep.subr.bf16.mxu0 0
    %1768 = vmatpush1.bf16.msra.mxu0 0
    %1769 = vmatprep.subr.bf16.mxu0 0
    %1770 = vmatpush1.bf16.msra.mxu0 0
    %1771 = vmatprep.subr.bf16.mxu0 0
    %1772 = vmatpush1.bf16.msra.mxu0 0
    %1773 = vmatprep.subr.bf16.mxu0 0
    %1774 = vmatpush1.bf16.msra.mxu0 0
    %1775 = vmatprep.subr.bf16.mxu0 0
    %1776 = vmatpush1.bf16.msra.mxu0 0
    %1777 = vmatprep.subr.bf16.mxu0 0
    %1778 = vmatpush1.bf16.msra.mxu0 0
    %1779 = vmatprep.subr.bf16.mxu0 0
    %1780 = vmatpush1.bf16.msra.mxu0 0
    %1781 = vmatprep.subr.bf16.mxu0 0
    %1782 = vmatpush1.bf16.msra.mxu0 0
    %1783 = vmatprep.subr.bf16.mxu0 0
    %1784 = vmatpush1.bf16.msra.mxu0 0
    %1785 = vmatprep.subr.bf16.mxu0 0
    %1786 = vmatpush1.bf16.msra.mxu0 0
    %1787 = vmatprep.subr.bf16.mxu0 0
    %1788 = vmatpush1.bf16.msra.mxu0 0
    %1789 = vmatprep.subr.bf16.mxu0 0
    %1790 = vmatpush1.bf16.msra.mxu0 0
    %1791 = vmatprep.subr.bf16.mxu0 0
    %1792 = vmatpush1.bf16.msra.mxu0 0
    %1793 = vmatprep.subr.bf16.mxu0 0
    %1794 = vmatpush1.bf16.msra.mxu0 0
    %1795 = vmatprep.mubr.bf16.mxu0 0
    %1796 = vmatmul.mubr.bf16.gmra.mrb[0].mxu0 %v1761
    %v1797 = vpop.f32.mrb[0].mxu0
    %v1798 = vadd.f32 %v1749, %v1797
    %v1799 = vpop.f32.mrb[0].mxu0
    %v1800 = vpop.f32.mrb[0].mxu0
    %v1801 = vpop.f32.mrb[0].mxu0
    %1802 = vdwg.mxu0
    %v1803 = vadd.f32 %v1798, %v267
    %v1804 = vxor.u32 %v1803, 2147483648
    %v1805 = vmul.f32 %v1804, 1.442695
    %v1806 = vpow.pop %v1805
    %v1807 = vadd.f32 %v1806, 1.0
    %v1808 = vrcp.pop %v1807
    %v1809 = vmul.f32 1.0, %v1808
    %v1810 = vtanh.pop %v1803
    %v1811 = vmul.f32 %v1809, %v1628
    %1813 = vrot.lane.b32.xlu0 %v1810, 64
    %v1814 = vpop.permute.xlu0 %1813
    %v1816 = vmul.f32 %v1809, %v1814
    %1818 = vrot.lane.b32.xlu0 %v1816, 32
    %v1819 = vpop.permute.xlu0 %1818
    %v1821 = vadd.f32 %v1811, %v1819
    %v1822 = vtanh.pop %v1821
    %1824 = vrot.lane.b32.xlu0 %v1822, 64
    %v1825 = vpop.permute.xlu0 %1824
    %v1827 = vmul.f32 %v1809, %v1825
    %v1829 = vrot.slane %v1705, 7
    %v1832 = vrot.slane %v1827, 7
    %vm1834 = vcmask 1040384
    %v1835 = vsel %vm1834, %v1829, %v1832
    %v1836 = vpack.c.bf16 %v1835, %v1835
    %v1837 = vld [vmem:[#allocation8] sm:$0xf]
    %v1838 = vld [vmem:[#allocation8 + $0x4] sm:$0xf]
    %v1839 = vld [vmem:[#allocation8 + $0x8] sm:$0xf]
    %v1840 = vld [vmem:[#allocation8 + $0xc] sm:$0xf]
    %v1841 = vld [vmem:[%s5] sm:$0x1]
    %v1843 = vlaneseq
    %v1844 = vshrl.u32 %v1843, 7
    %v1845 = vsub.s32 0, %v1844
    %v1846 = vrot.slane %v1841, %v1845
    %1849 = vrot.lane.b32.xlu0 %v1836, 32
    %v1850 = vpop.permute.xlu0 %1849
    %v1855 = vunpack.c.l.b16 %v1837
    %v1856 = vunpack.c.l.b16 %v1838
    %v1857 = vunpack.c.l.b16 %v1839
    %v1858 = vunpack.c.l.b16 %v1840
    %v1859 = vpack.c.b16 %v1856, %v1855
    %v1860 = vpack.c.b16 %v1858, %v1857
    %v1864 = vsel %vm208, %v1850, 0
    %1866 = vmatprep.subr.bf16.mxu0 0
    %1867 = vmatpush1.bf16.msra.mxu0 %v1859
    %1868 = vmatprep.subr.bf16.mxu0 0
    %1869 = vmatpush1.bf16.msra.mxu0 %v1860
    %1870 = vmatprep.subr.bf16.mxu0 0
    %1871 = vmatpush1.bf16.msra.mxu0 0
    %1872 = vmatprep.subr.bf16.mxu0 0
    %1873 = vmatpush1.bf16.msra.mxu0 0
    %1874 = vmatprep.subr.bf16.mxu0 0
    %1875 = vmatpush1.bf16.msra.mxu0 0
    %1876 = vmatprep.subr.bf16.mxu0 0
    %1877 = vmatpush1.bf16.msra.mxu0 0
    %1878 = vmatprep.subr.bf16.mxu0 0
    %1879 = vmatpush1.bf16.msra.mxu0 0
    %1880 = vmatprep.subr.bf16.mxu0 0
    %1881 = vmatpush1.bf16.msra.mxu0 0
    %1882 = vmatprep.subr.bf16.mxu0 0
    %1883 = vmatpush1.bf16.msra.mxu0 0
    %1884 = vmatprep.subr.bf16.mxu0 0
    %1885 = vmatpush1.bf16.msra.mxu0 0
    %1886 = vmatprep.subr.bf16.mxu0 0
    %1887 = vmatpush1.bf16.msra.mxu0 0
    %1888 = vmatprep.subr.bf16.mxu0 0
    %1889 = vmatpush1.bf16.msra.mxu0 0
    %1890 = vmatprep.subr.bf16.mxu0 0
    %1891 = vmatpush1.bf16.msra.mxu0 0
    %1892 = vmatprep.subr.bf16.mxu0 0
    %1893 = vmatpush1.bf16.msra.mxu0 0
    %1894 = vmatprep.subr.bf16.mxu0 0
    %1895 = vmatpush1.bf16.msra.mxu0 0
    %1896 = vmatprep.subr.bf16.mxu0 0
    %1897 = vmatpush1.bf16.msra.mxu0 0
    %1898 = vmatprep.mubr.bf16.mxu0 0
    %1899 = vmatmul.mubr.bf16.gmra.mrb[0].mxu0 %v1864
    %v1900 = vpop.f32.mrb[0].mxu0
    %v1901 = vadd.f32 %v1846, %v1900
    %v1902 = vpop.f32.mrb[0].mxu0
    %v1903 = vpop.f32.mrb[0].mxu0
    %v1904 = vpop.f32.mrb[0].mxu0
    %1905 = vdwg.mxu0
    %v1906 = vld [vmem:[%s6] sm:$0xf]
    %v1907 = vld [vmem:[%s6 + $0x4] sm:$0xf]
    %v1908 = vld [vmem:[%s6 + $0x8] sm:$0xf]
    %v1909 = vld [vmem:[%s6 + $0xc] sm:$0xf]
    %v1910 = vld [vmem:[#allocation10] sm:$0x1]
    %v1912 = vlaneseq
    %v1913 = vshrl.u32 %v1912, 7
    %v1914 = vsub.s32 0, %v1913
    %v1915 = vrot.slane %v1910, %v1914
    %v1921 = vunpack.c.l.b16 %v1906
    %v1922 = vunpack.c.l.b16 %v1907
    %v1923 = vunpack.c.l.b16 %v1908
    %v1924 = vunpack.c.l.b16 %v1909
    %v1925 = vpack.c.b16 %v1922, %v1921
    %v1926 = vpack.c.b16 %v1924, %v1923
    %1929 = vmatprep.subr.bf16.mxu0 0
    %1930 = vmatpush1.bf16.msra.mxu0 %v1925
    %1931 = vmatprep.subr.bf16.mxu0 0
    %1932 = vmatpush1.bf16.msra.mxu0 %v1926
    %1933 = vmatprep.subr.bf16.mxu0 0
    %1934 = vmatpush1.bf16.msra.mxu0 0
    %1935 = vmatprep.subr.bf16.mxu0 0
    %1936 = vmatpush1.bf16.msra.mxu0 0
    %1937 = vmatprep.subr.bf16.mxu0 0
    %1938 = vmatpush1.bf16.msra.mxu0 0
    %1939 = vmatprep.subr.bf16.mxu0 0
    %1940 = vmatpush1.bf16.msra.mxu0 0
    %1941 = vmatprep.subr.bf16.mxu0 0
    %1942 = vmatpush1.bf16.msra.mxu0 0
    %1943 = vmatprep.subr.bf16.mxu0 0
    %1944 = vmatpush1.bf16.msra.mxu0 0
    %1945 = vmatprep.subr.bf16.mxu0 0
    %1946 = vmatpush1.bf16.msra.mxu0 0
    %1947 = vmatprep.subr.bf16.mxu0 0
    %1948 = vmatpush1.bf16.msra.mxu0 0
    %1949 = vmatprep.subr.bf16.mxu0 0
    %1950 = vmatpush1.bf16.msra.mxu0 0
    %1951 = vmatprep.subr.bf16.mxu0 0
    %1952 = vmatpush1.bf16.msra.mxu0 0
    %1953 = vmatprep.subr.bf16.mxu0 0
    %1954 = vmatpush1.bf16.msra.mxu0 0
    %1955 = vmatprep.subr.bf16.mxu0 0
    %1956 = vmatpush1.bf16.msra.mxu0 0
    %1957 = vmatprep.subr.bf16.mxu0 0
    %1958 = vmatpush1.bf16.msra.mxu0 0
    %1959 = vmatprep.subr.bf16.mxu0 0
    %1960 = vmatpush1.bf16.msra.mxu0 0
    %1961 = vmatprep.mubr.bf16.mxu0 0
    %1962 = vmatmul.mubr.bf16.gmra.mrb[0].mxu0 %v1864
    %v1963 = vpop.f32.mrb[0].mxu0
    %v1964 = vadd.f32 %v1915, %v1963
    %v1965 = vpop.f32.mrb[0].mxu0
    %v1966 = vpop.f32.mrb[0].mxu0
    %v1967 = vpop.f32.mrb[0].mxu0
    %1968 = vdwg.mxu0
    %v1969 = vmax.f32 %v1964, 0.0
    %vm1970 = vcmp.ne.f32.partialorder %v1964, %v1964
    %v1971 = vadd.f32 %v1964, 0.0
    %v1972 = vand.u32 2147483647, %v1964
    %v1973 = vsub.f32 0.0, %v1972
    %v1974 = vmul.f32 %v1973, 1.442695
    %v1975 = vpow.pop %v1974
    %v1976 = vadd.f32 %v1975, 1.0
    %v1977 = vlog2.pop %v1976
    %v1978 = vmul.f32 %v1977, 0.6931472
    %v1979 = vmul.f32 -0.5, %v1975
    %v1980 = vadd.f32 %v1979, 1.0
    %v1981 = vmul.f32 %v1980, %v1975
    %v1982 = vand.u32 2147483647, %v1975
    %vm1983 = vcmp.lt.f32.partialorder %v1982, 0.0004427343
    %v1984 = vsel %vm1983, %v1981, %v1978
    %v1985 = vadd.f32 %v1969, %v1984
    %v1986 = vsel %vm1970, %v1971, %v1985
    %v1987 = vlog2.pop %v1986
    %v1988 = vmul.f32 %v1987, 0.6931472
    %vm1989 = vcmask 254976
    %1990 = vst.msk [vmem:[#allocation19] sm:$0x3] %vm1989, %v1901
    %1991 = vst.msk [vmem:[#allocation20] sm:$0x3] %vm1989, %v1988
    %v1992 = vld [vmem:[%s8] sm:$0x3]
    %v1993 = vmul.f32 %v1988, 0.5
    %v1994 = vmul.f32 %v1993, 1.442695
    %v1995 = vpow.pop %v1994
    %v1996 = vmul.f32 %v1992, %v1995
    %v1997 = vadd.f32 %v1901, %v1996
    %v1998 = vld [vmem:[#allocation11] sm:$0xf]
    %v1999 = vld [vmem:[#allocation11 + $0x4] sm:$0xf]
    %v2000 = vld [vmem:[#allocation11 + $0x8] sm:$0xf]
    %v2001 = vld [vmem:[#allocation11 + $0xc] sm:$0xf]
    %s2002 = scalar_lea.vmem [#allocation11], 16
    %v2003 = vld [vmem:[%s2002] sm:$0xf]
    %v2004 = vld [vmem:[%s2002 + $0x4] sm:$0xf]
    %v2005 = vld [vmem:[%s2002 + $0x8] sm:$0xf]
    %v2006 = vld [vmem:[%s2002 + $0xc] sm:$0xf]
    %v2007 = vld [vmem:[#allocation13] sm:$0xf]
    %v2008 = vld [vmem:[#allocation13 + $0x4] sm:$0xf]
    %v2009 = vld [vmem:[#allocation13 + $0x8] sm:$0xf]
    %v2010 = vld [vmem:[#allocation13 + $0xc] sm:$0xf]
    %v2011 = vld [vmem:[#allocation14] sm:$0xf]
    %v2012 = vld [vmem:[#allocation14 + $0x4] sm:$0xf]
    %v2013 = vld [vmem:[#allocation14 + $0x8] sm:$0xf]
    %v2014 = vld [vmem:[#allocation14 + $0xc] sm:$0xf]
    %v2015 = vld [vmem:[#allocation16] sm:$0x1]
    %s2016 = scalar_lea.vmem [#allocation16], 1
    %v2017 = vld [vmem:[%s2016] sm:$0x1]
    %v2018 = vld [vmem:[#allocation17] sm:$0x1]
    %v2019 = vpack.c.bf16 %v1997, %v1997
    %v2024 = vunpack.c.l.b16 %v1998
    %v2025 = vunpack.c.l.b16 %v1999
    %v2026 = vunpack.c.l.b16 %v2000
    %v2027 = vunpack.c.l.b16 %v2001
    %v2028 = vpack.c.b16 %v2025, %v2024
    %v2029 = vpack.c.b16 %v2027, %v2026
    %v2033 = vsel %vm208, %v2019, 0
    %2035 = vmatprep.subr.bf16.mxu0 0
    %2036 = vmatpush1.bf16.msra.mxu0 %v2028
    %2037 = vmatprep.subr.bf16.mxu0 0
    %2038 = vmatpush1.bf16.msra.mxu0 %v2029
    %2039 = vmatprep.subr.bf16.mxu0 0
    %2040 = vmatpush1.bf16.msra.mxu0 0
    %2041 = vmatprep.subr.bf16.mxu0 0
    %2042 = vmatpush1.bf16.msra.mxu0 0
    %2043 = vmatprep.subr.bf16.mxu0 0
    %2044 = vmatpush1.bf16.msra.mxu0 0
    %2045 = vmatprep.subr.bf16.mxu0 0
    %2046 = vmatpush1.bf16.msra.mxu0 0
    %2047 = vmatprep.subr.bf16.mxu0 0
    %2048 = vmatpush1.bf16.msra.mxu0 0
    %2049 = vmatprep.subr.bf16.mxu0 0
    %2050 = vmatpush1.bf16.msra.mxu0 0
    %2051 = vmatprep.subr.bf16.mxu0 0
    %2052 = vmatpush1.bf16.msra.mxu0 0
    %2053 = vmatprep.subr.bf16.mxu0 0
    %2054 = vmatpush1.bf16.msra.mxu0 0
    %2055 = vmatprep.subr.bf16.mxu0 0
    %2056 = vmatpush1.bf16.msra.mxu0 0
    %2057 = vmatprep.subr.bf16.mxu0 0
    %2058 = vmatpush1.bf16.msra.mxu0 0
    %2059 = vmatprep.subr.bf16.mxu0 0
    %2060 = vmatpush1.bf16.msra.mxu0 0
    %2061 = vmatprep.subr.bf16.mxu0 0
    %2062 = vmatpush1.bf16.msra.mxu0 0
    %2063 = vmatprep.subr.bf16.mxu0 0
    %2064 = vmatpush1.bf16.msra.mxu0 0
    %2065 = vmatprep.subr.bf16.mxu0 0
    %2066 = vmatpush1.bf16.msra.mxu0 0
    %2067 = vmatprep.mubr.bf16.mxu0 0
    %2068 = vmatmul.mubr.bf16.gmra.mrb[0].mxu0 %v2033
    %v2069 = vpop.f32.mrb[0].mxu0
    %v2070 = vadd.f32 %v2015, %v2069
    %v2071 = vpop.f32.mrb[0].mxu0
    %v2072 = vpop.f32.mrb[0].mxu0
    %v2073 = vpop.f32.mrb[0].mxu0
    %2074 = vdwg.mxu0
    %v2075 = vxor.u32 %v2070, 2147483648
    %v2076 = vmul.f32 %v2075, 1.442695
    %v2077 = vpow.pop %v2076
    %v2078 = vadd.f32 %v2077, 1.0
    %v2079 = vrcp.pop %v2078
    %v2080 = vmul.f32 1.0, %v2079
    %v2081 = vtanh.pop %v2070
    %v2083 = vrot.slane %v1699, 7
    %v2085 = vmul.f32 %v2080, %v2083
    %2087 = vrot.lane.b32.xlu0 %v2081, 64
    %v2088 = vpop.permute.xlu0 %2087
    %v2090 = vmul.f32 %v2080, %v2088
    %2092 = vrot.lane.b32.xlu0 %v2090, 32
    %v2093 = vpop.permute.xlu0 %2092
    %v2095 = vadd.f32 %v2085, %v2093
    %v2096 = vtanh.pop %v2095
    %2098 = vrot.lane.b32.xlu0 %v2096, 64
    %v2099 = vpop.permute.xlu0 %2098
    %v2101 = vmul.f32 %v2080, %v2099
    %v2102 = vpack.c.bf16 %v2101, %v2101
    %v2103 = vshrl.u32 %v2019, 16
    %v2109 = vunpack.c.l.b16 %v2003
    %v2110 = vunpack.c.l.b16 %v2004
    %v2111 = vunpack.c.l.b16 %v2005
    %v2112 = vunpack.c.l.b16 %v2006
    %v2113 = vpack.c.b16 %v2110, %v2109
    %v2114 = vpack.c.b16 %v2112, %v2111
    %v2118 = vsel %vm208, %v2103, 0
    %2120 = vmatprep.subr.bf16.mxu0 0
    %2121 = vmatpush1.bf16.msra.mxu0 %v2113
    %2122 = vmatprep.subr.bf16.mxu0 0
    %2123 = vmatpush1.bf16.msra.mxu0 %v2114
    %2124 = vmatprep.subr.bf16.mxu0 0
    %2125 = vmatpush1.bf16.msra.mxu0 0
    %2126 = vmatprep.subr.bf16.mxu0 0
    %2127 = vmatpush1.bf16.msra.mxu0 0
    %2128 = vmatprep.subr.bf16.mxu0 0
    %2129 = vmatpush1.bf16.msra.mxu0 0
    %2130 = vmatprep.subr.bf16.mxu0 0
    %2131 = vmatpush1.bf16.msra.mxu0 0
    %2132 = vmatprep.subr.bf16.mxu0 0
    %2133 = vmatpush1.bf16.msra.mxu0 0
    %2134 = vmatprep.subr.bf16.mxu0 0
    %2135 = vmatpush1.bf16.msra.mxu0 0
    %2136 = vmatprep.subr.bf16.mxu0 0
    %2137 = vmatpush1.bf16.msra.mxu0 0
    %2138 = vmatprep.subr.bf16.mxu0 0
    %2139 = vmatpush1.bf16.msra.mxu0 0
    %2140 = vmatprep.subr.bf16.mxu0 0
    %2141 = vmatpush1.bf16.msra.mxu0 0
    %2142 = vmatprep.subr.bf16.mxu0 0
    %2143 = vmatpush1.bf16.msra.mxu0 0
    %2144 = vmatprep.subr.bf16.mxu0 0
    %2145 = vmatpush1.bf16.msra.mxu0 0
    %2146 = vmatprep.subr.bf16.mxu0 0
    %2147 = vmatpush1.bf16.msra.mxu0 0
    %2148 = vmatprep.subr.bf16.mxu0 0
    %2149 = vmatpush1.bf16.msra.mxu0 0
    %2150 = vmatprep.subr.bf16.mxu0 0
    %2151 = vmatpush1.bf16.msra.mxu0 0
    %2152 = vmatprep.mubr.bf16.mxu0 0
    %2153 = vmatmul.mubr.bf16.gmra.mrb[0].mxu0 %v2118
    %v2154 = vpop.f32.mrb[0].mxu0
    %v2155 = vadd.f32 0.0, %v2154
    %v2156 = vpop.f32.mrb[0].mxu0
    %v2157 = vpop.f32.mrb[0].mxu0
    %v2158 = vpop.f32.mrb[0].mxu0
    %2159 = vdwg.mxu0
    %2161 = vrot.lane.b32.xlu0 %v2102, 32
    %v2162 = vpop.permute.xlu0 %2161
    %v2167 = vunpack.c.l.b16 %v2007
    %v2168 = vunpack.c.l.b16 %v2008
    %v2169 = vunpack.c.l.b16 %v2009
    %v2170 = vunpack.c.l.b16 %v2010
    %v2171 = vpack.c.b16 %v2168, %v2167
    %v2172 = vpack.c.b16 %v2170, %v2169
    %v2176 = vsel %vm208, %v2162, 0
    %2178 = vmatprep.subr.bf16.mxu0 0
    %2179 = vmatpush1.bf16.msra.mxu0 %v2171
    %2180 = vmatprep.subr.bf16.mxu0 0
    %2181 = vmatpush1.bf16.msra.mxu0 %v2172
    %2182 = vmatprep.subr.bf16.mxu0 0
    %2183 = vmatpush1.bf16.msra.mxu0 0
    %2184 = vmatprep.subr.bf16.mxu0 0
    %2185 = vmatpush1.bf16.msra.mxu0 0
    %2186 = vmatprep.subr.bf16.mxu0 0
    %2187 = vmatpush1.bf16.msra.mxu0 0
    %2188 = vmatprep.subr.bf16.mxu0 0
    %2189 = vmatpush1.bf16.msra.mxu0 0
    %2190 = vmatprep.subr.bf16.mxu0 0
    %2191 = vmatpush1.bf16.msra.mxu0 0
    %2192 = vmatprep.subr.bf16.mxu0 0
    %2193 = vmatpush1.bf16.msra.mxu0 0
    %2194 = vmatprep.subr.bf16.mxu0 0
    %2195 = vmatpush1.bf16.msra.mxu0 0
    %2196 = vmatprep.subr.bf16.mxu0 0
    %2197 = vmatpush1.bf16.msra.mxu0 0
    %2198 = vmatprep.subr.bf16.mxu0 0
    %2199 = vmatpush1.bf16.msra.mxu0 0
    %2200 = vmatprep.subr.bf16.mxu0 0
    %2201 = vmatpush1.bf16.msra.mxu0 0
    %2202 = vmatprep.subr.bf16.mxu0 0
    %2203 = vmatpush1.bf16.msra.mxu0 0
    %2204 = vmatprep.subr.bf16.mxu0 0
    %2205 = vmatpush1.bf16.msra.mxu0 0
    %2206 = vmatprep.subr.bf16.mxu0 0
    %2207 = vmatpush1.bf16.msra.mxu0 0
    %2208 = vmatprep.subr.bf16.mxu0 0
    %2209 = vmatpush1.bf16.msra.mxu0 0
    %2210 = vmatprep.mubr.bf16.mxu0 0
    %2211 = vmatmul.mubr.bf16.gmra.mrb[0].mxu0 %v2176
    %v2212 = vpop.f32.mrb[0].mxu0
    %v2213 = vadd.f32 %v2155, %v2212
    %v2214 = vpop.f32.mrb[0].mxu0
    %v2215 = vpop.f32.mrb[0].mxu0
    %v2216 = vpop.f32.mrb[0].mxu0
    %2217 = vdwg.mxu0
    %v2218 = vadd.f32 %v2213, %v2017
    %v2219 = vxor.u32 %v2218, 2147483648
    %v2220 = vmul.f32 %v2219, 1.442695
    %v2221 = vpow.pop %v2220
    %v2222 = vadd.f32 %v2221, 1.0
    %v2223 = vrcp.pop %v2222
    %v2224 = vmul.f32 1.0, %v2223
    %v2225 = vtanh.pop %v2218
    %v2226 = vmul.f32 %v2224, %v1821
    %2228 = vrot.lane.b32.xlu0 %v2225, 64
    %v2229 = vpop.permute.xlu0 %2228
    %v2231 = vmul.f32 %v2224, %v2229
    %2233 = vrot.lane.b32.xlu0 %v2231, 32
    %v2234 = vpop.permute.xlu0 %2233
    %v2236 = vadd.f32 %v2226, %v2234
    %v2237 = vtanh.pop %v2236
    %2239 = vrot.lane.b32.xlu0 %v2237, 64
    %v2240 = vpop.permute.xlu0 %2239
    %v2242 = vmul.f32 %v2224, %v2240
    %v2243 = vpack.c.bf16 %v2242, %v2242
    %2244 = vmatprep.subr.bf16.mxu0 0
    %2245 = vmatpush1.bf16.msra.mxu0 %v2028
    %2246 = vmatprep.subr.bf16.mxu0 0
    %2247 = vmatpush1.bf16.msra.mxu0 %v2029
    %2248 = vmatprep.subr.bf16.mxu0 0
    %2249 = vmatpush1.bf16.msra.mxu0 0
    %2250 = vmatprep.subr.bf16.mxu0 0
    %2251 = vmatpush1.bf16.msra.mxu0 0
    %2252 = vmatprep.subr.bf16.mxu0 0
    %2253 = vmatpush1.bf16.msra.mxu0 0
    %2254 = vmatprep.subr.bf16.mxu0 0
    %2255 = vmatpush1.bf16.msra.mxu0 0
    %2256 = vmatprep.subr.bf16.mxu0 0
    %2257 = vmatpush1.bf16.msra.mxu0 0
    %2258 = vmatprep.subr.bf16.mxu0 0
    %2259 = vmatpush1.bf16.msra.mxu0 0
    %2260 = vmatprep.subr.bf16.mxu0 0
    %2261 = vmatpush1.bf16.msra.mxu0 0
    %2262 = vmatprep.subr.bf16.mxu0 0
    %2263 = vmatpush1.bf16.msra.mxu0 0
    %2264 = vmatprep.subr.bf16.mxu0 0
    %2265 = vmatpush1.bf16.msra.mxu0 0
    %2266 = vmatprep.subr.bf16.mxu0 0
    %2267 = vmatpush1.bf16.msra.mxu0 0
    %2268 = vmatprep.subr.bf16.mxu0 0
    %2269 = vmatpush1.bf16.msra.mxu0 0
    %2270 = vmatprep.subr.bf16.mxu0 0
    %2271 = vmatpush1.bf16.msra.mxu0 0
    %2272 = vmatprep.subr.bf16.mxu0 0
    %2273 = vmatpush1.bf16.msra.mxu0 0
    %2274 = vmatprep.subr.bf16.mxu0 0
    %2275 = vmatpush1.bf16.msra.mxu0 0
    %2276 = vmatprep.mubr.bf16.mxu0 0
    %2277 = vmatmul.mubr.bf16.gmra.mrb[0].mxu0 %v2176
    %v2278 = vpop.f32.mrb[0].mxu0
    %v2279 = vadd.f32 0.0, %v2278
    %v2280 = vpop.f32.mrb[0].mxu0
    %v2281 = vpop.f32.mrb[0].mxu0
    %v2282 = vpop.f32.mrb[0].mxu0
    %2283 = vdwg.mxu0
    %2285 = vrot.lane.b32.xlu0 %v2243, 32
    %v2286 = vpop.permute.xlu0 %2285
    %v2291 = vunpack.c.l.b16 %v2011
    %v2292 = vunpack.c.l.b16 %v2012
    %v2293 = vunpack.c.l.b16 %v2013
    %v2294 = vunpack.c.l.b16 %v2014
    %v2295 = vpack.c.b16 %v2292, %v2291
    %v2296 = vpack.c.b16 %v2294, %v2293
    %v2300 = vsel %vm208, %v2286, 0
    %2302 = vmatprep.subr.bf16.mxu0 0
    %2303 = vmatpush1.bf16.msra.mxu0 %v2295
    %2304 = vmatprep.subr.bf16.mxu0 0
    %2305 = vmatpush1.bf16.msra.mxu0 %v2296
    %2306 = vmatprep.subr.bf16.mxu0 0
    %2307 = vmatpush1.bf16.msra.mxu0 0
    %2308 = vmatprep.subr.bf16.mxu0 0
    %2309 = vmatpush1.bf16.msra.mxu0 0
    %2310 = vmatprep.subr.bf16.mxu0 0
    %2311 = vmatpush1.bf16.msra.mxu0 0
    %2312 = vmatprep.subr.bf16.mxu0 0
    %2313 = vmatpush1.bf16.msra.mxu0 0
    %2314 = vmatprep.subr.bf16.mxu0 0
    %2315 = vmatpush1.bf16.msra.mxu0 0
    %2316 = vmatprep.subr.bf16.mxu0 0
    %2317 = vmatpush1.bf16.msra.mxu0 0
    %2318 = vmatprep.subr.bf16.mxu0 0
    %2319 = vmatpush1.bf16.msra.mxu0 0
    %2320 = vmatprep.subr.bf16.mxu0 0
    %2321 = vmatpush1.bf16.msra.mxu0 0
    %2322 = vmatprep.subr.bf16.mxu0 0
    %2323 = vmatpush1.bf16.msra.mxu0 0
    %2324 = vmatprep.subr.bf16.mxu0 0
    %2325 = vmatpush1.bf16.msra.mxu0 0
    %2326 = vmatprep.subr.bf16.mxu0 0
    %2327 = vmatpush1.bf16.msra.mxu0 0
    %2328 = vmatprep.subr.bf16.mxu0 0
    %2329 = vmatpush1.bf16.msra.mxu0 0
    %2330 = vmatprep.subr.bf16.mxu0 0
    %2331 = vmatpush1.bf16.msra.mxu0 0
    %2332 = vmatprep.subr.bf16.mxu0 0
    %2333 = vmatpush1.bf16.msra.mxu0 0
    %2334 = vmatprep.mubr.bf16.mxu0 0
    %2335 = vmatmul.mubr.bf16.gmra.mrb[0].mxu0 %v2300
    %v2336 = vpop.f32.mrb[0].mxu0
    %v2337 = vadd.f32 %v2279, %v2336
    %v2338 = vpop.f32.mrb[0].mxu0
    %v2339 = vpop.f32.mrb[0].mxu0
    %v2340 = vpop.f32.mrb[0].mxu0
    %2341 = vdwg.mxu0
    %v2342 = vadd.f32 %v2337, %v2018
    %v2343 = vxor.u32 %v2342, 2147483648
    %v2344 = vmul.f32 %v2343, 1.442695
    %v2345 = vpow.pop %v2344
    %v2346 = vadd.f32 %v2345, 1.0
    %v2347 = vrcp.pop %v2346
    %v2348 = vmul.f32 1.0, %v2347
    %v2349 = vtanh.pop %v2342
    %v2350 = vmul.f32 %v2348, %v2095
    %2352 = vrot.lane.b32.xlu0 %v2349, 64
    %v2353 = vpop.permute.xlu0 %2352
    %v2355 = vmul.f32 %v2348, %v2353
    %2357 = vrot.lane.b32.xlu0 %v2355, 32
    %v2358 = vpop.permute.xlu0 %2357
    %v2360 = vadd.f32 %v2350, %v2358
    %v2361 = vtanh.pop %v2360
    %2363 = vrot.lane.b32.xlu0 %v2361, 64
    %v2364 = vpop.permute.xlu0 %2363
    %v2366 = vmul.f32 %v2348, %v2364
    %v2367 = vpack.c.bf16 %v2366, %v2366
    %2368 = vmatprep.subr.bf16.mxu0 0
    %2369 = vmatpush1.bf16.msra.mxu0 %v2113
    %2370 = vmatprep.subr.bf16.mxu0 0
    %2371 = vmatpush1.bf16.msra.mxu0 %v2114
    %2372 = vmatprep.subr.bf16.mxu0 0
    %2373 = vmatpush1.bf16.msra.mxu0 0
    %2374 = vmatprep.subr.bf16.mxu0 0
    %2375 = vmatpush1.bf16.msra.mxu0 0
    %2376 = vmatprep.subr.bf16.mxu0 0
    %2377 = vmatpush1.bf16.msra.mxu0 0
    %2378 = vmatprep.subr.bf16.mxu0 0
    %2379 = vmatpush1.bf16.msra.mxu0 0
    %2380 = vmatprep.subr.bf16.mxu0 0
    %2381 = vmatpush1.bf16.msra.mxu0 0
    %2382 = vmatprep.subr.bf16.mxu0 0
    %2383 = vmatpush1.bf16.msra.mxu0 0
    %2384 = vmatprep.subr.bf16.mxu0 0
    %2385 = vmatpush1.bf16.msra.mxu0 0
    %2386 = vmatprep.subr.bf16.mxu0 0
    %2387 = vmatpush1.bf16.msra.mxu0 0
    %2388 = vmatprep.subr.bf16.mxu0 0
    %2389 = vmatpush1.bf16.msra.mxu0 0
    %2390 = vmatprep.subr.bf16.mxu0 0
    %2391 = vmatpush1.bf16.msra.mxu0 0
    %2392 = vmatprep.subr.bf16.mxu0 0
    %2393 = vmatpush1.bf16.msra.mxu0 0
    %2394 = vmatprep.subr.bf16.mxu0 0
    %2395 = vmatpush1.bf16.msra.mxu0 0
    %2396 = vmatprep.subr.bf16.mxu0 0
    %2397 = vmatpush1.bf16.msra.mxu0 0
    %2398 = vmatprep.subr.bf16.mxu0 0
    %2399 = vmatpush1.bf16.msra.mxu0 0
    %2400 = vmatprep.mubr.bf16.mxu0 0
    %2401 = vmatmul.mubr.bf16.gmra.mrb[0].mxu0 %v2300
    %v2402 = vpop.f32.mrb[0].mxu0
    %v2403 = vadd.f32 0.0, %v2402
    %v2404 = vpop.f32.mrb[0].mxu0
    %v2405 = vpop.f32.mrb[0].mxu0
    %v2406 = vpop.f32.mrb[0].mxu0
    %2407 = vdwg.mxu0
    %2409 = vrot.lane.b32.xlu0 %v2367, 32
    %v2410 = vpop.permute.xlu0 %2409
    %v2412 = vsel %vm208, %v2410, 0
    %2414 = vmatprep.subr.bf16.mxu0 0
    %2415 = vmatpush1.bf16.msra.mxu0 %v2171
    %2416 = vmatprep.subr.bf16.mxu0 0
    %2417 = vmatpush1.bf16.msra.mxu0 %v2172
    %2418 = vmatprep.subr.bf16.mxu0 0
    %2419 = vmatpush1.bf16.msra.mxu0 0
    %2420 = vmatprep.subr.bf16.mxu0 0
    %2421 = vmatpush1.bf16.msra.mxu0 0
    %2422 = vmatprep.subr.bf16.mxu0 0
    %2423 = vmatpush1.bf16.msra.mxu0 0
    %2424 = vmatprep.subr.bf16.mxu0 0
    %2425 = vmatpush1.bf16.msra.mxu0 0
    %2426 = vmatprep.subr.bf16.mxu0 0
    %2427 = vmatpush1.bf16.msra.mxu0 0
    %2428 = vmatprep.subr.bf16.mxu0 0
    %2429 = vmatpush1.bf16.msra.mxu0 0
    %2430 = vmatprep.subr.bf16.mxu0 0
    %2431 = vmatpush1.bf16.msra.mxu0 0
    %2432 = vmatprep.subr.bf16.mxu0 0
    %2433 = vmatpush1.bf16.msra.mxu0 0
    %2434 = vmatprep.subr.bf16.mxu0 0
    %2435 = vmatpush1.bf16.msra.mxu0 0
    %2436 = vmatprep.subr.bf16.mxu0 0
    %2437 = vmatpush1.bf16.msra.mxu0 0
    %2438 = vmatprep.subr.bf16.mxu0 0
    %2439 = vmatpush1.bf16.msra.mxu0 0
    %2440 = vmatprep.subr.bf16.mxu0 0
    %2441 = vmatpush1.bf16.msra.mxu0 0
    %2442 = vmatprep.subr.bf16.mxu0 0
    %2443 = vmatpush1.bf16.msra.mxu0 0
    %2444 = vmatprep.subr.bf16.mxu0 0
    %2445 = vmatpush1.bf16.msra.mxu0 0
    %2446 = vmatprep.mubr.bf16.mxu0 0
    %2447 = vmatmul.mubr.bf16.gmra.mrb[0].mxu0 %v2412
    %v2448 = vpop.f32.mrb[0].mxu0
    %v2449 = vadd.f32 %v2403, %v2448
    %v2450 = vpop.f32.mrb[0].mxu0
    %v2451 = vpop.f32.mrb[0].mxu0
    %v2452 = vpop.f32.mrb[0].mxu0
    %2453 = vdwg.mxu0
    %v2454 = vadd.f32 %v2449, %v2017
    %v2455 = vxor.u32 %v2454, 2147483648
    %v2456 = vmul.f32 %v2455, 1.442695
    %v2457 = vpow.pop %v2456
    %v2458 = vadd.f32 %v2457, 1.0
    %v2459 = vrcp.pop %v2458
    %v2460 = vmul.f32 1.0, %v2459
    %v2461 = vtanh.pop %v2454
    %v2462 = vmul.f32 %v2460, %v2236
    %2464 = vrot.lane.b32.xlu0 %v2461, 64
    %v2465 = vpop.permute.xlu0 %2464
    %v2467 = vmul.f32 %v2460, %v2465
    %2469 = vrot.lane.b32.xlu0 %v2467, 32
    %v2470 = vpop.permute.xlu0 %2469
    %v2472 = vadd.f32 %v2462, %v2470
    %v2473 = vtanh.pop %v2472
    %2475 = vrot.lane.b32.xlu0 %v2473, 64
    %v2476 = vpop.permute.xlu0 %2475
    %v2478 = vmul.f32 %v2460, %v2476
    %v2479 = vpack.c.bf16 %v2478, %v2478
    %2480 = vmatprep.subr.bf16.mxu0 0
    %2481 = vmatpush1.bf16.msra.mxu0 %v2028
    %2482 = vmatprep.subr.bf16.mxu0 0
    %2483 = vmatpush1.bf16.msra.mxu0 %v2029
    %2484 = vmatprep.subr.bf16.mxu0 0
    %2485 = vmatpush1.bf16.msra.mxu0 0
    %2486 = vmatprep.subr.bf16.mxu0 0
    %2487 = vmatpush1.bf16.msra.mxu0 0
    %2488 = vmatprep.subr.bf16.mxu0 0
    %2489 = vmatpush1.bf16.msra.mxu0 0
    %2490 = vmatprep.subr.bf16.mxu0 0
    %2491 = vmatpush1.bf16.msra.mxu0 0
    %2492 = vmatprep.subr.bf16.mxu0 0
    %2493 = vmatpush1.bf16.msra.mxu0 0
    %2494 = vmatprep.subr.bf16.mxu0 0
    %2495 = vmatpush1.bf16.msra.mxu0 0
    %2496 = vmatprep.subr.bf16.mxu0 0
    %2497 = vmatpush1.bf16.msra.mxu0 0
    %2498 = vmatprep.subr.bf16.mxu0 0
    %2499 = vmatpush1.bf16.msra.mxu0 0
    %2500 = vmatprep.subr.bf16.mxu0 0
    %2501 = vmatpush1.bf16.msra.mxu0 0
    %2502 = vmatprep.subr.bf16.mxu0 0
    %2503 = vmatpush1.bf16.msra.mxu0 0
    %2504 = vmatprep.subr.bf16.mxu0 0
    %2505 = vmatpush1.bf16.msra.mxu0 0
    %2506 = vmatprep.subr.bf16.mxu0 0
    %2507 = vmatpush1.bf16.msra.mxu0 0
    %2508 = vmatprep.subr.bf16.mxu0 0
    %2509 = vmatpush1.bf16.msra.mxu0 0
    %2510 = vmatprep.subr.bf16.mxu0 0
    %2511 = vmatpush1.bf16.msra.mxu0 0
    %2512 = vmatprep.mubr.bf16.mxu0 0
    %2513 = vmatmul.mubr.bf16.gmra.mrb[0].mxu0 %v2412
    %v2514 = vpop.f32.mrb[0].mxu0
    %v2515 = vadd.f32 0.0, %v2514
    %v2516 = vpop.f32.mrb[0].mxu0
    %v2517 = vpop.f32.mrb[0].mxu0
    %v2518 = vpop.f32.mrb[0].mxu0
    %2519 = vdwg.mxu0
    %2521 = vrot.lane.b32.xlu0 %v2479, 32
    %v2522 = vpop.permute.xlu0 %2521
    %v2524 = vsel %vm208, %v2522, 0
    %2526 = vmatprep.subr.bf16.mxu0 0
    %2527 = vmatpush1.bf16.msra.mxu0 %v2295
    %2528 = vmatprep.subr.bf16.mxu0 0
    %2529 = vmatpush1.bf16.msra.mxu0 %v2296
    %2530 = vmatprep.subr.bf16.mxu0 0
    %2531 = vmatpush1.bf16.msra.mxu0 0
    %2532 = vmatprep.subr.bf16.mxu0 0
    %2533 = vmatpush1.bf16.msra.mxu0 0
    %2534 = vmatprep.subr.bf16.mxu0 0
    %2535 = vmatpush1.bf16.msra.mxu0 0
    %2536 = vmatprep.subr.bf16.mxu0 0
    %2537 = vmatpush1.bf16.msra.mxu0 0
    %2538 = vmatprep.subr.bf16.mxu0 0
    %2539 = vmatpush1.bf16.msra.mxu0 0
    %2540 = vmatprep.subr.bf16.mxu0 0
    %2541 = vmatpush1.bf16.msra.mxu0 0
    %2542 = vmatprep.subr.bf16.mxu0 0
    %2543 = vmatpush1.bf16.msra.mxu0 0
    %2544 = vmatprep.subr.bf16.mxu0 0
    %2545 = vmatpush1.bf16.msra.mxu0 0
    %2546 = vmatprep.subr.bf16.mxu0 0
    %2547 = vmatpush1.bf16.msra.mxu0 0
    %2548 = vmatprep.subr.bf16.mxu0 0
    %2549 = vmatpush1.bf16.msra.mxu0 0
    %2550 = vmatprep.subr.bf16.mxu0 0
    %2551 = vmatpush1.bf16.msra.mxu0 0
    %2552 = vmatprep.subr.bf16.mxu0 0
    %2553 = vmatpush1.bf16.msra.mxu0 0
    %2554 = vmatprep.subr.bf16.mxu0 0
    %2555 = vmatpush1.bf16.msra.mxu0 0
    %2556 = vmatprep.subr.bf16.mxu0 0
    %2557 = vmatpush1.bf16.msra.mxu0 0
    %2558 = vmatprep.mubr.bf16.mxu0 0
    %2559 = vmatmul.mubr.bf16.gmra.mrb[0].mxu0 %v2524
    %v2560 = vpop.f32.mrb[0].mxu0
    %v2561 = vadd.f32 %v2515, %v2560
    %v2562 = vpop.f32.mrb[0].mxu0
    %v2563 = vpop.f32.mrb[0].mxu0
    %v2564 = vpop.f32.mrb[0].mxu0
    %2565 = vdwg.mxu0
    %v2566 = vadd.f32 %v2561, %v2018
    %v2567 = vxor.u32 %v2566, 2147483648
    %v2568 = vmul.f32 %v2567, 1.442695
    %v2569 = vpow.pop %v2568
    %v2570 = vadd.f32 %v2569, 1.0
    %v2571 = vrcp.pop %v2570
    %v2572 = vmul.f32 1.0, %v2571
    %v2573 = vtanh.pop %v2566
    %v2574 = vmul.f32 %v2572, %v2360
    %2576 = vrot.lane.b32.xlu0 %v2573, 64
    %v2577 = vpop.permute.xlu0 %2576
    %v2579 = vmul.f32 %v2572, %v2577
    %2581 = vrot.lane.b32.xlu0 %v2579, 32
    %v2582 = vpop.permute.xlu0 %2581
    %v2584 = vadd.f32 %v2574, %v2582
    %v2585 = vtanh.pop %v2584
    %2587 = vrot.lane.b32.xlu0 %v2585, 64
    %v2588 = vpop.permute.xlu0 %2587
    %v2590 = vmul.f32 %v2572, %v2588
    %v2591 = vpack.c.bf16 %v2590, %v2590
    %2592 = vmatprep.subr.bf16.mxu0 0
    %2593 = vmatpush1.bf16.msra.mxu0 %v2113
    %2594 = vmatprep.subr.bf16.mxu0 0
    %2595 = vmatpush1.bf16.msra.mxu0 %v2114
    %2596 = vmatprep.subr.bf16.mxu0 0
    %2597 = vmatpush1.bf16.msra.mxu0 0
    %2598 = vmatprep.subr.bf16.mxu0 0
    %2599 = vmatpush1.bf16.msra.mxu0 0
    %2600 = vmatprep.subr.bf16.mxu0 0
    %2601 = vmatpush1.bf16.msra.mxu0 0
    %2602 = vmatprep.subr.bf16.mxu0 0
    %2603 = vmatpush1.bf16.msra.mxu0 0
    %2604 = vmatprep.subr.bf16.mxu0 0
    %2605 = vmatpush1.bf16.msra.mxu0 0
    %2606 = vmatprep.subr.bf16.mxu0 0
    %2607 = vmatpush1.bf16.msra.mxu0 0
    %2608 = vmatprep.subr.bf16.mxu0 0
    %2609 = vmatpush1.bf16.msra.mxu0 0
    %2610 = vmatprep.subr.bf16.mxu0 0
    %2611 = vmatpush1.bf16.msra.mxu0 0
    %2612 = vmatprep.subr.bf16.mxu0 0
    %2613 = vmatpush1.bf16.msra.mxu0 0
    %2614 = vmatprep.subr.bf16.mxu0 0
    %2615 = vmatpush1.bf16.msra.mxu0 0
    %2616 = vmatprep.subr.bf16.mxu0 0
    %2617 = vmatpush1.bf16.msra.mxu0 0
    %2618 = vmatprep.subr.bf16.mxu0 0
    %2619 = vmatpush1.bf16.msra.mxu0 0
    %2620 = vmatprep.subr.bf16.mxu0 0
    %2621 = vmatpush1.bf16.msra.mxu0 0
    %2622 = vmatprep.subr.bf16.mxu0 0
    %2623 = vmatpush1.bf16.msra.mxu0 0
    %2624 = vmatprep.mubr.bf16.mxu0 0
    %2625 = vmatmul.mubr.bf16.gmra.mrb[0].mxu0 %v2524
    %v2626 = vpop.f32.mrb[0].mxu0
    %v2627 = vadd.f32 0.0, %v2626
    %v2628 = vpop.f32.mrb[0].mxu0
    %v2629 = vpop.f32.mrb[0].mxu0
    %v2630 = vpop.f32.mrb[0].mxu0
    %2631 = vdwg.mxu0
    %2633 = vrot.lane.b32.xlu0 %v2591, 32
    %v2634 = vpop.permute.xlu0 %2633
    %v2636 = vsel %vm208, %v2634, 0
    %2638 = vmatprep.subr.bf16.mxu0 0
    %2639 = vmatpush1.bf16.msra.mxu0 %v2171
    %2640 = vmatprep.subr.bf16.mxu0 0
    %2641 = vmatpush1.bf16.msra.mxu0 %v2172
    %2642 = vmatprep.subr.bf16.mxu0 0
    %2643 = vmatpush1.bf16.msra.mxu0 0
    %2644 = vmatprep.subr.bf16.mxu0 0
    %2645 = vmatpush1.bf16.msra.mxu0 0
    %2646 = vmatprep.subr.bf16.mxu0 0
    %2647 = vmatpush1.bf16.msra.mxu0 0
    %2648 = vmatprep.subr.bf16.mxu0 0
    %2649 = vmatpush1.bf16.msra.mxu0 0
    %2650 = vmatprep.subr.bf16.mxu0 0
    %2651 = vmatpush1.bf16.msra.mxu0 0
    %2652 = vmatprep.subr.bf16.mxu0 0
    %2653 = vmatpush1.bf16.msra.mxu0 0
    %2654 = vmatprep.subr.bf16.mxu0 0
    %2655 = vmatpush1.bf16.msra.mxu0 0
    %2656 = vmatprep.subr.bf16.mxu0 0
    %2657 = vmatpush1.bf16.msra.mxu0 0
    %2658 = vmatprep.subr.bf16.mxu0 0
    %2659 = vmatpush1.bf16.msra.mxu0 0
    %2660 = vmatprep.subr.bf16.mxu0 0
    %2661 = vmatpush1.bf16.msra.mxu0 0
    %2662 = vmatprep.subr.bf16.mxu0 0
    %2663 = vmatpush1.bf16.msra.mxu0 0
    %2664 = vmatprep.subr.bf16.mxu0 0
    %2665 = vmatpush1.bf16.msra.mxu0 0
    %2666 = vmatprep.subr.bf16.mxu0 0
    %2667 = vmatpush1.bf16.msra.mxu0 0
    %2668 = vmatprep.subr.bf16.mxu0 0
    %2669 = vmatpush1.bf16.msra.mxu0 0
    %2670 = vmatprep.mubr.bf16.mxu0 0
    %2671 = vmatmul.mubr.bf16.gmra.mrb[0].mxu0 %v2636
    %v2672 = vpop.f32.mrb[0].mxu0
    %v2673 = vadd.f32 %v2627, %v2672
    %v2674 = vpop.f32.mrb[0].mxu0
    %v2675 = vpop.f32.mrb[0].mxu0
    %v2676 = vpop.f32.mrb[0].mxu0
    %2677 = vdwg.mxu0
    %v2678 = vadd.f32 %v2673, %v2017
    %v2679 = vxor.u32 %v2678, 2147483648
    %v2680 = vmul.f32 %v2679, 1.442695
    %v2681 = vpow.pop %v2680
    %v2682 = vadd.f32 %v2681, 1.0
    %v2683 = vrcp.pop %v2682
    %v2684 = vmul.f32 1.0, %v2683
    %v2685 = vtanh.pop %v2678
    %v2686 = vmul.f32 %v2684, %v2472
    %2688 = vrot.lane.b32.xlu0 %v2685, 64
    %v2689 = vpop.permute.xlu0 %2688
    %v2691 = vmul.f32 %v2684, %v2689
    %2693 = vrot.lane.b32.xlu0 %v2691, 32
    %v2694 = vpop.permute.xlu0 %2693
    %v2696 = vadd.f32 %v2686, %v2694
    %v2697 = vtanh.pop %v2696
    %2699 = vrot.lane.b32.xlu0 %v2697, 64
    %v2700 = vpop.permute.xlu0 %2699
    %v2702 = vmul.f32 %v2684, %v2700
    %v2703 = vpack.c.bf16 %v2702, %v2702
    %2704 = vmatprep.subr.bf16.mxu0 0
    %2705 = vmatpush1.bf16.msra.mxu0 %v2028
    %2706 = vmatprep.subr.bf16.mxu0 0
    %2707 = vmatpush1.bf16.msra.mxu0 %v2029
    %2708 = vmatprep.subr.bf16.mxu0 0
    %2709 = vmatpush1.bf16.msra.mxu0 0
    %2710 = vmatprep.subr.bf16.mxu0 0
    %2711 = vmatpush1.bf16.msra.mxu0 0
    %2712 = vmatprep.subr.bf16.mxu0 0
    %2713 = vmatpush1.bf16.msra.mxu0 0
    %2714 = vmatprep.subr.bf16.mxu0 0
    %2715 = vmatpush1.bf16.msra.mxu0 0
    %2716 = vmatprep.subr.bf16.mxu0 0
    %2717 = vmatpush1.bf16.msra.mxu0 0
    %2718 = vmatprep.subr.bf16.mxu0 0
    %2719 = vmatpush1.bf16.msra.mxu0 0
    %2720 = vmatprep.subr.bf16.mxu0 0
    %2721 = vmatpush1.bf16.msra.mxu0 0
    %2722 = vmatprep.subr.bf16.mxu0 0
    %2723 = vmatpush1.bf16.msra.mxu0 0
    %2724 = vmatprep.subr.bf16.mxu0 0
    %2725 = vmatpush1.bf16.msra.mxu0 0
    %2726 = vmatprep.subr.bf16.mxu0 0
    %2727 = vmatpush1.bf16.msra.mxu0 0
    %2728 = vmatprep.subr.bf16.mxu0 0
    %2729 = vmatpush1.bf16.msra.mxu0 0
    %2730 = vmatprep.subr.bf16.mxu0 0
    %2731 = vmatpush1.bf16.msra.mxu0 0
    %2732 = vmatprep.subr.bf16.mxu0 0
    %2733 = vmatpush1.bf16.msra.mxu0 0
    %2734 = vmatprep.subr.bf16.mxu0 0
    %2735 = vmatpush1.bf16.msra.mxu0 0
    %2736 = vmatprep.mubr.bf16.mxu0 0
    %2737 = vmatmul.mubr.bf16.gmra.mrb[0].mxu0 %v2636
    %v2738 = vpop.f32.mrb[0].mxu0
    %v2739 = vadd.f32 0.0, %v2738
    %v2740 = vpop.f32.mrb[0].mxu0
    %v2741 = vpop.f32.mrb[0].mxu0
    %v2742 = vpop.f32.mrb[0].mxu0
    %2743 = vdwg.mxu0
    %2745 = vrot.lane.b32.xlu0 %v2703, 32
    %v2746 = vpop.permute.xlu0 %2745
    %v2748 = vsel %vm208, %v2746, 0
    %2750 = vmatprep.subr.bf16.mxu0 0
    %2751 = vmatpush1.bf16.msra.mxu0 %v2295
    %2752 = vmatprep.subr.bf16.mxu0 0
    %2753 = vmatpush1.bf16.msra.mxu0 %v2296
    %2754 = vmatprep.subr.bf16.mxu0 0
    %2755 = vmatpush1.bf16.msra.mxu0 0
    %2756 = vmatprep.subr.bf16.mxu0 0
    %2757 = vmatpush1.bf16.msra.mxu0 0
    %2758 = vmatprep.subr.bf16.mxu0 0
    %2759 = vmatpush1.bf16.msra.mxu0 0
    %2760 = vmatprep.subr.bf16.mxu0 0
    %2761 = vmatpush1.bf16.msra.mxu0 0
    %2762 = vmatprep.subr.bf16.mxu0 0
    %2763 = vmatpush1.bf16.msra.mxu0 0
    %2764 = vmatprep.subr.bf16.mxu0 0
    %2765 = vmatpush1.bf16.msra.mxu0 0
    %2766 = vmatprep.subr.bf16.mxu0 0
    %2767 = vmatpush1.bf16.msra.mxu0 0
    %2768 = vmatprep.subr.bf16.mxu0 0
    %2769 = vmatpush1.bf16.msra.mxu0 0
    %2770 = vmatprep.subr.bf16.mxu0 0
    %2771 = vmatpush1.bf16.msra.mxu0 0
    %2772 = vmatprep.subr.bf16.mxu0 0
    %2773 = vmatpush1.bf16.msra.mxu0 0
    %2774 = vmatprep.subr.bf16.mxu0 0
    %2775 = vmatpush1.bf16.msra.mxu0 0
    %2776 = vmatprep.subr.bf16.mxu0 0
    %2777 = vmatpush1.bf16.msra.mxu0 0
    %2778 = vmatprep.subr.bf16.mxu0 0
    %2779 = vmatpush1.bf16.msra.mxu0 0
    %2780 = vmatprep.subr.bf16.mxu0 0
    %2781 = vmatpush1.bf16.msra.mxu0 0
    %2782 = vmatprep.mubr.bf16.mxu0 0
    %2783 = vmatmul.mubr.bf16.gmra.mrb[0].mxu0 %v2748
    %v2784 = vpop.f32.mrb[0].mxu0
    %v2785 = vadd.f32 %v2739, %v2784
    %v2786 = vpop.f32.mrb[0].mxu0
    %v2787 = vpop.f32.mrb[0].mxu0
    %v2788 = vpop.f32.mrb[0].mxu0
    %2789 = vdwg.mxu0
    %v2790 = vadd.f32 %v2785, %v2018
    %v2791 = vxor.u32 %v2790, 2147483648
    %v2792 = vmul.f32 %v2791, 1.442695
    %v2793 = vpow.pop %v2792
    %v2794 = vadd.f32 %v2793, 1.0
    %v2795 = vrcp.pop %v2794
    %v2796 = vmul.f32 1.0, %v2795
    %v2797 = vtanh.pop %v2790
    %v2798 = vmul.f32 %v2796, %v2584
    %2800 = vrot.lane.b32.xlu0 %v2797, 64
    %v2801 = vpop.permute.xlu0 %2800
    %v2803 = vmul.f32 %v2796, %v2801
    %2805 = vrot.lane.b32.xlu0 %v2803, 32
    %v2806 = vpop.permute.xlu0 %2805
    %v2808 = vadd.f32 %v2798, %v2806
    %v2809 = vtanh.pop %v2808
    %2811 = vrot.lane.b32.xlu0 %v2809, 64
    %v2812 = vpop.permute.xlu0 %2811
    %v2814 = vmul.f32 %v2796, %v2812
    %v2815 = vpack.c.bf16 %v2814, %v2814
    %2816 = vmatprep.subr.bf16.mxu0 0
    %2817 = vmatpush1.bf16.msra.mxu0 %v2113
    %2818 = vmatprep.subr.bf16.mxu0 0
    %2819 = vmatpush1.bf16.msra.mxu0 %v2114
    %2820 = vmatprep.subr.bf16.mxu0 0
    %2821 = vmatpush1.bf16.msra.mxu0 0
    %2822 = vmatprep.subr.bf16.mxu0 0
    %2823 = vmatpush1.bf16.msra.mxu0 0
    %2824 = vmatprep.subr.bf16.mxu0 0
    %2825 = vmatpush1.bf16.msra.mxu0 0
    %2826 = vmatprep.subr.bf16.mxu0 0
    %2827 = vmatpush1.bf16.msra.mxu0 0
    %2828 = vmatprep.subr.bf16.mxu0 0
    %2829 = vmatpush1.bf16.msra.mxu0 0
    %2830 = vmatprep.subr.bf16.mxu0 0
    %2831 = vmatpush1.bf16.msra.mxu0 0
    %2832 = vmatprep.subr.bf16.mxu0 0
    %2833 = vmatpush1.bf16.msra.mxu0 0
    %2834 = vmatprep.subr.bf16.mxu0 0
    %2835 = vmatpush1.bf16.msra.mxu0 0
    %2836 = vmatprep.subr.bf16.mxu0 0
    %2837 = vmatpush1.bf16.msra.mxu0 0
    %2838 = vmatprep.subr.bf16.mxu0 0
    %2839 = vmatpush1.bf16.msra.mxu0 0
    %2840 = vmatprep.subr.bf16.mxu0 0
    %2841 = vmatpush1.bf16.msra.mxu0 0
    %2842 = vmatprep.subr.bf16.mxu0 0
    %2843 = vmatpush1.bf16.msra.mxu0 0
    %2844 = vmatprep.subr.bf16.mxu0 0
    %2845 = vmatpush1.bf16.msra.mxu0 0
    %2846 = vmatprep.subr.bf16.mxu0 0
    %2847 = vmatpush1.bf16.msra.mxu0 0
    %2848 = vmatprep.mubr.bf16.mxu0 0
    %2849 = vmatmul.mubr.bf16.gmra.mrb[0].mxu0 %v2748
    %v2850 = vpop.f32.mrb[0].mxu0
    %v2851 = vadd.f32 0.0, %v2850
    %v2852 = vpop.f32.mrb[0].mxu0
    %v2853 = vpop.f32.mrb[0].mxu0
    %v2854 = vpop.f32.mrb[0].mxu0
    %2855 = vdwg.mxu0
    %2857 = vrot.lane.b32.xlu0 %v2815, 32
    %v2858 = vpop.permute.xlu0 %2857
    %v2860 = vsel %vm208, %v2858, 0
    %2862 = vmatprep.subr.bf16.mxu0 0
    %2863 = vmatpush1.bf16.msra.mxu0 %v2171
    %2864 = vmatprep.subr.bf16.mxu0 0
    %2865 = vmatpush1.bf16.msra.mxu0 %v2172
    %2866 = vmatprep.subr.bf16.mxu0 0
    %2867 = vmatpush1.bf16.msra.mxu0 0
    %2868 = vmatprep.subr.bf16.mxu0 0
    %2869 = vmatpush1.bf16.msra.mxu0 0
    %2870 = vmatprep.subr.bf16.mxu0 0
    %2871 = vmatpush1.bf16.msra.mxu0 0
    %2872 = vmatprep.subr.bf16.mxu0 0
    %2873 = vmatpush1.bf16.msra.mxu0 0
    %2874 = vmatprep.subr.bf16.mxu0 0
    %2875 = vmatpush1.bf16.msra.mxu0 0
    %2876 = vmatprep.subr.bf16.mxu0 0
    %2877 = vmatpush1.bf16.msra.mxu0 0
    %2878 = vmatprep.subr.bf16.mxu0 0
    %2879 = vmatpush1.bf16.msra.mxu0 0
    %2880 = vmatprep.subr.bf16.mxu0 0
    %2881 = vmatpush1.bf16.msra.mxu0 0
    %2882 = vmatprep.subr.bf16.mxu0 0
    %2883 = vmatpush1.bf16.msra.mxu0 0
    %2884 = vmatprep.subr.bf16.mxu0 0
    %2885 = vmatpush1.bf16.msra.mxu0 0
    %2886 = vmatprep.subr.bf16.mxu0 0
    %2887 = vmatpush1.bf16.msra.mxu0 0
    %2888 = vmatprep.subr.bf16.mxu0 0
    %2889 = vmatpush1.bf16.msra.mxu0 0
    %2890 = vmatprep.subr.bf16.mxu0 0
    %2891 = vmatpush1.bf16.msra.mxu0 0
    %2892 = vmatprep.subr.bf16.mxu0 0
    %2893 = vmatpush1.bf16.msra.mxu0 0
    %2894 = vmatprep.mubr.bf16.mxu0 0
    %2895 = vmatmul.mubr.bf16.gmra.mrb[0].mxu0 %v2860
    %v2896 = vpop.f32.mrb[0].mxu0
    %v2897 = vadd.f32 %v2851, %v2896
    %v2898 = vpop.f32.mrb[0].mxu0
    %v2899 = vpop.f32.mrb[0].mxu0
    %v2900 = vpop.f32.mrb[0].mxu0
    %2901 = vdwg.mxu0
    %v2902 = vadd.f32 %v2897, %v2017
    %v2903 = vxor.u32 %v2902, 2147483648
    %v2904 = vmul.f32 %v2903, 1.442695
    %v2905 = vpow.pop %v2904
    %v2906 = vadd.f32 %v2905, 1.0
    %v2907 = vrcp.pop %v2906
    %v2908 = vmul.f32 1.0, %v2907
    %v2909 = vtanh.pop %v2902
    %v2910 = vmul.f32 %v2908, %v2696
    %2912 = vrot.lane.b32.xlu0 %v2909, 64
    %v2913 = vpop.permute.xlu0 %2912
    %v2915 = vmul.f32 %v2908, %v2913
    %2917 = vrot.lane.b32.xlu0 %v2915, 32
    %v2918 = vpop.permute.xlu0 %2917
    %v2920 = vadd.f32 %v2910, %v2918
    %v2921 = vtanh.pop %v2920
    %2923 = vrot.lane.b32.xlu0 %v2921, 64
    %v2924 = vpop.permute.xlu0 %2923
    %v2926 = vmul.f32 %v2908, %v2924
    %v2927 = vpack.c.bf16 %v2926, %v2926
    %2928 = vmatprep.subr.bf16.mxu0 0
    %2929 = vmatpush1.bf16.msra.mxu0 %v2028
    %2930 = vmatprep.subr.bf16.mxu0 0
    %2931 = vmatpush1.bf16.msra.mxu0 %v2029
    %2932 = vmatprep.subr.bf16.mxu0 0
    %2933 = vmatpush1.bf16.msra.mxu0 0
    %2934 = vmatprep.subr.bf16.mxu0 0
    %2935 = vmatpush1.bf16.msra.mxu0 0
    %2936 = vmatprep.subr.bf16.mxu0 0
    %2937 = vmatpush1.bf16.msra.mxu0 0
    %2938 = vmatprep.subr.bf16.mxu0 0
    %2939 = vmatpush1.bf16.msra.mxu0 0
    %2940 = vmatprep.subr.bf16.mxu0 0
    %2941 = vmatpush1.bf16.msra.mxu0 0
    %2942 = vmatprep.subr.bf16.mxu0 0
    %2943 = vmatpush1.bf16.msra.mxu0 0
    %2944 = vmatprep.subr.bf16.mxu0 0
    %2945 = vmatpush1.bf16.msra.mxu0 0
    %2946 = vmatprep.subr.bf16.mxu0 0
    %2947 = vmatpush1.bf16.msra.mxu0 0
    %2948 = vmatprep.subr.bf16.mxu0 0
    %2949 = vmatpush1.bf16.msra.mxu0 0
    %2950 = vmatprep.subr.bf16.mxu0 0
    %2951 = vmatpush1.bf16.msra.mxu0 0
    %2952 = vmatprep.subr.bf16.mxu0 0
    %2953 = vmatpush1.bf16.msra.mxu0 0
    %2954 = vmatprep.subr.bf16.mxu0 0
    %2955 = vmatpush1.bf16.msra.mxu0 0
    %2956 = vmatprep.subr.bf16.mxu0 0
    %2957 = vmatpush1.bf16.msra.mxu0 0
    %2958 = vmatprep.subr.bf16.mxu0 0
    %2959 = vmatpush1.bf16.msra.mxu0 0
    %2960 = vmatprep.mubr.bf16.mxu0 0
    %2961 = vmatmul.mubr.bf16.gmra.mrb[0].mxu0 %v2860
    %v2962 = vpop.f32.mrb[0].mxu0
    %v2963 = vadd.f32 0.0, %v2962
    %v2964 = vpop.f32.mrb[0].mxu0
    %v2965 = vpop.f32.mrb[0].mxu0
    %v2966 = vpop.f32.mrb[0].mxu0
    %2967 = vdwg.mxu0
    %2969 = vrot.lane.b32.xlu0 %v2927, 32
    %v2970 = vpop.permute.xlu0 %2969
    %v2972 = vsel %vm208, %v2970, 0
    %2974 = vmatprep.subr.bf16.mxu0 0
    %2975 = vmatpush1.bf16.msra.mxu0 %v2295
    %2976 = vmatprep.subr.bf16.mxu0 0
    %2977 = vmatpush1.bf16.msra.mxu0 %v2296
    %2978 = vmatprep.subr.bf16.mxu0 0
    %2979 = vmatpush1.bf16.msra.mxu0 0
    %2980 = vmatprep.subr.bf16.mxu0 0
    %2981 = vmatpush1.bf16.msra.mxu0 0
    %2982 = vmatprep.subr.bf16.mxu0 0
    %2983 = vmatpush1.bf16.msra.mxu0 0
    %2984 = vmatprep.subr.bf16.mxu0 0
    %2985 = vmatpush1.bf16.msra.mxu0 0
    %2986 = vmatprep.subr.bf16.mxu0 0
    %2987 = vmatpush1.bf16.msra.mxu0 0
    %2988 = vmatprep.subr.bf16.mxu0 0
    %2989 = vmatpush1.bf16.msra.mxu0 0
    %2990 = vmatprep.subr.bf16.mxu0 0
    %2991 = vmatpush1.bf16.msra.mxu0 0
    %2992 = vmatprep.subr.bf16.mxu0 0
    %2993 = vmatpush1.bf16.msra.mxu0 0
    %2994 = vmatprep.subr.bf16.mxu0 0
    %2995 = vmatpush1.bf16.msra.mxu0 0
    %2996 = vmatprep.subr.bf16.mxu0 0
    %2997 = vmatpush1.bf16.msra.mxu0 0
    %2998 = vmatprep.subr.bf16.mxu0 0
    %2999 = vmatpush1.bf16.msra.mxu0 0
    %3000 = vmatprep.subr.bf16.mxu0 0
    %3001 = vmatpush1.bf16.msra.mxu0 0
    %3002 = vmatprep.subr.bf16.mxu0 0
    %3003 = vmatpush1.bf16.msra.mxu0 0
    %3004 = vmatprep.subr.bf16.mxu0 0
    %3005 = vmatpush1.bf16.msra.mxu0 0
    %3006 = vmatprep.mubr.bf16.mxu0 0
    %3007 = vmatmul.mubr.bf16.gmra.mrb[0].mxu0 %v2972
    %v3008 = vpop.f32.mrb[0].mxu0
    %v3009 = vadd.f32 %v2963, %v3008
    %v3010 = vpop.f32.mrb[0].mxu0
    %v3011 = vpop.f32.mrb[0].mxu0
    %v3012 = vpop.f32.mrb[0].mxu0
    %3013 = vdwg.mxu0
    %v3014 = vadd.f32 %v3009, %v2018
    %v3015 = vxor.u32 %v3014, 2147483648
    %v3016 = vmul.f32 %v3015, 1.442695
    %v3017 = vpow.pop %v3016
    %v3018 = vadd.f32 %v3017, 1.0
    %v3019 = vrcp.pop %v3018
    %v3020 = vmul.f32 1.0, %v3019
    %v3021 = vtanh.pop %v3014
    %v3022 = vmul.f32 %v3020, %v2808
    %3024 = vrot.lane.b32.xlu0 %v3021, 64
    %v3025 = vpop.permute.xlu0 %3024
    %v3027 = vmul.f32 %v3020, %v3025
    %3029 = vrot.lane.b32.xlu0 %v3027, 32
    %v3030 = vpop.permute.xlu0 %3029
    %v3032 = vadd.f32 %v3022, %v3030
    %v3033 = vtanh.pop %v3032
    %3035 = vrot.lane.b32.xlu0 %v3033, 64
    %v3036 = vpop.permute.xlu0 %3035
    %v3038 = vmul.f32 %v3020, %v3036
    %v3039 = vpack.c.bf16 %v3038, %v3038
    %3040 = vmatprep.subr.bf16.mxu0 0
    %3041 = vmatpush1.bf16.msra.mxu0 %v2113
    %3042 = vmatprep.subr.bf16.mxu0 0
    %3043 = vmatpush1.bf16.msra.mxu0 %v2114
    %3044 = vmatprep.subr.bf16.mxu0 0
    %3045 = vmatpush1.bf16.msra.mxu0 0
    %3046 = vmatprep.subr.bf16.mxu0 0
    %3047 = vmatpush1.bf16.msra.mxu0 0
    %3048 = vmatprep.subr.bf16.mxu0 0
    %3049 = vmatpush1.bf16.msra.mxu0 0
    %3050 = vmatprep.subr.bf16.mxu0 0
    %3051 = vmatpush1.bf16.msra.mxu0 0
    %3052 = vmatprep.subr.bf16.mxu0 0
    %3053 = vmatpush1.bf16.msra.mxu0 0
    %3054 = vmatprep.subr.bf16.mxu0 0
    %3055 = vmatpush1.bf16.msra.mxu0 0
    %3056 = vmatprep.subr.bf16.mxu0 0
    %3057 = vmatpush1.bf16.msra.mxu0 0
    %3058 = vmatprep.subr.bf16.mxu0 0
    %3059 = vmatpush1.bf16.msra.mxu0 0
    %3060 = vmatprep.subr.bf16.mxu0 0
    %3061 = vmatpush1.bf16.msra.mxu0 0
    %3062 = vmatprep.subr.bf16.mxu0 0
    %3063 = vmatpush1.bf16.msra.mxu0 0
    %3064 = vmatprep.subr.bf16.mxu0 0
    %3065 = vmatpush1.bf16.msra.mxu0 0
    %3066 = vmatprep.subr.bf16.mxu0 0
    %3067 = vmatpush1.bf16.msra.mxu0 0
    %3068 = vmatprep.subr.bf16.mxu0 0
    %3069 = vmatpush1.bf16.msra.mxu0 0
    %3070 = vmatprep.subr.bf16.mxu0 0
    %3071 = vmatpush1.bf16.msra.mxu0 0
    %3072 = vmatprep.mubr.bf16.mxu0 0
    %3073 = vmatmul.mubr.bf16.gmra.mrb[0].mxu0 %v2972
    %v3074 = vpop.f32.mrb[0].mxu0
    %v3075 = vadd.f32 0.0, %v3074
    %v3076 = vpop.f32.mrb[0].mxu0
    %v3077 = vpop.f32.mrb[0].mxu0
    %v3078 = vpop.f32.mrb[0].mxu0
    %3079 = vdwg.mxu0
    %3081 = vrot.lane.b32.xlu0 %v3039, 32
    %v3082 = vpop.permute.xlu0 %3081
    %v3084 = vsel %vm208, %v3082, 0
    %3086 = vmatprep.subr.bf16.mxu0 0
    %3087 = vmatpush1.bf16.msra.mxu0 %v2171
    %3088 = vmatprep.subr.bf16.mxu0 0
    %3089 = vmatpush1.bf16.msra.mxu0 %v2172
    %3090 = vmatprep.subr.bf16.mxu0 0
    %3091 = vmatpush1.bf16.msra.mxu0 0
    %3092 = vmatprep.subr.bf16.mxu0 0
    %3093 = vmatpush1.bf16.msra.mxu0 0
    %3094 = vmatprep.subr.bf16.mxu0 0
    %3095 = vmatpush1.bf16.msra.mxu0 0
    %3096 = vmatprep.subr.bf16.mxu0 0
    %3097 = vmatpush1.bf16.msra.mxu0 0
    %3098 = vmatprep.subr.bf16.mxu0 0
    %3099 = vmatpush1.bf16.msra.mxu0 0
    %3100 = vmatprep.subr.bf16.mxu0 0
    %3101 = vmatpush1.bf16.msra.mxu0 0
    %3102 = vmatprep.subr.bf16.mxu0 0
    %3103 = vmatpush1.bf16.msra.mxu0 0
    %3104 = vmatprep.subr.bf16.mxu0 0
    %3105 = vmatpush1.bf16.msra.mxu0 0
    %3106 = vmatprep.subr.bf16.mxu0 0
    %3107 = vmatpush1.bf16.msra.mxu0 0
    %3108 = vmatprep.subr.bf16.mxu0 0
    %3109 = vmatpush1.bf16.msra.mxu0 0
    %3110 = vmatprep.subr.bf16.mxu0 0
    %3111 = vmatpush1.bf16.msra.mxu0 0
    %3112 = vmatprep.subr.bf16.mxu0 0
    %3113 = vmatpush1.bf16.msra.mxu0 0
    %3114 = vmatprep.subr.bf16.mxu0 0
    %3115 = vmatpush1.bf16.msra.mxu0 0
    %3116 = vmatprep.subr.bf16.mxu0 0
    %3117 = vmatpush1.bf16.msra.mxu0 0
    %3118 = vmatprep.mubr.bf16.mxu0 0
    %3119 = vmatmul.mubr.bf16.gmra.mrb[0].mxu0 %v3084
    %v3120 = vpop.f32.mrb[0].mxu0
    %v3121 = vadd.f32 %v3075, %v3120
    %v3122 = vpop.f32.mrb[0].mxu0
    %v3123 = vpop.f32.mrb[0].mxu0
    %v3124 = vpop.f32.mrb[0].mxu0
    %3125 = vdwg.mxu0
    %v3126 = vadd.f32 %v3121, %v2017
    %v3127 = vxor.u32 %v3126, 2147483648
    %v3128 = vmul.f32 %v3127, 1.442695
    %v3129 = vpow.pop %v3128
    %v3130 = vadd.f32 %v3129, 1.0
    %v3131 = vrcp.pop %v3130
    %v3132 = vmul.f32 1.0, %v3131
    %v3133 = vtanh.pop %v3126
    %v3134 = vmul.f32 %v3132, %v2920
    %3136 = vrot.lane.b32.xlu0 %v3133, 64
    %v3137 = vpop.permute.xlu0 %3136
    %v3139 = vmul.f32 %v3132, %v3137
    %3141 = vrot.lane.b32.xlu0 %v3139, 32
    %v3142 = vpop.permute.xlu0 %3141
    %v3144 = vadd.f32 %v3134, %v3142
    %v3145 = vtanh.pop %v3144
    %3147 = vrot.lane.b32.xlu0 %v3145, 64
    %v3148 = vpop.permute.xlu0 %3147
    %v3150 = vmul.f32 %v3132, %v3148
    %v3151 = vpack.c.bf16 %v3150, %v3150
    %3152 = vmatprep.subr.bf16.mxu0 0
    %3153 = vmatpush1.bf16.msra.mxu0 %v2028
    %3154 = vmatprep.subr.bf16.mxu0 0
    %3155 = vmatpush1.bf16.msra.mxu0 %v2029
    %3156 = vmatprep.subr.bf16.mxu0 0
    %3157 = vmatpush1.bf16.msra.mxu0 0
    %3158 = vmatprep.subr.bf16.mxu0 0
    %3159 = vmatpush1.bf16.msra.mxu0 0
    %3160 = vmatprep.subr.bf16.mxu0 0
    %3161 = vmatpush1.bf16.msra.mxu0 0
    %3162 = vmatprep.subr.bf16.mxu0 0
    %3163 = vmatpush1.bf16.msra.mxu0 0
    %3164 = vmatprep.subr.bf16.mxu0 0
    %3165 = vmatpush1.bf16.msra.mxu0 0
    %3166 = vmatprep.subr.bf16.mxu0 0
    %3167 = vmatpush1.bf16.msra.mxu0 0
    %3168 = vmatprep.subr.bf16.mxu0 0
    %3169 = vmatpush1.bf16.msra.mxu0 0
    %3170 = vmatprep.subr.bf16.mxu0 0
    %3171 = vmatpush1.bf16.msra.mxu0 0
    %3172 = vmatprep.subr.bf16.mxu0 0
    %3173 = vmatpush1.bf16.msra.mxu0 0
    %3174 = vmatprep.subr.bf16.mxu0 0
    %3175 = vmatpush1.bf16.msra.mxu0 0
    %3176 = vmatprep.subr.bf16.mxu0 0
    %3177 = vmatpush1.bf16.msra.mxu0 0
    %3178 = vmatprep.subr.bf16.mxu0 0
    %3179 = vmatpush1.bf16.msra.mxu0 0
    %3180 = vmatprep.subr.bf16.mxu0 0
    %3181 = vmatpush1.bf16.msra.mxu0 0
    %3182 = vmatprep.subr.bf16.mxu0 0
    %3183 = vmatpush1.bf16.msra.mxu0 0
    %3184 = vmatprep.mubr.bf16.mxu0 0
    %3185 = vmatmul.mubr.bf16.gmra.mrb[0].mxu0 %v3084
    %v3186 = vpop.f32.mrb[0].mxu0
    %v3187 = vadd.f32 0.0, %v3186
    %v3188 = vpop.f32.mrb[0].mxu0
    %v3189 = vpop.f32.mrb[0].mxu0
    %v3190 = vpop.f32.mrb[0].mxu0
    %3191 = vdwg.mxu0
    %3193 = vrot.lane.b32.xlu0 %v3151, 32
    %v3194 = vpop.permute.xlu0 %3193
    %v3196 = vsel %vm208, %v3194, 0
    %3198 = vmatprep.subr.bf16.mxu0 0
    %3199 = vmatpush1.bf16.msra.mxu0 %v2295
    %3200 = vmatprep.subr.bf16.mxu0 0
    %3201 = vmatpush1.bf16.msra.mxu0 %v2296
    %3202 = vmatprep.subr.bf16.mxu0 0
    %3203 = vmatpush1.bf16.msra.mxu0 0
    %3204 = vmatprep.subr.bf16.mxu0 0
    %3205 = vmatpush1.bf16.msra.mxu0 0
    %3206 = vmatprep.subr.bf16.mxu0 0
    %3207 = vmatpush1.bf16.msra.mxu0 0
    %3208 = vmatprep.subr.bf16.mxu0 0
    %3209 = vmatpush1.bf16.msra.mxu0 0
    %3210 = vmatprep.subr.bf16.mxu0 0
    %3211 = vmatpush1.bf16.msra.mxu0 0
    %3212 = vmatprep.subr.bf16.mxu0 0
    %3213 = vmatpush1.bf16.msra.mxu0 0
    %3214 = vmatprep.subr.bf16.mxu0 0
    %3215 = vmatpush1.bf16.msra.mxu0 0
    %3216 = vmatprep.subr.bf16.mxu0 0
    %3217 = vmatpush1.bf16.msra.mxu0 0
    %3218 = vmatprep.subr.bf16.mxu0 0
    %3219 = vmatpush1.bf16.msra.mxu0 0
    %3220 = vmatprep.subr.bf16.mxu0 0
    %3221 = vmatpush1.bf16.msra.mxu0 0
    %3222 = vmatprep.subr.bf16.mxu0 0
    %3223 = vmatpush1.bf16.msra.mxu0 0
    %3224 = vmatprep.subr.bf16.mxu0 0
    %3225 = vmatpush1.bf16.msra.mxu0 0
    %3226 = vmatprep.subr.bf16.mxu0 0
    %3227 = vmatpush1.bf16.msra.mxu0 0
    %3228 = vmatprep.subr.bf16.mxu0 0
    %3229 = vmatpush1.bf16.msra.mxu0 0
    %3230 = vmatprep.mubr.bf16.mxu0 0
    %3231 = vmatmul.mubr.bf16.gmra.mrb[0].mxu0 %v3196
    %v3232 = vpop.f32.mrb[0].mxu0
    %v3233 = vadd.f32 %v3187, %v3232
    %v3234 = vpop.f32.mrb[0].mxu0
    %v3235 = vpop.f32.mrb[0].mxu0
    %v3236 = vpop.f32.mrb[0].mxu0
    %3237 = vdwg.mxu0
    %v3238 = vadd.f32 %v3233, %v2018
    %v3239 = vxor.u32 %v3238, 2147483648
    %v3240 = vmul.f32 %v3239, 1.442695
    %v3241 = vpow.pop %v3240
    %v3242 = vadd.f32 %v3241, 1.0
    %v3243 = vrcp.pop %v3242
    %v3244 = vmul.f32 1.0, %v3243
    %v3245 = vtanh.pop %v3238
    %v3246 = vmul.f32 %v3244, %v3032
    %3248 = vrot.lane.b32.xlu0 %v3245, 64
    %v3249 = vpop.permute.xlu0 %3248
    %v3251 = vmul.f32 %v3244, %v3249
    %3253 = vrot.lane.b32.xlu0 %v3251, 32
    %v3254 = vpop.permute.xlu0 %3253
    %v3256 = vadd.f32 %v3246, %v3254
    %v3257 = vtanh.pop %v3256
    %3259 = vrot.lane.b32.xlu0 %v3257, 64
    %v3260 = vpop.permute.xlu0 %3259
    %v3262 = vmul.f32 %v3244, %v3260
    %v3263 = vpack.c.bf16 %v3262, %v3262
    %3264 = vmatprep.subr.bf16.mxu0 0
    %3265 = vmatpush1.bf16.msra.mxu0 %v2113
    %3266 = vmatprep.subr.bf16.mxu0 0
    %3267 = vmatpush1.bf16.msra.mxu0 %v2114
    %3268 = vmatprep.subr.bf16.mxu0 0
    %3269 = vmatpush1.bf16.msra.mxu0 0
    %3270 = vmatprep.subr.bf16.mxu0 0
    %3271 = vmatpush1.bf16.msra.mxu0 0
    %3272 = vmatprep.subr.bf16.mxu0 0
    %3273 = vmatpush1.bf16.msra.mxu0 0
    %3274 = vmatprep.subr.bf16.mxu0 0
    %3275 = vmatpush1.bf16.msra.mxu0 0
    %3276 = vmatprep.subr.bf16.mxu0 0
    %3277 = vmatpush1.bf16.msra.mxu0 0
    %3278 = vmatprep.subr.bf16.mxu0 0
    %3279 = vmatpush1.bf16.msra.mxu0 0
    %3280 = vmatprep.subr.bf16.mxu0 0
    %3281 = vmatpush1.bf16.msra.mxu0 0
    %3282 = vmatprep.subr.bf16.mxu0 0
    %3283 = vmatpush1.bf16.msra.mxu0 0
    %3284 = vmatprep.subr.bf16.mxu0 0
    %3285 = vmatpush1.bf16.msra.mxu0 0
    %3286 = vmatprep.subr.bf16.mxu0 0
    %3287 = vmatpush1.bf16.msra.mxu0 0
    %3288 = vmatprep.subr.bf16.mxu0 0
    %3289 = vmatpush1.bf16.msra.mxu0 0
    %3290 = vmatprep.subr.bf16.mxu0 0
    %3291 = vmatpush1.bf16.msra.mxu0 0
    %3292 = vmatprep.subr.bf16.mxu0 0
    %3293 = vmatpush1.bf16.msra.mxu0 0
    %3294 = vmatprep.subr.bf16.mxu0 0
    %3295 = vmatpush1.bf16.msra.mxu0 0
    %3296 = vmatprep.mubr.bf16.mxu0 0
    %3297 = vmatmul.mubr.bf16.gmra.mrb[0].mxu0 %v3196
    %v3298 = vpop.f32.mrb[0].mxu0
    %v3299 = vadd.f32 0.0, %v3298
    %v3300 = vpop.f32.mrb[0].mxu0
    %v3301 = vpop.f32.mrb[0].mxu0
    %v3302 = vpop.f32.mrb[0].mxu0
    %3303 = vdwg.mxu0
    %3305 = vrot.lane.b32.xlu0 %v3263, 32
    %v3306 = vpop.permute.xlu0 %3305
    %v3308 = vsel %vm208, %v3306, 0
    %3310 = vmatprep.subr.bf16.mxu0 0
    %3311 = vmatpush1.bf16.msra.mxu0 %v2171
    %3312 = vmatprep.subr.bf16.mxu0 0
    %3313 = vmatpush1.bf16.msra.mxu0 %v2172
    %3314 = vmatprep.subr.bf16.mxu0 0
    %3315 = vmatpush1.bf16.msra.mxu0 0
    %3316 = vmatprep.subr.bf16.mxu0 0
    %3317 = vmatpush1.bf16.msra.mxu0 0
    %3318 = vmatprep.subr.bf16.mxu0 0
    %3319 = vmatpush1.bf16.msra.mxu0 0
    %3320 = vmatprep.subr.bf16.mxu0 0
    %3321 = vmatpush1.bf16.msra.mxu0 0
    %3322 = vmatprep.subr.bf16.mxu0 0
    %3323 = vmatpush1.bf16.msra.mxu0 0
    %3324 = vmatprep.subr.bf16.mxu0 0
    %3325 = vmatpush1.bf16.msra.mxu0 0
    %3326 = vmatprep.subr.bf16.mxu0 0
    %3327 = vmatpush1.bf16.msra.mxu0 0
    %3328 = vmatprep.subr.bf16.mxu0 0
    %3329 = vmatpush1.bf16.msra.mxu0 0
    %3330 = vmatprep.subr.bf16.mxu0 0
    %3331 = vmatpush1.bf16.msra.mxu0 0
    %3332 = vmatprep.subr.bf16.mxu0 0
    %3333 = vmatpush1.bf16.msra.mxu0 0
    %3334 = vmatprep.subr.bf16.mxu0 0
    %3335 = vmatpush1.bf16.msra.mxu0 0
    %3336 = vmatprep.subr.bf16.mxu0 0
    %3337 = vmatpush1.bf16.msra.mxu0 0
    %3338 = vmatprep.subr.bf16.mxu0 0
    %3339 = vmatpush1.bf16.msra.mxu0 0
    %3340 = vmatprep.subr.bf16.mxu0 0
    %3341 = vmatpush1.bf16.msra.mxu0 0
    %3342 = vmatprep.mubr.bf16.mxu0 0
    %3343 = vmatmul.mubr.bf16.gmra.mrb[0].mxu0 %v3308
    %v3344 = vpop.f32.mrb[0].mxu0
    %v3345 = vadd.f32 %v3299, %v3344
    %v3346 = vpop.f32.mrb[0].mxu0
    %v3347 = vpop.f32.mrb[0].mxu0
    %v3348 = vpop.f32.mrb[0].mxu0
    %3349 = vdwg.mxu0
    %v3350 = vadd.f32 %v3345, %v2017
    %v3351 = vxor.u32 %v3350, 2147483648
    %v3352 = vmul.f32 %v3351, 1.442695
    %v3353 = vpow.pop %v3352
    %v3354 = vadd.f32 %v3353, 1.0
    %v3355 = vrcp.pop %v3354
    %v3356 = vmul.f32 1.0, %v3355
    %v3357 = vtanh.pop %v3350
    %v3358 = vmul.f32 %v3356, %v3144
    %3360 = vrot.lane.b32.xlu0 %v3357, 64
    %v3361 = vpop.permute.xlu0 %3360
    %v3363 = vmul.f32 %v3356, %v3361
    %3365 = vrot.lane.b32.xlu0 %v3363, 32
    %v3366 = vpop.permute.xlu0 %3365
    %v3368 = vadd.f32 %v3358, %v3366
    %v3369 = vtanh.pop %v3368
    %3371 = vrot.lane.b32.xlu0 %v3369, 64
    %v3372 = vpop.permute.xlu0 %3371
    %v3374 = vmul.f32 %v3356, %v3372
    %v3375 = vpack.c.bf16 %v3374, %v3374
    %3376 = vmatprep.subr.bf16.mxu0 0
    %3377 = vmatpush1.bf16.msra.mxu0 %v2028
    %3378 = vmatprep.subr.bf16.mxu0 0
    %3379 = vmatpush1.bf16.msra.mxu0 %v2029
    %3380 = vmatprep.subr.bf16.mxu0 0
    %3381 = vmatpush1.bf16.msra.mxu0 0
    %3382 = vmatprep.subr.bf16.mxu0 0
    %3383 = vmatpush1.bf16.msra.mxu0 0
    %3384 = vmatprep.subr.bf16.mxu0 0
    %3385 = vmatpush1.bf16.msra.mxu0 0
    %3386 = vmatprep.subr.bf16.mxu0 0
    %3387 = vmatpush1.bf16.msra.mxu0 0
    %3388 = vmatprep.subr.bf16.mxu0 0
    %3389 = vmatpush1.bf16.msra.mxu0 0
    %3390 = vmatprep.subr.bf16.mxu0 0
    %3391 = vmatpush1.bf16.msra.mxu0 0
    %3392 = vmatprep.subr.bf16.mxu0 0
    %3393 = vmatpush1.bf16.msra.mxu0 0
    %3394 = vmatprep.subr.bf16.mxu0 0
    %3395 = vmatpush1.bf16.msra.mxu0 0
    %3396 = vmatprep.subr.bf16.mxu0 0
    %3397 = vmatpush1.bf16.msra.mxu0 0
    %3398 = vmatprep.subr.bf16.mxu0 0
    %3399 = vmatpush1.bf16.msra.mxu0 0
    %3400 = vmatprep.subr.bf16.mxu0 0
    %3401 = vmatpush1.bf16.msra.mxu0 0
    %3402 = vmatprep.subr.bf16.mxu0 0
    %3403 = vmatpush1.bf16.msra.mxu0 0
    %3404 = vmatprep.subr.bf16.mxu0 0
    %3405 = vmatpush1.bf16.msra.mxu0 0
    %3406 = vmatprep.subr.bf16.mxu0 0
    %3407 = vmatpush1.bf16.msra.mxu0 0
    %3408 = vmatprep.mubr.bf16.mxu0 0
    %3409 = vmatmul.mubr.bf16.gmra.mrb[0].mxu0 %v3308
    %v3410 = vpop.f32.mrb[0].mxu0
    %v3411 = vadd.f32 0.0, %v3410
    %v3412 = vpop.f32.mrb[0].mxu0
    %v3413 = vpop.f32.mrb[0].mxu0
    %v3414 = vpop.f32.mrb[0].mxu0
    %3415 = vdwg.mxu0
    %3417 = vrot.lane.b32.xlu0 %v3375, 32
    %v3418 = vpop.permute.xlu0 %3417
    %v3420 = vsel %vm208, %v3418, 0
    %3422 = vmatprep.subr.bf16.mxu0 0
    %3423 = vmatpush1.bf16.msra.mxu0 %v2295
    %3424 = vmatprep.subr.bf16.mxu0 0
    %3425 = vmatpush1.bf16.msra.mxu0 %v2296
    %3426 = vmatprep.subr.bf16.mxu0 0
    %3427 = vmatpush1.bf16.msra.mxu0 0
    %3428 = vmatprep.subr.bf16.mxu0 0
    %3429 = vmatpush1.bf16.msra.mxu0 0
    %3430 = vmatprep.subr.bf16.mxu0 0
    %3431 = vmatpush1.bf16.msra.mxu0 0
    %3432 = vmatprep.subr.bf16.mxu0 0
    %3433 = vmatpush1.bf16.msra.mxu0 0
    %3434 = vmatprep.subr.bf16.mxu0 0
    %3435 = vmatpush1.bf16.msra.mxu0 0
    %3436 = vmatprep.subr.bf16.mxu0 0
    %3437 = vmatpush1.bf16.msra.mxu0 0
    %3438 = vmatprep.subr.bf16.mxu0 0
    %3439 = vmatpush1.bf16.msra.mxu0 0
    %3440 = vmatprep.subr.bf16.mxu0 0
    %3441 = vmatpush1.bf16.msra.mxu0 0
    %3442 = vmatprep.subr.bf16.mxu0 0
    %3443 = vmatpush1.bf16.msra.mxu0 0
    %3444 = vmatprep.subr.bf16.mxu0 0
    %3445 = vmatpush1.bf16.msra.mxu0 0
    %3446 = vmatprep.subr.bf16.mxu0 0
    %3447 = vmatpush1.bf16.msra.mxu0 0
    %3448 = vmatprep.subr.bf16.mxu0 0
    %3449 = vmatpush1.bf16.msra.mxu0 0
    %3450 = vmatprep.subr.bf16.mxu0 0
    %3451 = vmatpush1.bf16.msra.mxu0 0
    %3452 = vmatprep.subr.bf16.mxu0 0
    %3453 = vmatpush1.bf16.msra.mxu0 0
    %3454 = vmatprep.mubr.bf16.mxu0 0
    %3455 = vmatmul.mubr.bf16.gmra.mrb[0].mxu0 %v3420
    %v3456 = vpop.f32.mrb[0].mxu0
    %v3457 = vadd.f32 %v3411, %v3456
    %v3458 = vpop.f32.mrb[0].mxu0
    %v3459 = vpop.f32.mrb[0].mxu0
    %v3460 = vpop.f32.mrb[0].mxu0
    %3461 = vdwg.mxu0
    %v3462 = vadd.f32 %v3457, %v2018
    %v3463 = vxor.u32 %v3462, 2147483648
    %v3464 = vmul.f32 %v3463, 1.442695
    %v3465 = vpow.pop %v3464
    %v3466 = vadd.f32 %v3465, 1.0
    %v3467 = vrcp.pop %v3466
    %v3468 = vmul.f32 1.0, %v3467
    %v3469 = vtanh.pop %v3462
    %v3470 = vmul.f32 %v3468, %v3256
    %3472 = vrot.lane.b32.xlu0 %v3469, 64
    %v3473 = vpop.permute.xlu0 %3472
    %v3475 = vmul.f32 %v3468, %v3473
    %3477 = vrot.lane.b32.xlu0 %v3475, 32
    %v3478 = vpop.permute.xlu0 %3477
    %v3480 = vadd.f32 %v3470, %v3478
    %v3481 = vtanh.pop %v3480
    %3483 = vrot.lane.b32.xlu0 %v3481, 64
    %v3484 = vpop.permute.xlu0 %3483
    %v3486 = vmul.f32 %v3468, %v3484
    %v3487 = vpack.c.bf16 %v3486, %v3486
    %3488 = vmatprep.subr.bf16.mxu0 0
    %3489 = vmatpush1.bf16.msra.mxu0 %v2113
    %3490 = vmatprep.subr.bf16.mxu0 0
    %3491 = vmatpush1.bf16.msra.mxu0 %v2114
    %3492 = vmatprep.subr.bf16.mxu0 0
    %3493 = vmatpush1.bf16.msra.mxu0 0
    %3494 = vmatprep.subr.bf16.mxu0 0
    %3495 = vmatpush1.bf16.msra.mxu0 0
    %3496 = vmatprep.subr.bf16.mxu0 0
    %3497 = vmatpush1.bf16.msra.mxu0 0
    %3498 = vmatprep.subr.bf16.mxu0 0
    %3499 = vmatpush1.bf16.msra.mxu0 0
    %3500 = vmatprep.subr.bf16.mxu0 0
    %3501 = vmatpush1.bf16.msra.mxu0 0
    %3502 = vmatprep.subr.bf16.mxu0 0
    %3503 = vmatpush1.bf16.msra.mxu0 0
    %3504 = vmatprep.subr.bf16.mxu0 0
    %3505 = vmatpush1.bf16.msra.mxu0 0
    %3506 = vmatprep.subr.bf16.mxu0 0
    %3507 = vmatpush1.bf16.msra.mxu0 0
    %3508 = vmatprep.subr.bf16.mxu0 0
    %3509 = vmatpush1.bf16.msra.mxu0 0
    %3510 = vmatprep.subr.bf16.mxu0 0
    %3511 = vmatpush1.bf16.msra.mxu0 0
    %3512 = vmatprep.subr.bf16.mxu0 0
    %3513 = vmatpush1.bf16.msra.mxu0 0
    %3514 = vmatprep.subr.bf16.mxu0 0
    %3515 = vmatpush1.bf16.msra.mxu0 0
    %3516 = vmatprep.subr.bf16.mxu0 0
    %3517 = vmatpush1.bf16.msra.mxu0 0
    %3518 = vmatprep.subr.bf16.mxu0 0
    %3519 = vmatpush1.bf16.msra.mxu0 0
    %3520 = vmatprep.mubr.bf16.mxu0 0
    %3521 = vmatmul.mubr.bf16.gmra.mrb[0].mxu0 %v3420
    %v3522 = vpop.f32.mrb[0].mxu0
    %v3523 = vadd.f32 0.0, %v3522
    %v3524 = vpop.f32.mrb[0].mxu0
    %v3525 = vpop.f32.mrb[0].mxu0
    %v3526 = vpop.f32.mrb[0].mxu0
    %3527 = vdwg.mxu0
    %3529 = vrot.lane.b32.xlu0 %v3487, 32
    %v3530 = vpop.permute.xlu0 %3529
    %v3532 = vsel %vm208, %v3530, 0
    %3534 = vmatprep.subr.bf16.mxu0 0
    %3535 = vmatpush1.bf16.msra.mxu0 %v2171
    %3536 = vmatprep.subr.bf16.mxu0 0
    %3537 = vmatpush1.bf16.msra.mxu0 %v2172
    %3538 = vmatprep.subr.bf16.mxu0 0
    %3539 = vmatpush1.bf16.msra.mxu0 0
    %3540 = vmatprep.subr.bf16.mxu0 0
    %3541 = vmatpush1.bf16.msra.mxu0 0
    %3542 = vmatprep.subr.bf16.mxu0 0
    %3543 = vmatpush1.bf16.msra.mxu0 0
    %3544 = vmatprep.subr.bf16.mxu0 0
    %3545 = vmatpush1.bf16.msra.mxu0 0
    %3546 = vmatprep.subr.bf16.mxu0 0
    %3547 = vmatpush1.bf16.msra.mxu0 0
    %3548 = vmatprep.subr.bf16.mxu0 0
    %3549 = vmatpush1.bf16.msra.mxu0 0
    %3550 = vmatprep.subr.bf16.mxu0 0
    %3551 = vmatpush1.bf16.msra.mxu0 0
    %3552 = vmatprep.subr.bf16.mxu0 0
    %3553 = vmatpush1.bf16.msra.mxu0 0
    %3554 = vmatprep.subr.bf16.mxu0 0
    %3555 = vmatpush1.bf16.msra.mxu0 0
    %3556 = vmatprep.subr.bf16.mxu0 0
    %3557 = vmatpush1.bf16.msra.mxu0 0
    %3558 = vmatprep.subr.bf16.mxu0 0
    %3559 = vmatpush1.bf16.msra.mxu0 0
    %3560 = vmatprep.subr.bf16.mxu0 0
    %3561 = vmatpush1.bf16.msra.mxu0 0
    %3562 = vmatprep.subr.bf16.mxu0 0
    %3563 = vmatpush1.bf16.msra.mxu0 0
    %3564 = vmatprep.subr.bf16.mxu0 0
    %3565 = vmatpush1.bf16.msra.mxu0 0
    %3566 = vmatprep.mubr.bf16.mxu0 0
    %3567 = vmatmul.mubr.bf16.gmra.mrb[0].mxu0 %v3532
    %v3568 = vpop.f32.mrb[0].mxu0
    %v3569 = vadd.f32 %v3523, %v3568
    %v3570 = vpop.f32.mrb[0].mxu0
    %v3571 = vpop.f32.mrb[0].mxu0
    %v3572 = vpop.f32.mrb[0].mxu0
    %3573 = vdwg.mxu0
    %v3574 = vadd.f32 %v3569, %v2017
    %v3575 = vxor.u32 %v3574, 2147483648
    %v3576 = vmul.f32 %v3575, 1.442695
    %v3577 = vpow.pop %v3576
    %v3578 = vadd.f32 %v3577, 1.0
    %v3579 = vrcp.pop %v3578
    %v3580 = vmul.f32 1.0, %v3579
    %v3581 = vtanh.pop %v3574
    %v3582 = vmul.f32 %v3580, %v3368
    %3584 = vrot.lane.b32.xlu0 %v3581, 64
    %v3585 = vpop.permute.xlu0 %3584
    %v3587 = vmul.f32 %v3580, %v3585
    %3589 = vrot.lane.b32.xlu0 %v3587, 32
    %v3590 = vpop.permute.xlu0 %3589
    %v3592 = vadd.f32 %v3582, %v3590
    %v3593 = vtanh.pop %v3592
    %3595 = vrot.lane.b32.xlu0 %v3593, 64
    %v3596 = vpop.permute.xlu0 %3595
    %v3598 = vmul.f32 %v3580, %v3596
    %v3599 = vpack.c.bf16 %v3598, %v3598
    %3600 = vmatprep.subr.bf16.mxu0 0
    %3601 = vmatpush1.bf16.msra.mxu0 %v2028
    %3602 = vmatprep.subr.bf16.mxu0 0
    %3603 = vmatpush1.bf16.msra.mxu0 %v2029
    %3604 = vmatprep.subr.bf16.mxu0 0
    %3605 = vmatpush1.bf16.msra.mxu0 0
    %3606 = vmatprep.subr.bf16.mxu0 0
    %3607 = vmatpush1.bf16.msra.mxu0 0
    %3608 = vmatprep.subr.bf16.mxu0 0
    %3609 = vmatpush1.bf16.msra.mxu0 0
    %3610 = vmatprep.subr.bf16.mxu0 0
    %3611 = vmatpush1.bf16.msra.mxu0 0
    %3612 = vmatprep.subr.bf16.mxu0 0
    %3613 = vmatpush1.bf16.msra.mxu0 0
    %3614 = vmatprep.subr.bf16.mxu0 0
    %3615 = vmatpush1.bf16.msra.mxu0 0
    %3616 = vmatprep.subr.bf16.mxu0 0
    %3617 = vmatpush1.bf16.msra.mxu0 0
    %3618 = vmatprep.subr.bf16.mxu0 0
    %3619 = vmatpush1.bf16.msra.mxu0 0
    %3620 = vmatprep.subr.bf16.mxu0 0
    %3621 = vmatpush1.bf16.msra.mxu0 0
    %3622 = vmatprep.subr.bf16.mxu0 0
    %3623 = vmatpush1.bf16.msra.mxu0 0
    %3624 = vmatprep.subr.bf16.mxu0 0
    %3625 = vmatpush1.bf16.msra.mxu0 0
    %3626 = vmatprep.subr.bf16.mxu0 0
    %3627 = vmatpush1.bf16.msra.mxu0 0
    %3628 = vmatprep.subr.bf16.mxu0 0
    %3629 = vmatpush1.bf16.msra.mxu0 0
    %3630 = vmatprep.subr.bf16.mxu0 0
    %3631 = vmatpush1.bf16.msra.mxu0 0
    %3632 = vmatprep.mubr.bf16.mxu0 0
    %3633 = vmatmul.mubr.bf16.gmra.mrb[0].mxu0 %v3532
    %v3634 = vpop.f32.mrb[0].mxu0
    %v3635 = vadd.f32 0.0, %v3634
    %v3636 = vpop.f32.mrb[0].mxu0
    %v3637 = vpop.f32.mrb[0].mxu0
    %v3638 = vpop.f32.mrb[0].mxu0
    %3639 = vdwg.mxu0
    %3641 = vrot.lane.b32.xlu0 %v3599, 32
    %v3642 = vpop.permute.xlu0 %3641
    %v3644 = vsel %vm208, %v3642, 0
    %3646 = vmatprep.subr.bf16.mxu0 0
    %3647 = vmatpush1.bf16.msra.mxu0 %v2295
    %3648 = vmatprep.subr.bf16.mxu0 0
    %3649 = vmatpush1.bf16.msra.mxu0 %v2296
    %3650 = vmatprep.subr.bf16.mxu0 0
    %3651 = vmatpush1.bf16.msra.mxu0 0
    %3652 = vmatprep.subr.bf16.mxu0 0
    %3653 = vmatpush1.bf16.msra.mxu0 0
    %3654 = vmatprep.subr.bf16.mxu0 0
    %3655 = vmatpush1.bf16.msra.mxu0 0
    %3656 = vmatprep.subr.bf16.mxu0 0
    %3657 = vmatpush1.bf16.msra.mxu0 0
    %3658 = vmatprep.subr.bf16.mxu0 0
    %3659 = vmatpush1.bf16.msra.mxu0 0
    %3660 = vmatprep.subr.bf16.mxu0 0
    %3661 = vmatpush1.bf16.msra.mxu0 0
    %3662 = vmatprep.subr.bf16.mxu0 0
    %3663 = vmatpush1.bf16.msra.mxu0 0
    %3664 = vmatprep.subr.bf16.mxu0 0
    %3665 = vmatpush1.bf16.msra.mxu0 0
    %3666 = vmatprep.subr.bf16.mxu0 0
    %3667 = vmatpush1.bf16.msra.mxu0 0
    %3668 = vmatprep.subr.bf16.mxu0 0
    %3669 = vmatpush1.bf16.msra.mxu0 0
    %3670 = vmatprep.subr.bf16.mxu0 0
    %3671 = vmatpush1.bf16.msra.mxu0 0
    %3672 = vmatprep.subr.bf16.mxu0 0
    %3673 = vmatpush1.bf16.msra.mxu0 0
    %3674 = vmatprep.subr.bf16.mxu0 0
    %3675 = vmatpush1.bf16.msra.mxu0 0
    %3676 = vmatprep.subr.bf16.mxu0 0
    %3677 = vmatpush1.bf16.msra.mxu0 0
    %3678 = vmatprep.mubr.bf16.mxu0 0
    %3679 = vmatmul.mubr.bf16.gmra.mrb[0].mxu0 %v3644
    %v3680 = vpop.f32.mrb[0].mxu0
    %v3681 = vadd.f32 %v3635, %v3680
    %v3682 = vpop.f32.mrb[0].mxu0
    %v3683 = vpop.f32.mrb[0].mxu0
    %v3684 = vpop.f32.mrb[0].mxu0
    %3685 = vdwg.mxu0
    %v3686 = vadd.f32 %v3681, %v2018
    %v3687 = vxor.u32 %v3686, 2147483648
    %v3688 = vmul.f32 %v3687, 1.442695
    %v3689 = vpow.pop %v3688
    %v3690 = vadd.f32 %v3689, 1.0
    %v3691 = vrcp.pop %v3690
    %v3692 = vmul.f32 1.0, %v3691
    %v3693 = vtanh.pop %v3686
    %v3694 = vmul.f32 %v3692, %v3480
    %3696 = vrot.lane.b32.xlu0 %v3693, 64
    %v3697 = vpop.permute.xlu0 %3696
    %v3699 = vmul.f32 %v3692, %v3697
    %3701 = vrot.lane.b32.xlu0 %v3699, 32
    %v3702 = vpop.permute.xlu0 %3701
    %v3704 = vadd.f32 %v3694, %v3702
    %v3705 = vtanh.pop %v3704
    %3707 = vrot.lane.b32.xlu0 %v3705, 64
    %v3708 = vpop.permute.xlu0 %3707
    %v3710 = vmul.f32 %v3692, %v3708
    %v3711 = vpack.c.bf16 %v3710, %v3710
    %3712 = vmatprep.subr.bf16.mxu0 0
    %3713 = vmatpush1.bf16.msra.mxu0 %v2113
    %3714 = vmatprep.subr.bf16.mxu0 0
    %3715 = vmatpush1.bf16.msra.mxu0 %v2114
    %3716 = vmatprep.subr.bf16.mxu0 0
    %3717 = vmatpush1.bf16.msra.mxu0 0
    %3718 = vmatprep.subr.bf16.mxu0 0
    %3719 = vmatpush1.bf16.msra.mxu0 0
    %3720 = vmatprep.subr.bf16.mxu0 0
    %3721 = vmatpush1.bf16.msra.mxu0 0
    %3722 = vmatprep.subr.bf16.mxu0 0
    %3723 = vmatpush1.bf16.msra.mxu0 0
    %3724 = vmatprep.subr.bf16.mxu0 0
    %3725 = vmatpush1.bf16.msra.mxu0 0
    %3726 = vmatprep.subr.bf16.mxu0 0
    %3727 = vmatpush1.bf16.msra.mxu0 0
    %3728 = vmatprep.subr.bf16.mxu0 0
    %3729 = vmatpush1.bf16.msra.mxu0 0
    %3730 = vmatprep.subr.bf16.mxu0 0
    %3731 = vmatpush1.bf16.msra.mxu0 0
    %3732 = vmatprep.subr.bf16.mxu0 0
    %3733 = vmatpush1.bf16.msra.mxu0 0
    %3734 = vmatprep.subr.bf16.mxu0 0
    %3735 = vmatpush1.bf16.msra.mxu0 0
    %3736 = vmatprep.subr.bf16.mxu0 0
    %3737 = vmatpush1.bf16.msra.mxu0 0
    %3738 = vmatprep.subr.bf16.mxu0 0
    %3739 = vmatpush1.bf16.msra.mxu0 0
    %3740 = vmatprep.subr.bf16.mxu0 0
    %3741 = vmatpush1.bf16.msra.mxu0 0
    %3742 = vmatprep.subr.bf16.mxu0 0
    %3743 = vmatpush1.bf16.msra.mxu0 0
    %3744 = vmatprep.mubr.bf16.mxu0 0
    %3745 = vmatmul.mubr.bf16.gmra.mrb[0].mxu0 %v3644
    %v3746 = vpop.f32.mrb[0].mxu0
    %v3747 = vadd.f32 0.0, %v3746
    %v3748 = vpop.f32.mrb[0].mxu0
    %v3749 = vpop.f32.mrb[0].mxu0
    %v3750 = vpop.f32.mrb[0].mxu0
    %3751 = vdwg.mxu0
    %3753 = vrot.lane.b32.xlu0 %v3711, 32
    %v3754 = vpop.permute.xlu0 %3753
    %v3756 = vsel %vm208, %v3754, 0
    %3758 = vmatprep.subr.bf16.mxu0 0
    %3759 = vmatpush1.bf16.msra.mxu0 %v2171
    %3760 = vmatprep.subr.bf16.mxu0 0
    %3761 = vmatpush1.bf16.msra.mxu0 %v2172
    %3762 = vmatprep.subr.bf16.mxu0 0
    %3763 = vmatpush1.bf16.msra.mxu0 0
    %3764 = vmatprep.subr.bf16.mxu0 0
    %3765 = vmatpush1.bf16.msra.mxu0 0
    %3766 = vmatprep.subr.bf16.mxu0 0
    %3767 = vmatpush1.bf16.msra.mxu0 0
    %3768 = vmatprep.subr.bf16.mxu0 0
    %3769 = vmatpush1.bf16.msra.mxu0 0
    %3770 = vmatprep.subr.bf16.mxu0 0
    %3771 = vmatpush1.bf16.msra.mxu0 0
    %3772 = vmatprep.subr.bf16.mxu0 0
    %3773 = vmatpush1.bf16.msra.mxu0 0
    %3774 = vmatprep.subr.bf16.mxu0 0
    %3775 = vmatpush1.bf16.msra.mxu0 0
    %3776 = vmatprep.subr.bf16.mxu0 0
    %3777 = vmatpush1.bf16.msra.mxu0 0
    %3778 = vmatprep.subr.bf16.mxu0 0
    %3779 = vmatpush1.bf16.msra.mxu0 0
    %3780 = vmatprep.subr.bf16.mxu0 0
    %3781 = vmatpush1.bf16.msra.mxu0 0
    %3782 = vmatprep.subr.bf16.mxu0 0
    %3783 = vmatpush1.bf16.msra.mxu0 0
    %3784 = vmatprep.subr.bf16.mxu0 0
    %3785 = vmatpush1.bf16.msra.mxu0 0
    %3786 = vmatprep.subr.bf16.mxu0 0
    %3787 = vmatpush1.bf16.msra.mxu0 0
    %3788 = vmatprep.subr.bf16.mxu0 0
    %3789 = vmatpush1.bf16.msra.mxu0 0
    %3790 = vmatprep.mubr.bf16.mxu0 0
    %3791 = vmatmul.mubr.bf16.gmra.mrb[0].mxu0 %v3756
    %v3792 = vpop.f32.mrb[0].mxu0
    %v3793 = vadd.f32 %v3747, %v3792
    %v3794 = vpop.f32.mrb[0].mxu0
    %v3795 = vpop.f32.mrb[0].mxu0
    %v3796 = vpop.f32.mrb[0].mxu0
    %3797 = vdwg.mxu0
    %v3798 = vadd.f32 %v3793, %v2017
    %v3799 = vxor.u32 %v3798, 2147483648
    %v3800 = vmul.f32 %v3799, 1.442695
    %v3801 = vpow.pop %v3800
    %v3802 = vadd.f32 %v3801, 1.0
    %v3803 = vrcp.pop %v3802
    %v3804 = vmul.f32 1.0, %v3803
    %v3805 = vtanh.pop %v3798
    %v3806 = vmul.f32 %v3804, %v3592
    %3808 = vrot.lane.b32.xlu0 %v3805, 64
    %v3809 = vpop.permute.xlu0 %3808
    %v3811 = vmul.f32 %v3804, %v3809
    %3813 = vrot.lane.b32.xlu0 %v3811, 32
    %v3814 = vpop.permute.xlu0 %3813
    %v3816 = vadd.f32 %v3806, %v3814
    %v3817 = vtanh.pop %v3816
    %3819 = vrot.lane.b32.xlu0 %v3817, 64
    %v3820 = vpop.permute.xlu0 %3819
    %v3822 = vmul.f32 %v3804, %v3820
    %v3824 = vrot.slane %v3598, 7
    %v3827 = vrot.slane %v3374, 6
    %v3830 = vrot.slane %v3150, 5
    %v3833 = vrot.slane %v2926, 4
    %v3836 = vrot.slane %v2702, 3
    %v3839 = vrot.slane %v2478, 2
    %v3842 = vrot.slane %v2242, 1
    %v3844 = vsel %vm1834, %v3822, %v3824
    %vm3845 = vcmask 1041408
    %v3846 = vsel %vm3845, %v3844, %v3827
    %vm3847 = vcmask 1042432
    %v3848 = vsel %vm3847, %v3846, %v3830
    %vm3849 = vcmask 1043456
    %v3850 = vsel %vm3849, %v3848, %v3833
    %vm3851 = vcmask 1044480
    %v3852 = vsel %vm3851, %v3850, %v3836
    %vm3853 = vcmask 1045504
    %v3854 = vsel %vm3853, %v3852, %v3839
    %vm3855 = vcmask 1046528
    %v3856 = vsel %vm3855, %v3854, %v3842
    %3858 = vrot.lane.b32.xlu0 %v3856, 32
    %v3859 = vpop.permute.xlu0 %3858
    %3861 = vst.msk [vmem:[#allocation22] sm:$0xff] %vm208, %v3859
    // Predicated region
    $region98: #{_vae_forward.1} parent=1 // pred_check
      _
    $region99: #{_vae_forward.1} parent=1 // pred_check_branch
      %3863 = sbr.rel (0) target = $region101
    $region100: #{_vae_forward.1} parent=1 // pred_region
      %s3865 = ssub.s32 32, 32
      %3866 = vsyncadd [#allocation4], %s3865
      %s3868 = sshll.u32 [#allocation19], 4
      %s3869 = int_to_ptr.vmem [resolvable:$true] %s3868
      %3871 = dma.vmem_to_hbm [thread:$0]  %s3869, 32, %s14, [#allocation4]
    $region101: #{_vae_forward.1} parent=1 // pred_fallthru
      _
    // Predicated region
    $region102: #{_vae_forward.1} parent=1 // pred_check
      _
    $region103: #{_vae_forward.1} parent=1 // pred_check_branch
      %3873 = sbr.rel (0) target = $region105
    $region104: #{_vae_forward.1} parent=1 // pred_region
      %s3875 = ssub.s32 32, 32
      %3876 = vsyncadd [#allocation21], %s3875
      %s3878 = sshll.u32 [#allocation20], 4
      %s3879 = int_to_ptr.vmem [resolvable:$true] %s3878
      %3881 = dma.vmem_to_hbm [thread:$0]  %s3879, 32, %s15, [#allocation21]
    $region105: #{_vae_forward.1} parent=1 // pred_fallthru
      _
    // Predicated region
    $region106: #{_vae_forward.1} parent=1 // pred_check
      _
    $region107: #{_vae_forward.1} parent=1 // pred_check_branch
      %3883 = sbr.rel (0) target = $region109
    $region108: #{_vae_forward.1} parent=1 // pred_region
      %s3885 = ssub.s32 128, 128
      %3886 = vsyncadd [#allocation21], %s3885
      %s3888 = sshll.u32 [#allocation22], 4
      %s3889 = int_to_ptr.vmem [resolvable:$true] %s3888
      %3891 = dma.vmem_to_hbm [thread:$0]  %s3889, 128, %s16, [#allocation21]
    $region109: #{_vae_forward.1} parent=1 // pred_fallthru
      _
    // Predicated region
    $region110: #{_vae_forward.1} parent=1 // pred_check
      _
    $region111: #{_vae_forward.1} parent=1 // pred_check_branch
      %3893 = sbr.rel (0) target = $region113
    $region112: #{_vae_forward.1} parent=1 // pred_region
      %3894 = dma.done [#allocation4], 32
    $region113: #{_vae_forward.1} parent=1 // pred_fallthru
      _
    // Predicated region
    $region114: #{_vae_forward.1} parent=1 // pred_check
      _
    $region115: #{_vae_forward.1} parent=1 // pred_check_branch
      %3896 = sbr.rel (0) target = $region117
    $region116: #{_vae_forward.1} parent=1 // pred_region
      %3897 = dma.done [#allocation21], 32
    $region117: #{_vae_forward.1} parent=1 // pred_fallthru
      _
    // Predicated region
    $region118: #{_vae_forward.1} parent=1 // pred_check
      _
    $region119: #{_vae_forward.1} parent=1 // pred_check_branch
      %3899 = sbr.rel (0) target = $region121
    $region120: #{_vae_forward.1} parent=1 // pred_region
      %3900 = dma.done [#allocation21], 128
    $region121: #{_vae_forward.1} parent=1 // pred_fallthru
      _
    %3901 = vsyncpa [#allocation3], 1
    %3902 = vsyncpa [#allocation6], 1
    %3903 = vsyncpa [#allocation9], 1
    %3904 = vsyncpa [#allocation12], 1
    %3905 = vsyncpa [#allocation15], 1
    %3906 = vsyncpa [#allocation18], 1
    %3907 = vsyncpa [#allocation4], 1
    %3908 = vsyncpa [#allocation21], 1

</llo_original>
